<compile_context>
chip_gen: v7x
topology: tpu7x:2x2x1
jax: 0.10.0
libtpu: 0.0.40
codegen_flags: <defaults>
</compile_context>

<pallas_src>
import jax
import jax.numpy as jnp
from jax.experimental import pallas as pl
from jax.experimental.pallas import tpu as pltpu

# ---- hyperparameters (small, deterministic demo sizes) ----------------------
D_MODEL = 32
N_LAYER = 2
VOCAB = 64
D_STATE = 16
D_CONV = 4
EXPAND = 2
D_INNER = EXPAND * D_MODEL            # 64
DT_RANK = (D_MODEL + 15) // 16        # ceil(d_model / 16) = 2
EPS = 1e-5
BATCH = 2
SEQLEN = 8


# ---- small in-kernel helpers --------------------------------------------------
def _silu(v):
    # sigmoid lowers to the EUP logistic unit (frees the VPU divide chain)
    return v * jax.nn.sigmoid(v)


def _softplus(v):
    # matches torch.nn.functional.softplus (threshold=20)
    return jnp.where(v > 20.0, v, jnp.log(1.0 + jnp.exp(v)))


def _layernorm(x, g, b):
    mu = jnp.mean(x, axis=-1, keepdims=True)
    xc = x - mu
    var = jnp.mean(xc * xc, axis=-1, keepdims=True)
    return (xc * jax.lax.rsqrt(var + EPS)) * g + b


# ---- fused kernel: full MixerModel forward for one batch element --------------
def _fused_mixer_kernel(h_ref, ln_g_ref, ln_b_ref, w_in_ref, conv_w_ref, conv_b_ref,
                        w_xp_ref, b_dt_ref, a_T_ref, d_ref, w_out_ref,
                        lnf_g_ref, lnf_b_ref, out_ref, xpad_ref, states_ref):
    E, N, K = D_INNER, D_STATE, D_CONV

    h = h_ref[0].astype(jnp.float32)                     # (L, D)
    L = h.shape[0]
    res = jnp.zeros_like(h)

    # zero the causal-conv padding buffer once; the first K-1 rows stay zero.
    xpad_ref[...] = jnp.zeros_like(xpad_ref)

    for li in range(N_LAYER):                            # static layer loop
        # ---- residual add + LayerNorm (pre-norm Block) ----
        res = h + res
        normed = _layernorm(res, ln_g_ref[li], ln_b_ref[li])

        # ---- Mamba mixer ----
        # fused input projection: one lane-dense (D, 2E) = (32, 128) matmul
        xz = jnp.dot(normed, w_in_ref[li], preferred_element_type=jnp.float32)  # (L, 2E)
        x = xz[:, :E]                                    # (L, E)
        z = xz[:, E:]                                    # (L, E)

        # causal depthwise conv1d along the sequence axis (+bias, SiLU),
        # using the persistent zero-left-padded scratch (no concatenate copy)
        xpad_ref[K - 1:, :] = x                          # rows 0..K-2 remain zero
        cw = conv_w_ref[li]                              # (K, E)
        acc = jnp.zeros((L, E), jnp.float32)
        for k in range(K):                               # static K taps
            acc = acc + xpad_ref[k:k + L, :] * cw[k:k + 1, :]
        x = _silu(acc + conv_b_ref[li])                  # (L, E)

        # fused data-dependent projections: one (E, E+2N) matmul.
        # columns [:E]      -> delta_pre (dt low-rank path folded host-side)
        #         [E:E+N]   -> B
        #         [E+N:]    -> C
        xp = jnp.dot(x, w_xp_ref[li], preferred_element_type=jnp.float32)   # (L, E+2N)
        delta = _softplus(xp[:, :E] + b_dt_ref[li])                          # (L, E)
        Bm = xp[:, E:E + N]                                                  # (L, N)
        Cm = xp[:, E + N:]                                                   # (L, N)

        # bulk-precompute scan coefficients -> serial loop is one FMA per step
        A_T = a_T_ref[li]                                                    # (N, E) = A^T
        du = delta * x                                                       # (L, E)
        dA = jnp.exp(delta[:, None, :] * A_T[None, :, :])                    # (L, N, E)
        dBu = Bm[:, :, None] * du[:, None, :]                                # (L, N, E)

        state = jnp.zeros((N, E), jnp.float32)
        for t in range(L):                               # static, tiny L
            state = state * dA[t] + dBu[t]
            states_ref[t] = state
        # y[l, e] = sum_n states[l, n, e] * C[l, n]   (out of the serial chain)
        y = jnp.sum(states_ref[...] * Cm[:, :, None], axis=1)                # (L, E)
        y = y + x * d_ref[li]

        # gate + output projection
        y = y * _silu(z)
        h = jnp.dot(y, w_out_ref[li], preferred_element_type=jnp.float32)    # (L, D)

    # ---- final residual add + LayerNorm ----
    res = h + res
    out_ref[0] = _layernorm(res, lnf_g_ref[...], lnf_b_ref[...])


def mixer_forward_fused(h0, params):
    B, L, D = h0.shape
    E, N, K, NL = D_INNER, D_STATE, D_CONV, N_LAYER

    def rep(shape):
        zeros = (0,) * len(shape)
        return pl.BlockSpec(shape, lambda b, _z=zeros: _z)

    return pl.pallas_call(
        _fused_mixer_kernel,
        out_shape=jax.ShapeDtypeStruct((B, L, D), jnp.float32),
        grid_spec=pltpu.PrefetchScalarGridSpec(
            num_scalar_prefetch=0,
            grid=(B,),
            in_specs=[
                pl.BlockSpec((1, L, D), lambda b: (b, 0, 0)),   # hidden states
                rep((NL, 1, D)), rep((NL, 1, D)),               # per-layer LN gamma/beta
                rep((NL, D, 2 * E)),                            # fused in_proj
                rep((NL, K, E)), rep((NL, 1, E)),               # conv weight / bias
                rep((NL, E, E + 2 * N)), rep((NL, 1, E)),       # fused dt/B/C proj, dt bias
                rep((NL, N, E)), rep((NL, 1, E)),               # A^T, D (skip) vector
                rep((NL, E, D)),                                # out_proj
                rep((1, D)), rep((1, D)),                       # final LN gamma/beta
            ],
            out_specs=pl.BlockSpec((1, L, D), lambda b: (b, 0, 0)),
            scratch_shapes=[
                pltpu.VMEM((L + K - 1, E), jnp.float32),        # causal-conv pad buffer
                pltpu.VMEM((L, N, E), jnp.float32),             # scan states
            ],
        ),
        compiler_params=pltpu.CompilerParams(
            dimension_semantics=("parallel",)),                 # v7x: batch -> 2 TCs
    )(h0, params['ln_g'], params['ln_b'], params['w_in'],
      params['conv_w'], params['conv_b'], params['w_xp'], params['b_dt'],
      params['a_T'], params['d_vec'], params['w_out'],
      params['ln_f_g'], params['ln_f_b'])


# ---- deterministic parameter construction (stacked, TPU-friendly layouts) -----
def init_params(key):
    keys = jax.random.split(key, 1 + N_LAYER)
    D, E, N, R, K = D_MODEL, D_INNER, D_STATE, DT_RANK, D_CONV
    params = {'embedding': 0.02 * jax.random.normal(keys[0], (VOCAB, D), jnp.float32)}

    ln_g, ln_b, w_in, conv_w, conv_b = [], [], [], [], []
    w_xp, b_dt, a_T, d_vec, w_out = [], [], [], [], []
    for i in range(N_LAYER):
        ks = jax.random.split(keys[1 + i], 7)
        w_in_full = jax.random.normal(ks[0], (2 * E, D), jnp.float32) / jnp.sqrt(D)
        cw = jax.random.normal(ks[1], (E, 1, K), jnp.float32) / jnp.sqrt(K)
        cb = 0.01 * jax.random.normal(ks[2], (E,), jnp.float32)
        w_x = jax.random.normal(ks[3], (R + 2 * N, E), jnp.float32) / jnp.sqrt(E)
        w_dt = jax.random.normal(ks[4], (E, R), jnp.float32) / jnp.sqrt(R)
        # dt bias = inverse-softplus of dt in [1e-3, 1e-1], as in Mamba init
        dt = jnp.exp(jax.random.uniform(ks[5], (E,), jnp.float32)
                     * (jnp.log(0.1) - jnp.log(0.001)) + jnp.log(0.001))
        dt = jnp.clip(dt, 1e-4)
        bdt = dt + jnp.log(-jnp.expm1(-dt))
        a_log = jnp.log(jnp.tile(jnp.arange(1, N + 1, dtype=jnp.float32)[None, :], (E, 1)))
        wo = jax.random.normal(ks[6], (D, E), jnp.float32) / (jnp.sqrt(E) * jnp.sqrt(N_LAYER))

        # TPU-friendly (right-multiply) layouts + algebraic folds
        w_dtr_T = w_x[:R, :].T                      # (E, R)
        w_B_T = w_x[R:R + N, :].T                   # (E, N)
        w_C_T = w_x[R + N:, :].T                    # (E, N)
        w_dt_full = w_dtr_T @ w_dt.T                # (E, E)  == fold of low-rank dt path

        ln_g.append(jnp.ones((1, D), jnp.float32))
        ln_b.append(jnp.zeros((1, D), jnp.float32))
        w_in.append(w_in_full.T)                                          # (D, 2E): [:E]->x, [E:]->z
        conv_w.append(cw[:, 0, :].T)                                      # (K, E)
        conv_b.append(cb[None, :])                                        # (1, E)
        w_xp.append(jnp.concatenate([w_dt_full, w_B_T, w_C_T], axis=1))   # (E, E+2N)
        b_dt.append(bdt[None, :])                                         # (1, E)
        a_T.append((-jnp.exp(a_log)).T)                                   # (N, E) = A^T
        d_vec.append(jnp.ones((1, E), jnp.float32))
        w_out.append(wo.T)                                                # (E, D)

    params.update({
        'ln_g': jnp.stack(ln_g), 'ln_b': jnp.stack(ln_b),
        'w_in': jnp.stack(w_in),
        'conv_w': jnp.stack(conv_w), 'conv_b': jnp.stack(conv_b),
        'w_xp': jnp.stack(w_xp), 'b_dt': jnp.stack(b_dt),
        'a_T': jnp.stack(a_T), 'd_vec': jnp.stack(d_vec),
        'w_out': jnp.stack(w_out),
        'ln_f_g': jnp.ones((1, D), jnp.float32),
        'ln_f_b': jnp.zeros((1, D), jnp.float32),
    })
    return params


# ---- MixerModel forward --------------------------------------------------------
def mixer_model_forward(params, input_ids):
    # embedding lookup (token-id gather) kept as plain-JAX glue
    h0 = jnp.take(params['embedding'], input_ids, axis=0)    # (B, L, D)
    return mixer_forward_fused(h0, params)


if __name__ == "__main__":
    key = jax.random.PRNGKey(0)
    pkey, dkey = jax.random.split(key)
    params = init_params(pkey)
    input_ids = jax.random.randint(dkey, (BATCH, SEQLEN), 0, VOCAB, dtype=jnp.int32)

    out = jax.jit(mixer_model_forward)(params, input_ids)
    jax.block_until_ready(out)
    assert out.shape == (BATCH, SEQLEN, D_MODEL)
    assert bool(jnp.all(jnp.isfinite(out)))
    print("KERNEL_OK")
</pallas_src>

<mosaic_0001>
module attributes {stable_mosaic.version = 11 : i64} {
  func.func @_fused_mixer_kernel(%arg0: i32, %arg1: memref<1x8x32xf32, #tpu.memory_space<vmem>>, %arg2: memref<2x1x32xf32, #tpu.memory_space<vmem>>, %arg3: memref<2x1x32xf32, #tpu.memory_space<vmem>>, %arg4: memref<2x32x128xf32, #tpu.memory_space<vmem>>, %arg5: memref<2x4x64xf32, #tpu.memory_space<vmem>>, %arg6: memref<2x1x64xf32, #tpu.memory_space<vmem>>, %arg7: memref<2x64x96xf32, #tpu.memory_space<vmem>>, %arg8: memref<2x1x64xf32, #tpu.memory_space<vmem>>, %arg9: memref<2x16x64xf32, #tpu.memory_space<vmem>>, %arg10: memref<2x1x64xf32, #tpu.memory_space<vmem>>, %arg11: memref<2x64x32xf32, #tpu.memory_space<vmem>>, %arg12: memref<1x32xf32, #tpu.memory_space<vmem>>, %arg13: memref<1x32xf32, #tpu.memory_space<vmem>>, %arg14: memref<1x8x32xf32, #tpu.memory_space<vmem>>, %arg15: memref<11x64xf32, #tpu.memory_space<vmem>>, %arg16: memref<8x16x64xf32, #tpu.memory_space<vmem>>) attributes {dimension_semantics = [#tpu.dimension_semantics<parallel>], iteration_bounds = array<i64: 2>, scalar_prefetch = 0 : i64, scratch_operands = 2 : i64, tpu.core_type = #tpu.core_type<tc>, window_params = [{transform_indices = @transform_0, window_bounds = array<i64: 1, 8, 32>}, {pipeline_mode = #tpu.pipeline_mode<synchronous>, transform_indices = @transform_1, window_bounds = array<i64: 2, 1, 32>}, {pipeline_mode = #tpu.pipeline_mode<synchronous>, transform_indices = @transform_2, window_bounds = array<i64: 2, 1, 32>}, {pipeline_mode = #tpu.pipeline_mode<synchronous>, transform_indices = @transform_3, window_bounds = array<i64: 2, 32, 128>}, {pipeline_mode = #tpu.pipeline_mode<synchronous>, transform_indices = @transform_4, window_bounds = array<i64: 2, 4, 64>}, {pipeline_mode = #tpu.pipeline_mode<synchronous>, transform_indices = @transform_5, window_bounds = array<i64: 2, 1, 64>}, {pipeline_mode = #tpu.pipeline_mode<synchronous>, transform_indices = @transform_6, window_bounds = array<i64: 2, 64, 96>}, {pipeline_mode = #tpu.pipeline_mode<synchronous>, transform_indices = @transform_7, window_bounds = array<i64: 2, 1, 64>}, {pipeline_mode = #tpu.pipeline_mode<synchronous>, transform_indices = @transform_8, window_bounds = array<i64: 2, 16, 64>}, {pipeline_mode = #tpu.pipeline_mode<synchronous>, transform_indices = @transform_9, window_bounds = array<i64: 2, 1, 64>}, {pipeline_mode = #tpu.pipeline_mode<synchronous>, transform_indices = @transform_10, window_bounds = array<i64: 2, 64, 32>}, {pipeline_mode = #tpu.pipeline_mode<synchronous>, transform_indices = @transform_11, window_bounds = array<i64: 1, 32>}, {pipeline_mode = #tpu.pipeline_mode<synchronous>, transform_indices = @transform_12, window_bounds = array<i64: 1, 32>}, {transform_indices = @transform_13, window_bounds = array<i64: 1, 8, 32>}]} {
    %c0 = arith.constant 0 : index
    %c0_0 = arith.constant 0 : index
    %c0_1 = arith.constant 0 : index
    %0 = vector.load %arg1[%c0, %c0_0, %c0_1] : memref<1x8x32xf32, #tpu.memory_space<vmem>>, vector<1x8x32xf32>
    %1 = vector.shape_cast %0 : vector<1x8x32xf32> to vector<8x32xf32>
    %cst = arith.constant 0.000000e+00 : f32
    %2 = vector.broadcast %cst : f32 to vector<8x32xf32>
    %cst_2 = arith.constant 0.000000e+00 : f32
    %3 = vector.broadcast %cst_2 : f32 to vector<11x64xf32>
    %c0_3 = arith.constant 0 : index
    %c0_4 = arith.constant 0 : index
    %4 = vector.load %arg15[%c0_3, %c0_4] : memref<11x64xf32, #tpu.memory_space<vmem>>, vector<11x64xf32>
    tpu.vector_store %arg15[%c0_3, %c0_4], %3 {strides = array<i32>} : memref<11x64xf32, #tpu.memory_space<vmem>>, vector<11x64xf32>,
    %5 = arith.addf %1, %2 : vector<8x32xf32>
    %c0_5 = arith.constant 0 : index
    %c0_6 = arith.constant 0 : index
    %c0_7 = arith.constant 0 : index
    %6 = vector.load %arg2[%c0_5, %c0_6, %c0_7] : memref<2x1x32xf32, #tpu.memory_space<vmem>>, vector<1x1x32xf32>
    %7 = vector.shape_cast %6 : vector<1x1x32xf32> to vector<1x32xf32>
    %c0_8 = arith.constant 0 : index
    %c0_9 = arith.constant 0 : index
    %c0_10 = arith.constant 0 : index
    %8 = vector.load %arg3[%c0_8, %c0_9, %c0_10] : memref<2x1x32xf32, #tpu.memory_space<vmem>>, vector<1x1x32xf32>
    %9 = vector.shape_cast %8 : vector<1x1x32xf32> to vector<1x32xf32>
    %cst_11 = arith.constant dense<0.000000e+00> : vector<8xf32>
    %10 = vector.multi_reduction <add>, %5, %cst_11 [1] : vector<8x32xf32> to vector<8xf32>
    %11 = vector.shape_cast %10 : vector<8xf32> to vector<8x1xf32>
    %cst_12 = arith.constant 3.200000e+01 : f32
    %12 = vector.broadcast %cst_12 : f32 to vector<8x1xf32>
    %13 = arith.divf %11, %12 : vector<8x1xf32>
    %14 = vector.broadcast %13 : vector<8x1xf32> to vector<8x32xf32>
    %15 = arith.subf %5, %14 : vector<8x32xf32>
    %16 = arith.mulf %15, %15 : vector<8x32xf32>
    %cst_13 = arith.constant dense<0.000000e+00> : vector<8xf32>
    %17 = vector.multi_reduction <add>, %16, %cst_13 [1] : vector<8x32xf32> to vector<8xf32>
    %18 = vector.shape_cast %17 : vector<8xf32> to vector<8x1xf32>
    %cst_14 = arith.constant 3.200000e+01 : f32
    %19 = vector.broadcast %cst_14 : f32 to vector<8x1xf32>
    %20 = arith.divf %18, %19 : vector<8x1xf32>
    %cst_15 = arith.constant 9.99999974E-6 : f32
    %21 = vector.broadcast %cst_15 : f32 to vector<8x1xf32>
    %22 = arith.addf %20, %21 : vector<8x1xf32>
    %23 = math.rsqrt %22 : vector<8x1xf32>
    %24 = vector.broadcast %23 : vector<8x1xf32> to vector<8x32xf32>
    %25 = arith.mulf %15, %24 : vector<8x32xf32>
    %26 = vector.broadcast %7 : vector<1x32xf32> to vector<8x32xf32>
    %27 = arith.mulf %25, %26 : vector<8x32xf32>
    %28 = vector.broadcast %9 : vector<1x32xf32> to vector<8x32xf32>
    %29 = arith.addf %27, %28 : vector<8x32xf32>
    %c0_16 = arith.constant 0 : index
    %c0_17 = arith.constant 0 : index
    %c0_18 = arith.constant 0 : index
    %30 = vector.load %arg4[%c0_16, %c0_17, %c0_18] : memref<2x32x128xf32, #tpu.memory_space<vmem>>, vector<1x32x128xf32>
    %31 = vector.shape_cast %30 : vector<1x32x128xf32> to vector<32x128xf32>
    %cst_19 = arith.constant dense<0.000000e+00> : vector<8x128xf32>
    %32 = tpu.matmul %29, %31, %cst_19 {dimension_numbers = #tpu.dot_dimension_numbers<[1], [0], [0], [1], [0, 0, 1, 1], [], []>} : vector<8x32xf32>, vector<32x128xf32>, vector<8x128xf32> -> vector<8x128xf32>
    %33 = vector.extract_strided_slice %32 {offsets = [0, 0], sizes = [8, 64], strides = [1, 1]} : vector<8x128xf32> to vector<8x64xf32>
    %34 = vector.extract_strided_slice %32 {offsets = [0, 64], sizes = [8, 64], strides = [1, 1]} : vector<8x128xf32> to vector<8x64xf32>
    %c3 = arith.constant 3 : index
    %c0_20 = arith.constant 0 : index
    %35 = vector.load %arg15[%c3, %c0_20] : memref<11x64xf32, #tpu.memory_space<vmem>>, vector<8x64xf32>
    tpu.vector_store %arg15[%c3, %c0_20], %33 {strides = array<i32>} : memref<11x64xf32, #tpu.memory_space<vmem>>, vector<8x64xf32>,
    %c0_21 = arith.constant 0 : index
    %c0_22 = arith.constant 0 : index
    %c0_23 = arith.constant 0 : index
    %36 = vector.load %arg5[%c0_21, %c0_22, %c0_23] : memref<2x4x64xf32, #tpu.memory_space<vmem>>, vector<1x4x64xf32>
    %37 = vector.shape_cast %36 : vector<1x4x64xf32> to vector<4x64xf32>
    %cst_24 = arith.constant 0.000000e+00 : f32
    %38 = vector.broadcast %cst_24 : f32 to vector<8x64xf32>
    %c0_25 = arith.constant 0 : index
    %c0_26 = arith.constant 0 : index
    %39 = vector.load %arg15[%c0_25, %c0_26] : memref<11x64xf32, #tpu.memory_space<vmem>>, vector<8x64xf32>
    %40 = vector.extract_strided_slice %37 {offsets = [0, 0], sizes = [1, 64], strides = [1, 1]} : vector<4x64xf32> to vector<1x64xf32>
    %41 = vector.broadcast %40 : vector<1x64xf32> to vector<8x64xf32>
    %42 = arith.mulf %39, %41 : vector<8x64xf32>
    %43 = arith.addf %38, %42 : vector<8x64xf32>
    %c1 = arith.constant 1 : index
    %c0_27 = arith.constant 0 : index
    %44 = vector.load %arg15[%c1, %c0_27] : memref<11x64xf32, #tpu.memory_space<vmem>>, vector<8x64xf32>
    %45 = vector.extract_strided_slice %37 {offsets = [1, 0], sizes = [1, 64], strides = [1, 1]} : vector<4x64xf32> to vector<1x64xf32>
    %46 = vector.broadcast %45 : vector<1x64xf32> to vector<8x64xf32>
    %47 = arith.mulf %44, %46 : vector<8x64xf32>
    %48 = arith.addf %43, %47 : vector<8x64xf32>
    %c2 = arith.constant 2 : index
    %c0_28 = arith.constant 0 : index
    %49 = vector.load %arg15[%c2, %c0_28] : memref<11x64xf32, #tpu.memory_space<vmem>>, vector<8x64xf32>
    %50 = vector.extract_strided_slice %37 {offsets = [2, 0], sizes = [1, 64], strides = [1, 1]} : vector<4x64xf32> to vector<1x64xf32>
    %51 = vector.broadcast %50 : vector<1x64xf32> to vector<8x64xf32>
    %52 = arith.mulf %49, %51 : vector<8x64xf32>
    %53 = arith.addf %48, %52 : vector<8x64xf32>
    %c3_29 = arith.constant 3 : index
    %c0_30 = arith.constant 0 : index
    %54 = vector.load %arg15[%c3_29, %c0_30] : memref<11x64xf32, #tpu.memory_space<vmem>>, vector<8x64xf32>
    %55 = vector.extract_strided_slice %37 {offsets = [3, 0], sizes = [1, 64], strides = [1, 1]} : vector<4x64xf32> to vector<1x64xf32>
    %56 = vector.broadcast %55 : vector<1x64xf32> to vector<8x64xf32>
    %57 = arith.mulf %54, %56 : vector<8x64xf32>
    %58 = arith.addf %53, %57 : vector<8x64xf32>
    %c0_31 = arith.constant 0 : index
    %c0_32 = arith.constant 0 : index
    %c0_33 = arith.constant 0 : index
    %59 = vector.load %arg6[%c0_31, %c0_32, %c0_33] : memref<2x1x64xf32, #tpu.memory_space<vmem>>, vector<1x1x64xf32>
    %60 = vector.shape_cast %59 : vector<1x1x64xf32> to vector<1x64xf32>
    %61 = vector.broadcast %60 : vector<1x64xf32> to vector<8x64xf32>
    %62 = arith.addf %58, %61 : vector<8x64xf32>
    %63 = arith.negf %62 : vector<8x64xf32>
    %64 = math.exp %63 : vector<8x64xf32>
    %cst_34 = arith.constant 1.000000e+00 : f32
    %65 = vector.broadcast %cst_34 : f32 to vector<8x64xf32>
    %66 = arith.addf %65, %64 : vector<8x64xf32>
    %67 = arith.divf %65, %66 : vector<8x64xf32>
    %68 = arith.mulf %62, %67 : vector<8x64xf32>
    %c0_35 = arith.constant 0 : index
    %c0_36 = arith.constant 0 : index
    %c0_37 = arith.constant 0 : index
    %69 = vector.load %arg7[%c0_35, %c0_36, %c0_37] : memref<2x64x96xf32, #tpu.memory_space<vmem>>, vector<1x64x96xf32>
    %70 = vector.shape_cast %69 : vector<1x64x96xf32> to vector<64x96xf32>
    %cst_38 = arith.constant dense<0.000000e+00> : vector<8x96xf32>
    %71 = tpu.matmul %68, %70, %cst_38 {dimension_numbers = #tpu.dot_dimension_numbers<[1], [0], [0], [1], [0, 0, 1, 1], [], []>} : vector<8x64xf32>, vector<64x96xf32>, vector<8x96xf32> -> vector<8x96xf32>
    %72 = vector.extract_strided_slice %71 {offsets = [0, 0], sizes = [8, 64], strides = [1, 1]} : vector<8x96xf32> to vector<8x64xf32>
    %c0_39 = arith.constant 0 : index
    %c0_40 = arith.constant 0 : index
    %c0_41 = arith.constant 0 : index
    %73 = vector.load %arg8[%c0_39, %c0_40, %c0_41] : memref<2x1x64xf32, #tpu.memory_space<vmem>>, vector<1x1x64xf32>
    %74 = vector.shape_cast %73 : vector<1x1x64xf32> to vector<1x64xf32>
    %75 = vector.broadcast %74 : vector<1x64xf32> to vector<8x64xf32>
    %76 = arith.addf %72, %75 : vector<8x64xf32>
    %cst_42 = arith.constant 2.000000e+01 : f32
    %77 = vector.broadcast %cst_42 : f32 to vector<8x64xf32>
    %78 = arith.cmpf ogt, %76, %77 : vector<8x64xf32>
    %79 = math.exp %76 : vector<8x64xf32>
    %cst_43 = arith.constant 1.000000e+00 : f32
    %80 = vector.broadcast %cst_43 : f32 to vector<8x64xf32>
    %81 = arith.addf %80, %79 : vector<8x64xf32>
    %82 = math.log %81 : vector<8x64xf32>
    %83 = arith.select %78, %76, %82 : vector<8x64xi1>, vector<8x64xf32>
    %84 = vector.extract_strided_slice %71 {offsets = [0, 64], sizes = [8, 16], strides = [1, 1]} : vector<8x96xf32> to vector<8x16xf32>
    %85 = vector.extract_strided_slice %71 {offsets = [0, 80], sizes = [8, 16], strides = [1, 1]} : vector<8x96xf32> to vector<8x16xf32>
    %c0_44 = arith.constant 0 : index
    %c0_45 = arith.constant 0 : index
    %c0_46 = arith.constant 0 : index
    %86 = vector.load %arg9[%c0_44, %c0_45, %c0_46] : memref<2x16x64xf32, #tpu.memory_space<vmem>>, vector<1x16x64xf32>
    %87 = vector.shape_cast %86 : vector<1x16x64xf32> to vector<16x64xf32>
    %88 = arith.mulf %83, %68 : vector<8x64xf32>
    %89 = vector.shape_cast %83 : vector<8x64xf32> to vector<8x1x64xf32>
    %90 = vector.shape_cast %87 : vector<16x64xf32> to vector<1x16x64xf32>
    %91 = vector.broadcast %89 : vector<8x1x64xf32> to vector<8x16x64xf32>
    %92 = vector.broadcast %90 : vector<1x16x64xf32> to vector<8x16x64xf32>
    %93 = arith.mulf %91, %92 : vector<8x16x64xf32>
    %94 = math.exp %93 : vector<8x16x64xf32>
    %95 = vector.shape_cast %84 : vector<8x16xf32> to vector<8x16x1xf32>
    %96 = vector.shape_cast %88 : vector<8x64xf32> to vector<8x1x64xf32>
    %97 = vector.broadcast %95 : vector<8x16x1xf32> to vector<8x16x64xf32>
    %98 = vector.broadcast %96 : vector<8x1x64xf32> to vector<8x16x64xf32>
    %99 = arith.mulf %97, %98 : vector<8x16x64xf32>
    %cst_47 = arith.constant 0.000000e+00 : f32
    %100 = vector.broadcast %cst_47 : f32 to vector<16x64xf32>
    %101 = vector.extract_strided_slice %94 {offsets = [0, 0, 0], sizes = [1, 16, 64], strides = [1, 1, 1]} : vector<8x16x64xf32> to vector<1x16x64xf32>
    %102 = vector.shape_cast %101 : vector<1x16x64xf32> to vector<16x64xf32>
    %103 = arith.mulf %100, %102 : vector<16x64xf32>
    %104 = vector.extract_strided_slice %99 {offsets = [0, 0, 0], sizes = [1, 16, 64], strides = [1, 1, 1]} : vector<8x16x64xf32> to vector<1x16x64xf32>
    %105 = vector.shape_cast %104 : vector<1x16x64xf32> to vector<16x64xf32>
    %106 = arith.addf %103, %105 : vector<16x64xf32>
    %c0_48 = arith.constant 0 : index
    %c0_49 = arith.constant 0 : index
    %c0_50 = arith.constant 0 : index
    %107 = vector.load %arg16[%c0_48, %c0_49, %c0_50] : memref<8x16x64xf32, #tpu.memory_space<vmem>>, vector<1x16x64xf32>
    %108 = vector.shape_cast %107 : vector<1x16x64xf32> to vector<16x64xf32>
    %109 = vector.shape_cast %106 : vector<16x64xf32> to vector<1x16x64xf32>
    tpu.vector_store %arg16[%c0_48, %c0_49, %c0_50], %109 {strides = array<i32>} : memref<8x16x64xf32, #tpu.memory_space<vmem>>, vector<1x16x64xf32>,
    %110 = vector.extract_strided_slice %94 {offsets = [1, 0, 0], sizes = [1, 16, 64], strides = [1, 1, 1]} : vector<8x16x64xf32> to vector<1x16x64xf32>
    %111 = vector.shape_cast %110 : vector<1x16x64xf32> to vector<16x64xf32>
    %112 = arith.mulf %106, %111 : vector<16x64xf32>
    %113 = vector.extract_strided_slice %99 {offsets = [1, 0, 0], sizes = [1, 16, 64], strides = [1, 1, 1]} : vector<8x16x64xf32> to vector<1x16x64xf32>
    %114 = vector.shape_cast %113 : vector<1x16x64xf32> to vector<16x64xf32>
    %115 = arith.addf %112, %114 : vector<16x64xf32>
    %c1_51 = arith.constant 1 : index
    %c0_52 = arith.constant 0 : index
    %c0_53 = arith.constant 0 : index
    %116 = vector.load %arg16[%c1_51, %c0_52, %c0_53] : memref<8x16x64xf32, #tpu.memory_space<vmem>>, vector<1x16x64xf32>
    %117 = vector.shape_cast %116 : vector<1x16x64xf32> to vector<16x64xf32>
    %118 = vector.shape_cast %115 : vector<16x64xf32> to vector<1x16x64xf32>
    tpu.vector_store %arg16[%c1_51, %c0_52, %c0_53], %118 {strides = array<i32>} : memref<8x16x64xf32, #tpu.memory_space<vmem>>, vector<1x16x64xf32>,
    %119 = vector.extract_strided_slice %94 {offsets = [2, 0, 0], sizes = [1, 16, 64], strides = [1, 1, 1]} : vector<8x16x64xf32> to vector<1x16x64xf32>
    %120 = vector.shape_cast %119 : vector<1x16x64xf32> to vector<16x64xf32>
    %121 = arith.mulf %115, %120 : vector<16x64xf32>
    %122 = vector.extract_strided_slice %99 {offsets = [2, 0, 0], sizes = [1, 16, 64], strides = [1, 1, 1]} : vector<8x16x64xf32> to vector<1x16x64xf32>
    %123 = vector.shape_cast %122 : vector<1x16x64xf32> to vector<16x64xf32>
    %124 = arith.addf %121, %123 : vector<16x64xf32>
    %c2_54 = arith.constant 2 : index
    %c0_55 = arith.constant 0 : index
    %c0_56 = arith.constant 0 : index
    %125 = vector.load %arg16[%c2_54, %c0_55, %c0_56] : memref<8x16x64xf32, #tpu.memory_space<vmem>>, vector<1x16x64xf32>
    %126 = vector.shape_cast %125 : vector<1x16x64xf32> to vector<16x64xf32>
    %127 = vector.shape_cast %124 : vector<16x64xf32> to vector<1x16x64xf32>
    tpu.vector_store %arg16[%c2_54, %c0_55, %c0_56], %127 {strides = array<i32>} : memref<8x16x64xf32, #tpu.memory_space<vmem>>, vector<1x16x64xf32>,
    %128 = vector.extract_strided_slice %94 {offsets = [3, 0, 0], sizes = [1, 16, 64], strides = [1, 1, 1]} : vector<8x16x64xf32> to vector<1x16x64xf32>
    %129 = vector.shape_cast %128 : vector<1x16x64xf32> to vector<16x64xf32>
    %130 = arith.mulf %124, %129 : vector<16x64xf32>
    %131 = vector.extract_strided_slice %99 {offsets = [3, 0, 0], sizes = [1, 16, 64], strides = [1, 1, 1]} : vector<8x16x64xf32> to vector<1x16x64xf32>
    %132 = vector.shape_cast %131 : vector<1x16x64xf32> to vector<16x64xf32>
    %133 = arith.addf %130, %132 : vector<16x64xf32>
    %c3_57 = arith.constant 3 : index
    %c0_58 = arith.constant 0 : index
    %c0_59 = arith.constant 0 : index
    %134 = vector.load %arg16[%c3_57, %c0_58, %c0_59] : memref<8x16x64xf32, #tpu.memory_space<vmem>>, vector<1x16x64xf32>
    %135 = vector.shape_cast %134 : vector<1x16x64xf32> to vector<16x64xf32>
    %136 = vector.shape_cast %133 : vector<16x64xf32> to vector<1x16x64xf32>
    tpu.vector_store %arg16[%c3_57, %c0_58, %c0_59], %136 {strides = array<i32>} : memref<8x16x64xf32, #tpu.memory_space<vmem>>, vector<1x16x64xf32>,
    %137 = vector.extract_strided_slice %94 {offsets = [4, 0, 0], sizes = [1, 16, 64], strides = [1, 1, 1]} : vector<8x16x64xf32> to vector<1x16x64xf32>
    %138 = vector.shape_cast %137 : vector<1x16x64xf32> to vector<16x64xf32>
    %139 = arith.mulf %133, %138 : vector<16x64xf32>
    %140 = vector.extract_strided_slice %99 {offsets = [4, 0, 0], sizes = [1, 16, 64], strides = [1, 1, 1]} : vector<8x16x64xf32> to vector<1x16x64xf32>
    %141 = vector.shape_cast %140 : vector<1x16x64xf32> to vector<16x64xf32>
    %142 = arith.addf %139, %141 : vector<16x64xf32>
    %c4 = arith.constant 4 : index
    %c0_60 = arith.constant 0 : index
    %c0_61 = arith.constant 0 : index
    %143 = vector.load %arg16[%c4, %c0_60, %c0_61] : memref<8x16x64xf32, #tpu.memory_space<vmem>>, vector<1x16x64xf32>
    %144 = vector.shape_cast %143 : vector<1x16x64xf32> to vector<16x64xf32>
    %145 = vector.shape_cast %142 : vector<16x64xf32> to vector<1x16x64xf32>
    tpu.vector_store %arg16[%c4, %c0_60, %c0_61], %145 {strides = array<i32>} : memref<8x16x64xf32, #tpu.memory_space<vmem>>, vector<1x16x64xf32>,
    %146 = vector.extract_strided_slice %94 {offsets = [5, 0, 0], sizes = [1, 16, 64], strides = [1, 1, 1]} : vector<8x16x64xf32> to vector<1x16x64xf32>
    %147 = vector.shape_cast %146 : vector<1x16x64xf32> to vector<16x64xf32>
    %148 = arith.mulf %142, %147 : vector<16x64xf32>
    %149 = vector.extract_strided_slice %99 {offsets = [5, 0, 0], sizes = [1, 16, 64], strides = [1, 1, 1]} : vector<8x16x64xf32> to vector<1x16x64xf32>
    %150 = vector.shape_cast %149 : vector<1x16x64xf32> to vector<16x64xf32>
    %151 = arith.addf %148, %150 : vector<16x64xf32>
    %c5 = arith.constant 5 : index
    %c0_62 = arith.constant 0 : index
    %c0_63 = arith.constant 0 : index
    %152 = vector.load %arg16[%c5, %c0_62, %c0_63] : memref<8x16x64xf32, #tpu.memory_space<vmem>>, vector<1x16x64xf32>
    %153 = vector.shape_cast %152 : vector<1x16x64xf32> to vector<16x64xf32>
    %154 = vector.shape_cast %151 : vector<16x64xf32> to vector<1x16x64xf32>
    tpu.vector_store %arg16[%c5, %c0_62, %c0_63], %154 {strides = array<i32>} : memref<8x16x64xf32, #tpu.memory_space<vmem>>, vector<1x16x64xf32>,
    %155 = vector.extract_strided_slice %94 {offsets = [6, 0, 0], sizes = [1, 16, 64], strides = [1, 1, 1]} : vector<8x16x64xf32> to vector<1x16x64xf32>
    %156 = vector.shape_cast %155 : vector<1x16x64xf32> to vector<16x64xf32>
    %157 = arith.mulf %151, %156 : vector<16x64xf32>
    %158 = vector.extract_strided_slice %99 {offsets = [6, 0, 0], sizes = [1, 16, 64], strides = [1, 1, 1]} : vector<8x16x64xf32> to vector<1x16x64xf32>
    %159 = vector.shape_cast %158 : vector<1x16x64xf32> to vector<16x64xf32>
    %160 = arith.addf %157, %159 : vector<16x64xf32>
    %c6 = arith.constant 6 : index
    %c0_64 = arith.constant 0 : index
    %c0_65 = arith.constant 0 : index
    %161 = vector.load %arg16[%c6, %c0_64, %c0_65] : memref<8x16x64xf32, #tpu.memory_space<vmem>>, vector<1x16x64xf32>
    %162 = vector.shape_cast %161 : vector<1x16x64xf32> to vector<16x64xf32>
    %163 = vector.shape_cast %160 : vector<16x64xf32> to vector<1x16x64xf32>
    tpu.vector_store %arg16[%c6, %c0_64, %c0_65], %163 {strides = array<i32>} : memref<8x16x64xf32, #tpu.memory_space<vmem>>, vector<1x16x64xf32>,
    %164 = vector.extract_strided_slice %94 {offsets = [7, 0, 0], sizes = [1, 16, 64], strides = [1, 1, 1]} : vector<8x16x64xf32> to vector<1x16x64xf32>
    %165 = vector.shape_cast %164 : vector<1x16x64xf32> to vector<16x64xf32>
    %166 = arith.mulf %160, %165 : vector<16x64xf32>
    %167 = vector.extract_strided_slice %99 {offsets = [7, 0, 0], sizes = [1, 16, 64], strides = [1, 1, 1]} : vector<8x16x64xf32> to vector<1x16x64xf32>
    %168 = vector.shape_cast %167 : vector<1x16x64xf32> to vector<16x64xf32>
    %169 = arith.addf %166, %168 : vector<16x64xf32>
    %c7 = arith.constant 7 : index
    %c0_66 = arith.constant 0 : index
    %c0_67 = arith.constant 0 : index
    %170 = vector.load %arg16[%c7, %c0_66, %c0_67] : memref<8x16x64xf32, #tpu.memory_space<vmem>>, vector<1x16x64xf32>
    %171 = vector.shape_cast %170 : vector<1x16x64xf32> to vector<16x64xf32>
    %172 = vector.shape_cast %169 : vector<16x64xf32> to vector<1x16x64xf32>
    tpu.vector_store %arg16[%c7, %c0_66, %c0_67], %172 {strides = array<i32>} : memref<8x16x64xf32, #tpu.memory_space<vmem>>, vector<1x16x64xf32>,
    %c0_68 = arith.constant 0 : index
    %c0_69 = arith.constant 0 : index
    %c0_70 = arith.constant 0 : index
    %173 = vector.load %arg16[%c0_68, %c0_69, %c0_70] : memref<8x16x64xf32, #tpu.memory_space<vmem>>, vector<8x16x64xf32>
    %174 = vector.shape_cast %85 : vector<8x16xf32> to vector<8x16x1xf32>
    %175 = vector.broadcast %174 : vector<8x16x1xf32> to vector<8x16x64xf32>
    %176 = arith.mulf %173, %175 : vector<8x16x64xf32>
    %cst_71 = arith.constant dense<0.000000e+00> : vector<8x64xf32>
    %177 = vector.multi_reduction <add>, %176, %cst_71 [1] : vector<8x16x64xf32> to vector<8x64xf32>
    %c0_72 = arith.constant 0 : index
    %c0_73 = arith.constant 0 : index
    %c0_74 = arith.constant 0 : index
    %178 = vector.load %arg10[%c0_72, %c0_73, %c0_74] : memref<2x1x64xf32, #tpu.memory_space<vmem>>, vector<1x1x64xf32>
    %179 = vector.shape_cast %178 : vector<1x1x64xf32> to vector<1x64xf32>
    %180 = vector.broadcast %179 : vector<1x64xf32> to vector<8x64xf32>
    %181 = arith.mulf %68, %180 : vector<8x64xf32>
    %182 = arith.addf %177, %181 : vector<8x64xf32>
    %183 = arith.negf %34 : vector<8x64xf32>
    %184 = math.exp %183 : vector<8x64xf32>
    %cst_75 = arith.constant 1.000000e+00 : f32
    %185 = vector.broadcast %cst_75 : f32 to vector<8x64xf32>
    %186 = arith.addf %185, %184 : vector<8x64xf32>
    %187 = arith.divf %185, %186 : vector<8x64xf32>
    %188 = arith.mulf %34, %187 : vector<8x64xf32>
    %189 = arith.mulf %182, %188 : vector<8x64xf32>
    %c0_76 = arith.constant 0 : index
    %c0_77 = arith.constant 0 : index
    %c0_78 = arith.constant 0 : index
    %190 = vector.load %arg11[%c0_76, %c0_77, %c0_78] : memref<2x64x32xf32, #tpu.memory_space<vmem>>, vector<1x64x32xf32>
    %191 = vector.shape_cast %190 : vector<1x64x32xf32> to vector<64x32xf32>
    %cst_79 = arith.constant dense<0.000000e+00> : vector<8x32xf32>
    %192 = tpu.matmul %189, %191, %cst_79 {dimension_numbers = #tpu.dot_dimension_numbers<[1], [0], [0], [1], [0, 0, 1, 1], [], []>} : vector<8x64xf32>, vector<64x32xf32>, vector<8x32xf32> -> vector<8x32xf32>
    %193 = arith.addf %192, %5 : vector<8x32xf32>
    %c1_80 = arith.constant 1 : index
    %c0_81 = arith.constant 0 : index
    %c0_82 = arith.constant 0 : index
    %194 = vector.load %arg2[%c1_80, %c0_81, %c0_82] : memref<2x1x32xf32, #tpu.memory_space<vmem>>, vector<1x1x32xf32>
    %195 = vector.shape_cast %194 : vector<1x1x32xf32> to vector<1x32xf32>
    %c1_83 = arith.constant 1 : index
    %c0_84 = arith.constant 0 : index
    %c0_85 = arith.constant 0 : index
    %196 = vector.load %arg3[%c1_83, %c0_84, %c0_85] : memref<2x1x32xf32, #tpu.memory_space<vmem>>, vector<1x1x32xf32>
    %197 = vector.shape_cast %196 : vector<1x1x32xf32> to vector<1x32xf32>
    %cst_86 = arith.constant dense<0.000000e+00> : vector<8xf32>
    %198 = vector.multi_reduction <add>, %193, %cst_86 [1] : vector<8x32xf32> to vector<8xf32>
    %199 = vector.shape_cast %198 : vector<8xf32> to vector<8x1xf32>
    %cst_87 = arith.constant 3.200000e+01 : f32
    %200 = vector.broadcast %cst_87 : f32 to vector<8x1xf32>
    %201 = arith.divf %199, %200 : vector<8x1xf32>
    %202 = vector.broadcast %201 : vector<8x1xf32> to vector<8x32xf32>
    %203 = arith.subf %193, %202 : vector<8x32xf32>
    %204 = arith.mulf %203, %203 : vector<8x32xf32>
    %cst_88 = arith.constant dense<0.000000e+00> : vector<8xf32>
    %205 = vector.multi_reduction <add>, %204, %cst_88 [1] : vector<8x32xf32> to vector<8xf32>
    %206 = vector.shape_cast %205 : vector<8xf32> to vector<8x1xf32>
    %cst_89 = arith.constant 3.200000e+01 : f32
    %207 = vector.broadcast %cst_89 : f32 to vector<8x1xf32>
    %208 = arith.divf %206, %207 : vector<8x1xf32>
    %cst_90 = arith.constant 9.99999974E-6 : f32
    %209 = vector.broadcast %cst_90 : f32 to vector<8x1xf32>
    %210 = arith.addf %208, %209 : vector<8x1xf32>
    %211 = math.rsqrt %210 : vector<8x1xf32>
    %212 = vector.broadcast %211 : vector<8x1xf32> to vector<8x32xf32>
    %213 = arith.mulf %203, %212 : vector<8x32xf32>
    %214 = vector.broadcast %195 : vector<1x32xf32> to vector<8x32xf32>
    %215 = arith.mulf %213, %214 : vector<8x32xf32>
    %216 = vector.broadcast %197 : vector<1x32xf32> to vector<8x32xf32>
    %217 = arith.addf %215, %216 : vector<8x32xf32>
    %c1_91 = arith.constant 1 : index
    %c0_92 = arith.constant 0 : index
    %c0_93 = arith.constant 0 : index
    %218 = vector.load %arg4[%c1_91, %c0_92, %c0_93] : memref<2x32x128xf32, #tpu.memory_space<vmem>>, vector<1x32x128xf32>
    %219 = vector.shape_cast %218 : vector<1x32x128xf32> to vector<32x128xf32>
    %cst_94 = arith.constant dense<0.000000e+00> : vector<8x128xf32>
    %220 = tpu.matmul %217, %219, %cst_94 {dimension_numbers = #tpu.dot_dimension_numbers<[1], [0], [0], [1], [0, 0, 1, 1], [], []>} : vector<8x32xf32>, vector<32x128xf32>, vector<8x128xf32> -> vector<8x128xf32>
    %221 = vector.extract_strided_slice %220 {offsets = [0, 0], sizes = [8, 64], strides = [1, 1]} : vector<8x128xf32> to vector<8x64xf32>
    %222 = vector.extract_strided_slice %220 {offsets = [0, 64], sizes = [8, 64], strides = [1, 1]} : vector<8x128xf32> to vector<8x64xf32>
    %c3_95 = arith.constant 3 : index
    %c0_96 = arith.constant 0 : index
    %223 = vector.load %arg15[%c3_95, %c0_96] : memref<11x64xf32, #tpu.memory_space<vmem>>, vector<8x64xf32>
    tpu.vector_store %arg15[%c3_95, %c0_96], %221 {strides = array<i32>} : memref<11x64xf32, #tpu.memory_space<vmem>>, vector<8x64xf32>,
    %c1_97 = arith.constant 1 : index
    %c0_98 = arith.constant 0 : index
    %c0_99 = arith.constant 0 : index
    %224 = vector.load %arg5[%c1_97, %c0_98, %c0_99] : memref<2x4x64xf32, #tpu.memory_space<vmem>>, vector<1x4x64xf32>
    %225 = vector.shape_cast %224 : vector<1x4x64xf32> to vector<4x64xf32>
    %cst_100 = arith.constant 0.000000e+00 : f32
    %226 = vector.broadcast %cst_100 : f32 to vector<8x64xf32>
    %c0_101 = arith.constant 0 : index
    %c0_102 = arith.constant 0 : index
    %227 = vector.load %arg15[%c0_101, %c0_102] : memref<11x64xf32, #tpu.memory_space<vmem>>, vector<8x64xf32>
    %228 = vector.extract_strided_slice %225 {offsets = [0, 0], sizes = [1, 64], strides = [1, 1]} : vector<4x64xf32> to vector<1x64xf32>
    %229 = vector.broadcast %228 : vector<1x64xf32> to vector<8x64xf32>
    %230 = arith.mulf %227, %229 : vector<8x64xf32>
    %231 = arith.addf %226, %230 : vector<8x64xf32>
    %c1_103 = arith.constant 1 : index
    %c0_104 = arith.constant 0 : index
    %232 = vector.load %arg15[%c1_103, %c0_104] : memref<11x64xf32, #tpu.memory_space<vmem>>, vector<8x64xf32>
    %233 = vector.extract_strided_slice %225 {offsets = [1, 0], sizes = [1, 64], strides = [1, 1]} : vector<4x64xf32> to vector<1x64xf32>
    %234 = vector.broadcast %233 : vector<1x64xf32> to vector<8x64xf32>
    %235 = arith.mulf %232, %234 : vector<8x64xf32>
    %236 = arith.addf %231, %235 : vector<8x64xf32>
    %c2_105 = arith.constant 2 : index
    %c0_106 = arith.constant 0 : index
    %237 = vector.load %arg15[%c2_105, %c0_106] : memref<11x64xf32, #tpu.memory_space<vmem>>, vector<8x64xf32>
    %238 = vector.extract_strided_slice %225 {offsets = [2, 0], sizes = [1, 64], strides = [1, 1]} : vector<4x64xf32> to vector<1x64xf32>
    %239 = vector.broadcast %238 : vector<1x64xf32> to vector<8x64xf32>
    %240 = arith.mulf %237, %239 : vector<8x64xf32>
    %241 = arith.addf %236, %240 : vector<8x64xf32>
    %c3_107 = arith.constant 3 : index
    %c0_108 = arith.constant 0 : index
    %242 = vector.load %arg15[%c3_107, %c0_108] : memref<11x64xf32, #tpu.memory_space<vmem>>, vector<8x64xf32>
    %243 = vector.extract_strided_slice %225 {offsets = [3, 0], sizes = [1, 64], strides = [1, 1]} : vector<4x64xf32> to vector<1x64xf32>
    %244 = vector.broadcast %243 : vector<1x64xf32> to vector<8x64xf32>
    %245 = arith.mulf %242, %244 : vector<8x64xf32>
    %246 = arith.addf %241, %245 : vector<8x64xf32>
    %c1_109 = arith.constant 1 : index
    %c0_110 = arith.constant 0 : index
    %c0_111 = arith.constant 0 : index
    %247 = vector.load %arg6[%c1_109, %c0_110, %c0_111] : memref<2x1x64xf32, #tpu.memory_space<vmem>>, vector<1x1x64xf32>
    %248 = vector.shape_cast %247 : vector<1x1x64xf32> to vector<1x64xf32>
    %249 = vector.broadcast %248 : vector<1x64xf32> to vector<8x64xf32>
    %250 = arith.addf %246, %249 : vector<8x64xf32>
    %251 = arith.negf %250 : vector<8x64xf32>
    %252 = math.exp %251 : vector<8x64xf32>
    %cst_112 = arith.constant 1.000000e+00 : f32
    %253 = vector.broadcast %cst_112 : f32 to vector<8x64xf32>
    %254 = arith.addf %253, %252 : vector<8x64xf32>
    %255 = arith.divf %253, %254 : vector<8x64xf32>
    %256 = arith.mulf %250, %255 : vector<8x64xf32>
    %c1_113 = arith.constant 1 : index
    %c0_114 = arith.constant 0 : index
    %c0_115 = arith.constant 0 : index
    %257 = vector.load %arg7[%c1_113, %c0_114, %c0_115] : memref<2x64x96xf32, #tpu.memory_space<vmem>>, vector<1x64x96xf32>
    %258 = vector.shape_cast %257 : vector<1x64x96xf32> to vector<64x96xf32>
    %cst_116 = arith.constant dense<0.000000e+00> : vector<8x96xf32>
    %259 = tpu.matmul %256, %258, %cst_116 {dimension_numbers = #tpu.dot_dimension_numbers<[1], [0], [0], [1], [0, 0, 1, 1], [], []>} : vector<8x64xf32>, vector<64x96xf32>, vector<8x96xf32> -> vector<8x96xf32>
    %260 = vector.extract_strided_slice %259 {offsets = [0, 0], sizes = [8, 64], strides = [1, 1]} : vector<8x96xf32> to vector<8x64xf32>
    %c1_117 = arith.constant 1 : index
    %c0_118 = arith.constant 0 : index
    %c0_119 = arith.constant 0 : index
    %261 = vector.load %arg8[%c1_117, %c0_118, %c0_119] : memref<2x1x64xf32, #tpu.memory_space<vmem>>, vector<1x1x64xf32>
    %262 = vector.shape_cast %261 : vector<1x1x64xf32> to vector<1x64xf32>
    %263 = vector.broadcast %262 : vector<1x64xf32> to vector<8x64xf32>
    %264 = arith.addf %260, %263 : vector<8x64xf32>
    %cst_120 = arith.constant 2.000000e+01 : f32
    %265 = vector.broadcast %cst_120 : f32 to vector<8x64xf32>
    %266 = arith.cmpf ogt, %264, %265 : vector<8x64xf32>
    %267 = math.exp %264 : vector<8x64xf32>
    %cst_121 = arith.constant 1.000000e+00 : f32
    %268 = vector.broadcast %cst_121 : f32 to vector<8x64xf32>
    %269 = arith.addf %268, %267 : vector<8x64xf32>
    %270 = math.log %269 : vector<8x64xf32>
    %271 = arith.select %266, %264, %270 : vector<8x64xi1>, vector<8x64xf32>
    %272 = vector.extract_strided_slice %259 {offsets = [0, 64], sizes = [8, 16], strides = [1, 1]} : vector<8x96xf32> to vector<8x16xf32>
    %273 = vector.extract_strided_slice %259 {offsets = [0, 80], sizes = [8, 16], strides = [1, 1]} : vector<8x96xf32> to vector<8x16xf32>
    %c1_122 = arith.constant 1 : index
    %c0_123 = arith.constant 0 : index
    %c0_124 = arith.constant 0 : index
    %274 = vector.load %arg9[%c1_122, %c0_123, %c0_124] : memref<2x16x64xf32, #tpu.memory_space<vmem>>, vector<1x16x64xf32>
    %275 = vector.shape_cast %274 : vector<1x16x64xf32> to vector<16x64xf32>
    %276 = arith.mulf %271, %256 : vector<8x64xf32>
    %277 = vector.shape_cast %271 : vector<8x64xf32> to vector<8x1x64xf32>
    %278 = vector.shape_cast %275 : vector<16x64xf32> to vector<1x16x64xf32>
    %279 = vector.broadcast %277 : vector<8x1x64xf32> to vector<8x16x64xf32>
    %280 = vector.broadcast %278 : vector<1x16x64xf32> to vector<8x16x64xf32>
    %281 = arith.mulf %279, %280 : vector<8x16x64xf32>
    %282 = math.exp %281 : vector<8x16x64xf32>
    %283 = vector.shape_cast %272 : vector<8x16xf32> to vector<8x16x1xf32>
    %284 = vector.shape_cast %276 : vector<8x64xf32> to vector<8x1x64xf32>
    %285 = vector.broadcast %283 : vector<8x16x1xf32> to vector<8x16x64xf32>
    %286 = vector.broadcast %284 : vector<8x1x64xf32> to vector<8x16x64xf32>
    %287 = arith.mulf %285, %286 : vector<8x16x64xf32>
    %cst_125 = arith.constant 0.000000e+00 : f32
    %288 = vector.broadcast %cst_125 : f32 to vector<16x64xf32>
    %289 = vector.extract_strided_slice %282 {offsets = [0, 0, 0], sizes = [1, 16, 64], strides = [1, 1, 1]} : vector<8x16x64xf32> to vector<1x16x64xf32>
    %290 = vector.shape_cast %289 : vector<1x16x64xf32> to vector<16x64xf32>
    %291 = arith.mulf %288, %290 : vector<16x64xf32>
    %292 = vector.extract_strided_slice %287 {offsets = [0, 0, 0], sizes = [1, 16, 64], strides = [1, 1, 1]} : vector<8x16x64xf32> to vector<1x16x64xf32>
    %293 = vector.shape_cast %292 : vector<1x16x64xf32> to vector<16x64xf32>
    %294 = arith.addf %291, %293 : vector<16x64xf32>
    %c0_126 = arith.constant 0 : index
    %c0_127 = arith.constant 0 : index
    %c0_128 = arith.constant 0 : index
    %295 = vector.load %arg16[%c0_126, %c0_127, %c0_128] : memref<8x16x64xf32, #tpu.memory_space<vmem>>, vector<1x16x64xf32>
    %296 = vector.shape_cast %295 : vector<1x16x64xf32> to vector<16x64xf32>
    %297 = vector.shape_cast %294 : vector<16x64xf32> to vector<1x16x64xf32>
    tpu.vector_store %arg16[%c0_126, %c0_127, %c0_128], %297 {strides = array<i32>} : memref<8x16x64xf32, #tpu.memory_space<vmem>>, vector<1x16x64xf32>,
    %298 = vector.extract_strided_slice %282 {offsets = [1, 0, 0], sizes = [1, 16, 64], strides = [1, 1, 1]} : vector<8x16x64xf32> to vector<1x16x64xf32>
    %299 = vector.shape_cast %298 : vector<1x16x64xf32> to vector<16x64xf32>
    %300 = arith.mulf %294, %299 : vector<16x64xf32>
    %301 = vector.extract_strided_slice %287 {offsets = [1, 0, 0], sizes = [1, 16, 64], strides = [1, 1, 1]} : vector<8x16x64xf32> to vector<1x16x64xf32>
    %302 = vector.shape_cast %301 : vector<1x16x64xf32> to vector<16x64xf32>
    %303 = arith.addf %300, %302 : vector<16x64xf32>
    %c1_129 = arith.constant 1 : index
    %c0_130 = arith.constant 0 : index
    %c0_131 = arith.constant 0 : index
    %304 = vector.load %arg16[%c1_129, %c0_130, %c0_131] : memref<8x16x64xf32, #tpu.memory_space<vmem>>, vector<1x16x64xf32>
    %305 = vector.shape_cast %304 : vector<1x16x64xf32> to vector<16x64xf32>
    %306 = vector.shape_cast %303 : vector<16x64xf32> to vector<1x16x64xf32>
    tpu.vector_store %arg16[%c1_129, %c0_130, %c0_131], %306 {strides = array<i32>} : memref<8x16x64xf32, #tpu.memory_space<vmem>>, vector<1x16x64xf32>,
    %307 = vector.extract_strided_slice %282 {offsets = [2, 0, 0], sizes = [1, 16, 64], strides = [1, 1, 1]} : vector<8x16x64xf32> to vector<1x16x64xf32>
    %308 = vector.shape_cast %307 : vector<1x16x64xf32> to vector<16x64xf32>
    %309 = arith.mulf %303, %308 : vector<16x64xf32>
    %310 = vector.extract_strided_slice %287 {offsets = [2, 0, 0], sizes = [1, 16, 64], strides = [1, 1, 1]} : vector<8x16x64xf32> to vector<1x16x64xf32>
    %311 = vector.shape_cast %310 : vector<1x16x64xf32> to vector<16x64xf32>
    %312 = arith.addf %309, %311 : vector<16x64xf32>
    %c2_132 = arith.constant 2 : index
    %c0_133 = arith.constant 0 : index
    %c0_134 = arith.constant 0 : index
    %313 = vector.load %arg16[%c2_132, %c0_133, %c0_134] : memref<8x16x64xf32, #tpu.memory_space<vmem>>, vector<1x16x64xf32>
    %314 = vector.shape_cast %313 : vector<1x16x64xf32> to vector<16x64xf32>
    %315 = vector.shape_cast %312 : vector<16x64xf32> to vector<1x16x64xf32>
    tpu.vector_store %arg16[%c2_132, %c0_133, %c0_134], %315 {strides = array<i32>} : memref<8x16x64xf32, #tpu.memory_space<vmem>>, vector<1x16x64xf32>,
    %316 = vector.extract_strided_slice %282 {offsets = [3, 0, 0], sizes = [1, 16, 64], strides = [1, 1, 1]} : vector<8x16x64xf32> to vector<1x16x64xf32>
    %317 = vector.shape_cast %316 : vector<1x16x64xf32> to vector<16x64xf32>
    %318 = arith.mulf %312, %317 : vector<16x64xf32>
    %319 = vector.extract_strided_slice %287 {offsets = [3, 0, 0], sizes = [1, 16, 64], strides = [1, 1, 1]} : vector<8x16x64xf32> to vector<1x16x64xf32>
    %320 = vector.shape_cast %319 : vector<1x16x64xf32> to vector<16x64xf32>
    %321 = arith.addf %318, %320 : vector<16x64xf32>
    %c3_135 = arith.constant 3 : index
    %c0_136 = arith.constant 0 : index
    %c0_137 = arith.constant 0 : index
    %322 = vector.load %arg16[%c3_135, %c0_136, %c0_137] : memref<8x16x64xf32, #tpu.memory_space<vmem>>, vector<1x16x64xf32>
    %323 = vector.shape_cast %322 : vector<1x16x64xf32> to vector<16x64xf32>
    %324 = vector.shape_cast %321 : vector<16x64xf32> to vector<1x16x64xf32>
    tpu.vector_store %arg16[%c3_135, %c0_136, %c0_137], %324 {strides = array<i32>} : memref<8x16x64xf32, #tpu.memory_space<vmem>>, vector<1x16x64xf32>,
    %325 = vector.extract_strided_slice %282 {offsets = [4, 0, 0], sizes = [1, 16, 64], strides = [1, 1, 1]} : vector<8x16x64xf32> to vector<1x16x64xf32>
    %326 = vector.shape_cast %325 : vector<1x16x64xf32> to vector<16x64xf32>
    %327 = arith.mulf %321, %326 : vector<16x64xf32>
    %328 = vector.extract_strided_slice %287 {offsets = [4, 0, 0], sizes = [1, 16, 64], strides = [1, 1, 1]} : vector<8x16x64xf32> to vector<1x16x64xf32>
    %329 = vector.shape_cast %328 : vector<1x16x64xf32> to vector<16x64xf32>
    %330 = arith.addf %327, %329 : vector<16x64xf32>
    %c4_138 = arith.constant 4 : index
    %c0_139 = arith.constant 0 : index
    %c0_140 = arith.constant 0 : index
    %331 = vector.load %arg16[%c4_138, %c0_139, %c0_140] : memref<8x16x64xf32, #tpu.memory_space<vmem>>, vector<1x16x64xf32>
    %332 = vector.shape_cast %331 : vector<1x16x64xf32> to vector<16x64xf32>
    %333 = vector.shape_cast %330 : vector<16x64xf32> to vector<1x16x64xf32>
    tpu.vector_store %arg16[%c4_138, %c0_139, %c0_140], %333 {strides = array<i32>} : memref<8x16x64xf32, #tpu.memory_space<vmem>>, vector<1x16x64xf32>,
    %334 = vector.extract_strided_slice %282 {offsets = [5, 0, 0], sizes = [1, 16, 64], strides = [1, 1, 1]} : vector<8x16x64xf32> to vector<1x16x64xf32>
    %335 = vector.shape_cast %334 : vector<1x16x64xf32> to vector<16x64xf32>
    %336 = arith.mulf %330, %335 : vector<16x64xf32>
    %337 = vector.extract_strided_slice %287 {offsets = [5, 0, 0], sizes = [1, 16, 64], strides = [1, 1, 1]} : vector<8x16x64xf32> to vector<1x16x64xf32>
    %338 = vector.shape_cast %337 : vector<1x16x64xf32> to vector<16x64xf32>
    %339 = arith.addf %336, %338 : vector<16x64xf32>
    %c5_141 = arith.constant 5 : index
    %c0_142 = arith.constant 0 : index
    %c0_143 = arith.constant 0 : index
    %340 = vector.load %arg16[%c5_141, %c0_142, %c0_143] : memref<8x16x64xf32, #tpu.memory_space<vmem>>, vector<1x16x64xf32>
    %341 = vector.shape_cast %340 : vector<1x16x64xf32> to vector<16x64xf32>
    %342 = vector.shape_cast %339 : vector<16x64xf32> to vector<1x16x64xf32>
    tpu.vector_store %arg16[%c5_141, %c0_142, %c0_143], %342 {strides = array<i32>} : memref<8x16x64xf32, #tpu.memory_space<vmem>>, vector<1x16x64xf32>,
    %343 = vector.extract_strided_slice %282 {offsets = [6, 0, 0], sizes = [1, 16, 64], strides = [1, 1, 1]} : vector<8x16x64xf32> to vector<1x16x64xf32>
    %344 = vector.shape_cast %343 : vector<1x16x64xf32> to vector<16x64xf32>
    %345 = arith.mulf %339, %344 : vector<16x64xf32>
    %346 = vector.extract_strided_slice %287 {offsets = [6, 0, 0], sizes = [1, 16, 64], strides = [1, 1, 1]} : vector<8x16x64xf32> to vector<1x16x64xf32>
    %347 = vector.shape_cast %346 : vector<1x16x64xf32> to vector<16x64xf32>
    %348 = arith.addf %345, %347 : vector<16x64xf32>
    %c6_144 = arith.constant 6 : index
    %c0_145 = arith.constant 0 : index
    %c0_146 = arith.constant 0 : index
    %349 = vector.load %arg16[%c6_144, %c0_145, %c0_146] : memref<8x16x64xf32, #tpu.memory_space<vmem>>, vector<1x16x64xf32>
    %350 = vector.shape_cast %349 : vector<1x16x64xf32> to vector<16x64xf32>
    %351 = vector.shape_cast %348 : vector<16x64xf32> to vector<1x16x64xf32>
    tpu.vector_store %arg16[%c6_144, %c0_145, %c0_146], %351 {strides = array<i32>} : memref<8x16x64xf32, #tpu.memory_space<vmem>>, vector<1x16x64xf32>,
    %352 = vector.extract_strided_slice %282 {offsets = [7, 0, 0], sizes = [1, 16, 64], strides = [1, 1, 1]} : vector<8x16x64xf32> to vector<1x16x64xf32>
    %353 = vector.shape_cast %352 : vector<1x16x64xf32> to vector<16x64xf32>
    %354 = arith.mulf %348, %353 : vector<16x64xf32>
    %355 = vector.extract_strided_slice %287 {offsets = [7, 0, 0], sizes = [1, 16, 64], strides = [1, 1, 1]} : vector<8x16x64xf32> to vector<1x16x64xf32>
    %356 = vector.shape_cast %355 : vector<1x16x64xf32> to vector<16x64xf32>
    %357 = arith.addf %354, %356 : vector<16x64xf32>
    %c7_147 = arith.constant 7 : index
    %c0_148 = arith.constant 0 : index
    %c0_149 = arith.constant 0 : index
    %358 = vector.load %arg16[%c7_147, %c0_148, %c0_149] : memref<8x16x64xf32, #tpu.memory_space<vmem>>, vector<1x16x64xf32>
    %359 = vector.shape_cast %358 : vector<1x16x64xf32> to vector<16x64xf32>
    %360 = vector.shape_cast %357 : vector<16x64xf32> to vector<1x16x64xf32>
    tpu.vector_store %arg16[%c7_147, %c0_148, %c0_149], %360 {strides = array<i32>} : memref<8x16x64xf32, #tpu.memory_space<vmem>>, vector<1x16x64xf32>,
    %c0_150 = arith.constant 0 : index
    %c0_151 = arith.constant 0 : index
    %c0_152 = arith.constant 0 : index
    %361 = vector.load %arg16[%c0_150, %c0_151, %c0_152] : memref<8x16x64xf32, #tpu.memory_space<vmem>>, vector<8x16x64xf32>
    %362 = vector.shape_cast %273 : vector<8x16xf32> to vector<8x16x1xf32>
    %363 = vector.broadcast %362 : vector<8x16x1xf32> to vector<8x16x64xf32>
    %364 = arith.mulf %361, %363 : vector<8x16x64xf32>
    %cst_153 = arith.constant dense<0.000000e+00> : vector<8x64xf32>
    %365 = vector.multi_reduction <add>, %364, %cst_153 [1] : vector<8x16x64xf32> to vector<8x64xf32>
    %c1_154 = arith.constant 1 : index
    %c0_155 = arith.constant 0 : index
    %c0_156 = arith.constant 0 : index
    %366 = vector.load %arg10[%c1_154, %c0_155, %c0_156] : memref<2x1x64xf32, #tpu.memory_space<vmem>>, vector<1x1x64xf32>
    %367 = vector.shape_cast %366 : vector<1x1x64xf32> to vector<1x64xf32>
    %368 = vector.broadcast %367 : vector<1x64xf32> to vector<8x64xf32>
    %369 = arith.mulf %256, %368 : vector<8x64xf32>
    %370 = arith.addf %365, %369 : vector<8x64xf32>
    %371 = arith.negf %222 : vector<8x64xf32>
    %372 = math.exp %371 : vector<8x64xf32>
    %cst_157 = arith.constant 1.000000e+00 : f32
    %373 = vector.broadcast %cst_157 : f32 to vector<8x64xf32>
    %374 = arith.addf %373, %372 : vector<8x64xf32>
    %375 = arith.divf %373, %374 : vector<8x64xf32>
    %376 = arith.mulf %222, %375 : vector<8x64xf32>
    %377 = arith.mulf %370, %376 : vector<8x64xf32>
    %c1_158 = arith.constant 1 : index
    %c0_159 = arith.constant 0 : index
    %c0_160 = arith.constant 0 : index
    %378 = vector.load %arg11[%c1_158, %c0_159, %c0_160] : memref<2x64x32xf32, #tpu.memory_space<vmem>>, vector<1x64x32xf32>
    %379 = vector.shape_cast %378 : vector<1x64x32xf32> to vector<64x32xf32>
    %cst_161 = arith.constant dense<0.000000e+00> : vector<8x32xf32>
    %380 = tpu.matmul %377, %379, %cst_161 {dimension_numbers = #tpu.dot_dimension_numbers<[1], [0], [0], [1], [0, 0, 1, 1], [], []>} : vector<8x64xf32>, vector<64x32xf32>, vector<8x32xf32> -> vector<8x32xf32>
    %381 = arith.addf %380, %193 : vector<8x32xf32>
    %c0_162 = arith.constant 0 : index
    %c0_163 = arith.constant 0 : index
    %382 = vector.load %arg12[%c0_162, %c0_163] : memref<1x32xf32, #tpu.memory_space<vmem>>, vector<1x32xf32>
    %c0_164 = arith.constant 0 : index
    %c0_165 = arith.constant 0 : index
    %383 = vector.load %arg13[%c0_164, %c0_165] : memref<1x32xf32, #tpu.memory_space<vmem>>, vector<1x32xf32>
    %cst_166 = arith.constant dense<0.000000e+00> : vector<8xf32>
    %384 = vector.multi_reduction <add>, %381, %cst_166 [1] : vector<8x32xf32> to vector<8xf32>
    %385 = vector.shape_cast %384 : vector<8xf32> to vector<8x1xf32>
    %cst_167 = arith.constant 3.200000e+01 : f32
    %386 = vector.broadcast %cst_167 : f32 to vector<8x1xf32>
    %387 = arith.divf %385, %386 : vector<8x1xf32>
    %388 = vector.broadcast %387 : vector<8x1xf32> to vector<8x32xf32>
    %389 = arith.subf %381, %388 : vector<8x32xf32>
    %390 = arith.mulf %389, %389 : vector<8x32xf32>
    %cst_168 = arith.constant dense<0.000000e+00> : vector<8xf32>
    %391 = vector.multi_reduction <add>, %390, %cst_168 [1] : vector<8x32xf32> to vector<8xf32>
    %392 = vector.shape_cast %391 : vector<8xf32> to vector<8x1xf32>
    %cst_169 = arith.constant 3.200000e+01 : f32
    %393 = vector.broadcast %cst_169 : f32 to vector<8x1xf32>
    %394 = arith.divf %392, %393 : vector<8x1xf32>
    %cst_170 = arith.constant 9.99999974E-6 : f32
    %395 = vector.broadcast %cst_170 : f32 to vector<8x1xf32>
    %396 = arith.addf %394, %395 : vector<8x1xf32>
    %397 = math.rsqrt %396 : vector<8x1xf32>
    %398 = vector.broadcast %397 : vector<8x1xf32> to vector<8x32xf32>
    %399 = arith.mulf %389, %398 : vector<8x32xf32>
    %400 = vector.broadcast %382 : vector<1x32xf32> to vector<8x32xf32>
    %401 = arith.mulf %399, %400 : vector<8x32xf32>
    %402 = vector.broadcast %383 : vector<1x32xf32> to vector<8x32xf32>
    %403 = arith.addf %401, %402 : vector<8x32xf32>
    %c0_171 = arith.constant 0 : index
    %c0_172 = arith.constant 0 : index
    %c0_173 = arith.constant 0 : index
    %404 = vector.load %arg14[%c0_171, %c0_172, %c0_173] : memref<1x8x32xf32, #tpu.memory_space<vmem>>, vector<1x8x32xf32>
    %405 = vector.shape_cast %404 : vector<1x8x32xf32> to vector<8x32xf32>
    %406 = vector.shape_cast %403 : vector<8x32xf32> to vector<1x8x32xf32>
    tpu.vector_store %arg14[%c0_171, %c0_172, %c0_173], %406 {strides = array<i32>} : memref<1x8x32xf32, #tpu.memory_space<vmem>>, vector<1x8x32xf32>,
    return
  }
  func.func @transform_0(%arg0: i32) -> (i32, i32, i32) {
    %c0_i32 = arith.constant 0 : i32
    %c0_i32_0 = arith.constant 0 : i32
    %c0_i32_1 = arith.constant 0 : i32
    return %arg0, %c0_i32, %c0_i32_0 : i32, i32, i32
  }
  func.func @transform_1(%arg0: i32) -> (i32, i32, i32) {
    %c0_i32 = arith.constant 0 : i32
    %c0_i32_0 = arith.constant 0 : i32
    %c0_i32_1 = arith.constant 0 : i32
    %c0_i32_2 = arith.constant 0 : i32
    return %c0_i32, %c0_i32_0, %c0_i32_1 : i32, i32, i32
  }
  func.func @transform_2(%arg0: i32) -> (i32, i32, i32) {
    %c0_i32 = arith.constant 0 : i32
    %c0_i32_0 = arith.constant 0 : i32
    %c0_i32_1 = arith.constant 0 : i32
    %c0_i32_2 = arith.constant 0 : i32
    return %c0_i32, %c0_i32_0, %c0_i32_1 : i32, i32, i32
  }
  func.func @transform_3(%arg0: i32) -> (i32, i32, i32) {
    %c0_i32 = arith.constant 0 : i32
    %c0_i32_0 = arith.constant 0 : i32
    %c0_i32_1 = arith.constant 0 : i32
    %c0_i32_2 = arith.constant 0 : i32
    return %c0_i32, %c0_i32_0, %c0_i32_1 : i32, i32, i32
  }
  func.func @transform_4(%arg0: i32) -> (i32, i32, i32) {
    %c0_i32 = arith.constant 0 : i32
    %c0_i32_0 = arith.constant 0 : i32
    %c0_i32_1 = arith.constant 0 : i32
    %c0_i32_2 = arith.constant 0 : i32
    return %c0_i32, %c0_i32_0, %c0_i32_1 : i32, i32, i32
  }
  func.func @transform_5(%arg0: i32) -> (i32, i32, i32) {
    %c0_i32 = arith.constant 0 : i32
    %c0_i32_0 = arith.constant 0 : i32
    %c0_i32_1 = arith.constant 0 : i32
    %c0_i32_2 = arith.constant 0 : i32
    return %c0_i32, %c0_i32_0, %c0_i32_1 : i32, i32, i32
  }
  func.func @transform_6(%arg0: i32) -> (i32, i32, i32) {
    %c0_i32 = arith.constant 0 : i32
    %c0_i32_0 = arith.constant 0 : i32
    %c0_i32_1 = arith.constant 0 : i32
    %c0_i32_2 = arith.constant 0 : i32
    return %c0_i32, %c0_i32_0, %c0_i32_1 : i32, i32, i32
  }
  func.func @transform_7(%arg0: i32) -> (i32, i32, i32) {
    %c0_i32 = arith.constant 0 : i32
    %c0_i32_0 = arith.constant 0 : i32
    %c0_i32_1 = arith.constant 0 : i32
    %c0_i32_2 = arith.constant 0 : i32
    return %c0_i32, %c0_i32_0, %c0_i32_1 : i32, i32, i32
  }
  func.func @transform_8(%arg0: i32) -> (i32, i32, i32) {
    %c0_i32 = arith.constant 0 : i32
    %c0_i32_0 = arith.constant 0 : i32
    %c0_i32_1 = arith.constant 0 : i32
    %c0_i32_2 = arith.constant 0 : i32
    return %c0_i32, %c0_i32_0, %c0_i32_1 : i32, i32, i32
  }
  func.func @transform_9(%arg0: i32) -> (i32, i32, i32) {
    %c0_i32 = arith.constant 0 : i32
    %c0_i32_0 = arith.constant 0 : i32
    %c0_i32_1 = arith.constant 0 : i32
    %c0_i32_2 = arith.constant 0 : i32
    return %c0_i32, %c0_i32_0, %c0_i32_1 : i32, i32, i32
  }
  func.func @transform_10(%arg0: i32) -> (i32, i32, i32) {
    %c0_i32 = arith.constant 0 : i32
    %c0_i32_0 = arith.constant 0 : i32
    %c0_i32_1 = arith.constant 0 : i32
    %c0_i32_2 = arith.constant 0 : i32
    return %c0_i32, %c0_i32_0, %c0_i32_1 : i32, i32, i32
  }
  func.func @transform_11(%arg0: i32) -> (i32, i32) {
    %c0_i32 = arith.constant 0 : i32
    %c0_i32_0 = arith.constant 0 : i32
    %c0_i32_1 = arith.constant 0 : i32
    return %c0_i32, %c0_i32_0 : i32, i32
  }
  func.func @transform_12(%arg0: i32) -> (i32, i32) {
    %c0_i32 = arith.constant 0 : i32
    %c0_i32_0 = arith.constant 0 : i32
    %c0_i32_1 = arith.constant 0 : i32
    return %c0_i32, %c0_i32_0 : i32, i32
  }
  func.func @transform_13(%arg0: i32) -> (i32, i32, i32) {
    %c0_i32 = arith.constant 0 : i32
    %c0_i32_0 = arith.constant 0 : i32
    %c0_i32_1 = arith.constant 0 : i32
    return %arg0, %c0_i32, %c0_i32_0 : i32, i32, i32
  }
}

</mosaic_0001>

<llo_original>
// kernel: mixer_model_forward.1
$region0: #{mixer_model_forward.1}
  #allocation0 [shape = 'u32[]', space=smem, size = 0x4, offset = 0x4, fixed_abs, tag = 'smem constant byte address 0x4 - core index']
  #allocation1 [shape = 'u32[144,128]{1,0:T(1,128)}', space=vmem, size = 0x12000, scoped, tag = 'internal scratch']
  #allocation2 [shape = 'f32[11,64]{1,0:T(8,128)}', space=vmem, size = 0x2000, scoped, tag = 'scratch operand']
  #allocation3 [shape = 'f32[8,16,64]{2,1,0:T(8,128)}', space=vmem, size = 0x10000, scoped, tag = 'scratch operand']
  %s0 = inlined_call_operand.vmem [shape: f32[2,8,32], index: 0, kind: input, shape index: {}]
  %s1 = inlined_call_operand.vmem [shape: f32[2,1,32], index: 1, kind: input, shape index: {}]
  %s2 = inlined_call_operand.vmem [shape: f32[2,1,32], index: 2, kind: input, shape index: {}]
  %s3 = inlined_call_operand.vmem [shape: f32[2,32,128], index: 3, kind: input, shape index: {}]
  %s4 = inlined_call_operand.vmem [shape: f32[2,4,64], index: 4, kind: input, shape index: {}]
  %s5 = inlined_call_operand.vmem [shape: f32[2,1,64], index: 5, kind: input, shape index: {}]
  %s6 = inlined_call_operand.vmem [shape: f32[2,64,96], index: 6, kind: input, shape index: {}]
  %s7 = inlined_call_operand.vmem [shape: f32[2,1,64], index: 7, kind: input, shape index: {}]
  %s8 = inlined_call_operand.vmem [shape: f32[2,16,64], index: 8, kind: input, shape index: {}]
  %s9 = inlined_call_operand.vmem [shape: f32[2,1,64], index: 9, kind: input, shape index: {}]
  %s10 = inlined_call_operand.vmem [shape: f32[2,64,32], index: 10, kind: input, shape index: {}]
  %s11 = inlined_call_operand.vmem [shape: f32[1,32], index: 11, kind: input, shape index: {}]
  %s12 = inlined_call_operand.vmem [shape: f32[1,32], index: 12, kind: input, shape index: {}]
  %s13 = inlined_call_operand.hbm [shape: f32[2,8,32], index: 13, kind: output, shape index: {}]
  %s14 = sld [smem:[#allocation0]]
  $region85: #{mixer_model_forward.1} parent=0
    _
  %s16 = ssub.s32 1, %s14
  %s17 = scalar_select 0, %s16, %s14
  $region1: #{mixer_model_forward.1} parent=0
    #allocation4 [shape = 'u8[8192]{0}', space=vmem, size = 0x2000, scoped, tag = 'output window, operand 0']
    #allocation5 [shape = 's32[2]{0}', space=sflag, size = 0x8, scoped, tag = 'scoped memory for mixer_model_forward.1']
    %18 = vsyncpa [#allocation5], 0
    %s19 = scalar_lea.sflag [#allocation5], 1
    %20 = vsyncpa %s19, 0
    loop: start=0, step=1, limit=4
    $region2: #{mixer_model_forward.1} parent=1 // loop_pre_header
      _
    $region3: #{mixer_model_forward.1} parent=1 // loop_header
      %s22 = sphi 0, %s26
      %p23 = scmp.ge.s32.totalorder %s22, 4
      %s32 = sphi 0, %s34
      %s35 = sphi 0, %s32
      %s36 = sphi 0, %s35
      %s52 = sphi 0, %s36
      %s56 = sphi 0, %s56
      %s58 = sphi 0, %s56
      %s59 = sphi 0, %s58
      %s73 = sphi 0, %s59
      %s77 = sphi 0, %s77
      %s79 = sphi 0, %s77
      %s80 = sphi 0, %s79
      %s94 = sphi 0, %s80
      %s98 = sphi 0, %s98
      %s100 = sphi 0, %s98
      %s101 = sphi 0, %s100
      %s115 = sphi 0, %s101
      %s119 = sphi 0, %s119
      %s121 = sphi 0, %s119
      %s122 = sphi 0, %s121
      %s136 = sphi 0, %s122
      %s140 = sphi 0, %s140
      %s142 = sphi 0, %s140
      %s143 = sphi 0, %s142
      %s157 = sphi 0, %s143
      %s161 = sphi 0, %s161
      %s163 = sphi 0, %s161
      %s164 = sphi 0, %s163
      %s178 = sphi 0, %s164
      %s182 = sphi 0, %s182
      %s184 = sphi 0, %s182
      %s185 = sphi 0, %s184
      %s199 = sphi 0, %s185
      %s203 = sphi 0, %s203
      %s205 = sphi 0, %s203
      %s206 = sphi 0, %s205
      %s220 = sphi 0, %s206
      %s224 = sphi 0, %s224
      %s226 = sphi 0, %s224
      %s227 = sphi 0, %s226
      %s241 = sphi 0, %s227
      %s245 = sphi 0, %s245
      %s247 = sphi 0, %s245
      %s248 = sphi 0, %s247
      %s262 = sphi 0, %s248
      %s266 = sphi 0, %s266
      %s268 = sphi 0, %s266
      %s269 = sphi 0, %s268
      %s283 = sphi 0, %s269
      %s287 = sphi 0, %s287
      %s289 = sphi 0, %s287
      %s290 = sphi 0, %s289
      %s304 = sphi 0, %s290
      %s310 = sphi 0, %s312
      %s313 = sphi 0, %s310
      %s314 = sphi 0, %s313
      %s330 = sphi 0, %s314
    $region4: #{mixer_model_forward.1} parent=1 // loop_header_branch
      %25 = sbr.rel (%p23) target = $region8
    $region5: #{mixer_model_forward.1} parent=1 // loop_body
      %s27 = ssub.s32 %s22, 1
      %s28 = ssub.s32 %s22, 2
      %s29 = sadd.s32 %s22, 1
      %s30 = ssub.s32 %s22, %s29
      %p31 = scmp.eq.s32.totalorder %s30, 0
      %s33 = sadd.s32 %s32, 1
      %s34 = scalar_select %p31, %s32, %s33
      %p37 = pneg %p31
      %p38 = scmp.eq.s32.totalorder %s22, 1
      %p39 = por %p37, %p38
      %p40 = scmp.ne.s32.totalorder %s32, %s35
      %p41 = scmp.eq.s32.totalorder %s22, 0
      %p42 = por %p40, %p41
      %p43 = scmp.ne.s32.totalorder %s32, %s35
      %p44 = scmp.eq.s32.totalorder %s27, 1
      %p45 = por %p43, %p44
      %p46 = scmp.ne.s32.totalorder %s35, %s36
      %p47 = scmp.eq.s32.totalorder %s27, 0
      %p48 = por %p46, %p47
      %p49 = scmp.ne.s32.totalorder %s35, %s36
      %p50 = scmp.eq.s32.totalorder %s28, 1
      %p51 = por %p49, %p50
      %p53 = scmp.ne.s32.totalorder %s36, %s52
      %p54 = scmp.eq.s32.totalorder %s28, 0
      %p55 = por %p53, %p54
      %s57 = sadd.s32 %s56, 1
      %p60 = scmp.eq.s32.totalorder %s22, 1
      %p61 = scmp.ne.s32.totalorder %s56, %s58
      %p62 = scmp.eq.s32.totalorder %s22, 0
      %p63 = por %p61, %p62
      %p64 = scmp.ne.s32.totalorder %s56, %s58
      %p65 = scmp.eq.s32.totalorder %s27, 1
      %p66 = por %p64, %p65
      %p67 = scmp.ne.s32.totalorder %s58, %s59
      %p68 = scmp.eq.s32.totalorder %s27, 0
      %p69 = por %p67, %p68
      %p70 = scmp.ne.s32.totalorder %s58, %s59
      %p71 = scmp.eq.s32.totalorder %s28, 1
      %p72 = por %p70, %p71
      %p74 = scmp.ne.s32.totalorder %s59, %s73
      %p75 = scmp.eq.s32.totalorder %s28, 0
      %p76 = por %p74, %p75
      %s78 = sadd.s32 %s77, 1
      %p81 = scmp.eq.s32.totalorder %s22, 1
      %p82 = scmp.ne.s32.totalorder %s77, %s79
      %p83 = scmp.eq.s32.totalorder %s22, 0
      %p84 = por %p82, %p83
      %p85 = scmp.ne.s32.totalorder %s77, %s79
      %p86 = scmp.eq.s32.totalorder %s27, 1
      %p87 = por %p85, %p86
      %p88 = scmp.ne.s32.totalorder %s79, %s80
      %p89 = scmp.eq.s32.totalorder %s27, 0
      %p90 = por %p88, %p89
      %p91 = scmp.ne.s32.totalorder %s79, %s80
      %p92 = scmp.eq.s32.totalorder %s28, 1
      %p93 = por %p91, %p92
      %p95 = scmp.ne.s32.totalorder %s80, %s94
      %p96 = scmp.eq.s32.totalorder %s28, 0
      %p97 = por %p95, %p96
      %s99 = sadd.s32 %s98, 1
      %p102 = scmp.eq.s32.totalorder %s22, 1
      %p103 = scmp.ne.s32.totalorder %s98, %s100
      %p104 = scmp.eq.s32.totalorder %s22, 0
      %p105 = por %p103, %p104
      %p106 = scmp.ne.s32.totalorder %s98, %s100
      %p107 = scmp.eq.s32.totalorder %s27, 1
      %p108 = por %p106, %p107
      %p109 = scmp.ne.s32.totalorder %s100, %s101
      %p110 = scmp.eq.s32.totalorder %s27, 0
      %p111 = por %p109, %p110
      %p112 = scmp.ne.s32.totalorder %s100, %s101
      %p113 = scmp.eq.s32.totalorder %s28, 1
      %p114 = por %p112, %p113
      %p116 = scmp.ne.s32.totalorder %s101, %s115
      %p117 = scmp.eq.s32.totalorder %s28, 0
      %p118 = por %p116, %p117
      %s120 = sadd.s32 %s119, 1
      %p123 = scmp.eq.s32.totalorder %s22, 1
      %p124 = scmp.ne.s32.totalorder %s119, %s121
      %p125 = scmp.eq.s32.totalorder %s22, 0
      %p126 = por %p124, %p125
      %p127 = scmp.ne.s32.totalorder %s119, %s121
      %p128 = scmp.eq.s32.totalorder %s27, 1
      %p129 = por %p127, %p128
      %p130 = scmp.ne.s32.totalorder %s121, %s122
      %p131 = scmp.eq.s32.totalorder %s27, 0
      %p132 = por %p130, %p131
      %p133 = scmp.ne.s32.totalorder %s121, %s122
      %p134 = scmp.eq.s32.totalorder %s28, 1
      %p135 = por %p133, %p134
      %p137 = scmp.ne.s32.totalorder %s122, %s136
      %p138 = scmp.eq.s32.totalorder %s28, 0
      %p139 = por %p137, %p138
      %s141 = sadd.s32 %s140, 1
      %p144 = scmp.eq.s32.totalorder %s22, 1
      %p145 = scmp.ne.s32.totalorder %s140, %s142
      %p146 = scmp.eq.s32.totalorder %s22, 0
      %p147 = por %p145, %p146
      %p148 = scmp.ne.s32.totalorder %s140, %s142
      %p149 = scmp.eq.s32.totalorder %s27, 1
      %p150 = por %p148, %p149
      %p151 = scmp.ne.s32.totalorder %s142, %s143
      %p152 = scmp.eq.s32.totalorder %s27, 0
      %p153 = por %p151, %p152
      %p154 = scmp.ne.s32.totalorder %s142, %s143
      %p155 = scmp.eq.s32.totalorder %s28, 1
      %p156 = por %p154, %p155
      %p158 = scmp.ne.s32.totalorder %s143, %s157
      %p159 = scmp.eq.s32.totalorder %s28, 0
      %p160 = por %p158, %p159
      %s162 = sadd.s32 %s161, 1
      %p165 = scmp.eq.s32.totalorder %s22, 1
      %p166 = scmp.ne.s32.totalorder %s161, %s163
      %p167 = scmp.eq.s32.totalorder %s22, 0
      %p168 = por %p166, %p167
      %p169 = scmp.ne.s32.totalorder %s161, %s163
      %p170 = scmp.eq.s32.totalorder %s27, 1
      %p171 = por %p169, %p170
      %p172 = scmp.ne.s32.totalorder %s163, %s164
      %p173 = scmp.eq.s32.totalorder %s27, 0
      %p174 = por %p172, %p173
      %p175 = scmp.ne.s32.totalorder %s163, %s164
      %p176 = scmp.eq.s32.totalorder %s28, 1
      %p177 = por %p175, %p176
      %p179 = scmp.ne.s32.totalorder %s164, %s178
      %p180 = scmp.eq.s32.totalorder %s28, 0
      %p181 = por %p179, %p180
      %s183 = sadd.s32 %s182, 1
      %p186 = scmp.eq.s32.totalorder %s22, 1
      %p187 = scmp.ne.s32.totalorder %s182, %s184
      %p188 = scmp.eq.s32.totalorder %s22, 0
      %p189 = por %p187, %p188
      %p190 = scmp.ne.s32.totalorder %s182, %s184
      %p191 = scmp.eq.s32.totalorder %s27, 1
      %p192 = por %p190, %p191
      %p193 = scmp.ne.s32.totalorder %s184, %s185
      %p194 = scmp.eq.s32.totalorder %s27, 0
      %p195 = por %p193, %p194
      %p196 = scmp.ne.s32.totalorder %s184, %s185
      %p197 = scmp.eq.s32.totalorder %s28, 1
      %p198 = por %p196, %p197
      %p200 = scmp.ne.s32.totalorder %s185, %s199
      %p201 = scmp.eq.s32.totalorder %s28, 0
      %p202 = por %p200, %p201
      %s204 = sadd.s32 %s203, 1
      %p207 = scmp.eq.s32.totalorder %s22, 1
      %p208 = scmp.ne.s32.totalorder %s203, %s205
      %p209 = scmp.eq.s32.totalorder %s22, 0
      %p210 = por %p208, %p209
      %p211 = scmp.ne.s32.totalorder %s203, %s205
      %p212 = scmp.eq.s32.totalorder %s27, 1
      %p213 = por %p211, %p212
      %p214 = scmp.ne.s32.totalorder %s205, %s206
      %p215 = scmp.eq.s32.totalorder %s27, 0
      %p216 = por %p214, %p215
      %p217 = scmp.ne.s32.totalorder %s205, %s206
      %p218 = scmp.eq.s32.totalorder %s28, 1
      %p219 = por %p217, %p218
      %p221 = scmp.ne.s32.totalorder %s206, %s220
      %p222 = scmp.eq.s32.totalorder %s28, 0
      %p223 = por %p221, %p222
      %s225 = sadd.s32 %s224, 1
      %p228 = scmp.eq.s32.totalorder %s22, 1
      %p229 = scmp.ne.s32.totalorder %s224, %s226
      %p230 = scmp.eq.s32.totalorder %s22, 0
      %p231 = por %p229, %p230
      %p232 = scmp.ne.s32.totalorder %s224, %s226
      %p233 = scmp.eq.s32.totalorder %s27, 1
      %p234 = por %p232, %p233
      %p235 = scmp.ne.s32.totalorder %s226, %s227
      %p236 = scmp.eq.s32.totalorder %s27, 0
      %p237 = por %p235, %p236
      %p238 = scmp.ne.s32.totalorder %s226, %s227
      %p239 = scmp.eq.s32.totalorder %s28, 1
      %p240 = por %p238, %p239
      %p242 = scmp.ne.s32.totalorder %s227, %s241
      %p243 = scmp.eq.s32.totalorder %s28, 0
      %p244 = por %p242, %p243
      %s246 = sadd.s32 %s245, 1
      %p249 = scmp.eq.s32.totalorder %s22, 1
      %p250 = scmp.ne.s32.totalorder %s245, %s247
      %p251 = scmp.eq.s32.totalorder %s22, 0
      %p252 = por %p250, %p251
      %p253 = scmp.ne.s32.totalorder %s245, %s247
      %p254 = scmp.eq.s32.totalorder %s27, 1
      %p255 = por %p253, %p254
      %p256 = scmp.ne.s32.totalorder %s247, %s248
      %p257 = scmp.eq.s32.totalorder %s27, 0
      %p258 = por %p256, %p257
      %p259 = scmp.ne.s32.totalorder %s247, %s248
      %p260 = scmp.eq.s32.totalorder %s28, 1
      %p261 = por %p259, %p260
      %p263 = scmp.ne.s32.totalorder %s248, %s262
      %p264 = scmp.eq.s32.totalorder %s28, 0
      %p265 = por %p263, %p264
      %s267 = sadd.s32 %s266, 1
      %p270 = scmp.eq.s32.totalorder %s22, 1
      %p271 = scmp.ne.s32.totalorder %s266, %s268
      %p272 = scmp.eq.s32.totalorder %s22, 0
      %p273 = por %p271, %p272
      %p274 = scmp.ne.s32.totalorder %s266, %s268
      %p275 = scmp.eq.s32.totalorder %s27, 1
      %p276 = por %p274, %p275
      %p277 = scmp.ne.s32.totalorder %s268, %s269
      %p278 = scmp.eq.s32.totalorder %s27, 0
      %p279 = por %p277, %p278
      %p280 = scmp.ne.s32.totalorder %s268, %s269
      %p281 = scmp.eq.s32.totalorder %s28, 1
      %p282 = por %p280, %p281
      %p284 = scmp.ne.s32.totalorder %s269, %s283
      %p285 = scmp.eq.s32.totalorder %s28, 0
      %p286 = por %p284, %p285
      %s288 = sadd.s32 %s287, 1
      %p291 = scmp.eq.s32.totalorder %s22, 1
      %p292 = scmp.ne.s32.totalorder %s287, %s289
      %p293 = scmp.eq.s32.totalorder %s22, 0
      %p294 = por %p292, %p293
      %p295 = scmp.ne.s32.totalorder %s287, %s289
      %p296 = scmp.eq.s32.totalorder %s27, 1
      %p297 = por %p295, %p296
      %p298 = scmp.ne.s32.totalorder %s289, %s290
      %p299 = scmp.eq.s32.totalorder %s27, 0
      %p300 = por %p298, %p299
      %p301 = scmp.ne.s32.totalorder %s289, %s290
      %p302 = scmp.eq.s32.totalorder %s28, 1
      %p303 = por %p301, %p302
      %p305 = scmp.ne.s32.totalorder %s290, %s304
      %p306 = scmp.eq.s32.totalorder %s28, 0
      %p307 = por %p305, %p306
      %s308 = ssub.s32 %s22, %s29
      %p309 = scmp.eq.s32.totalorder %s308, 0
      %s311 = sadd.s32 %s310, 1
      %s312 = scalar_select %p309, %s310, %s311
      %p315 = pneg %p309
      %p316 = scmp.eq.s32.totalorder %s22, 1
      %p317 = por %p315, %p316
      %p318 = scmp.ne.s32.totalorder %s310, %s313
      %p319 = scmp.eq.s32.totalorder %s22, 0
      %p320 = por %p318, %p319
      %p321 = scmp.ne.s32.totalorder %s310, %s313
      %p322 = scmp.eq.s32.totalorder %s27, 1
      %p323 = por %p321, %p322
      %p324 = scmp.ne.s32.totalorder %s313, %s314
      %p325 = scmp.eq.s32.totalorder %s27, 0
      %p326 = por %p324, %p325
      %p327 = scmp.ne.s32.totalorder %s313, %s314
      %p328 = scmp.eq.s32.totalorder %s28, 1
      %p329 = por %p327, %p328
      %p331 = scmp.ne.s32.totalorder %s314, %s330
      %p332 = scmp.eq.s32.totalorder %s28, 0
      %p333 = por %p331, %p332
      %p334 = scmp.le.s32.totalorder 1, %s22
      %p335 = scmp.lt.s32.totalorder %s22, 3
      %p336 = pnand %p334, %p335
      %p337 = pneg %p336
      // Predicated region
      $region9: #{mixer_model_forward.1} parent=5 // pred_check
        _
      $region10: #{mixer_model_forward.1} parent=5 // pred_check_branch
        %339 = sbr.rel (%p336) target = $region12
      $region11: #{mixer_model_forward.1} parent=5 // pred_region
        %s340 = ssub.s32 %s22, 1
        // Predicated region
        $region13: #{mixer_model_forward.1} parent=11 // pred_check
          %p341 = pneg %p69
        $region14: #{mixer_model_forward.1} parent=11 // pred_check_branch
          %343 = sbr.rel (%p341) target = $region16
        $region15: #{mixer_model_forward.1} parent=11 // pred_region
          _
        $region16: #{mixer_model_forward.1} parent=11 // pred_fallthru
          _
        // Predicated region
        $region17: #{mixer_model_forward.1} parent=11 // pred_check
          %p344 = pneg %p90
        $region18: #{mixer_model_forward.1} parent=11 // pred_check_branch
          %346 = sbr.rel (%p344) target = $region20
        $region19: #{mixer_model_forward.1} parent=11 // pred_region
          _
        $region20: #{mixer_model_forward.1} parent=11 // pred_fallthru
          _
        // Predicated region
        $region21: #{mixer_model_forward.1} parent=11 // pred_check
          %p347 = pneg %p111
        $region22: #{mixer_model_forward.1} parent=11 // pred_check_branch
          %349 = sbr.rel (%p347) target = $region24
        $region23: #{mixer_model_forward.1} parent=11 // pred_region
          _
        $region24: #{mixer_model_forward.1} parent=11 // pred_fallthru
          _
        // Predicated region
        $region25: #{mixer_model_forward.1} parent=11 // pred_check
          %p350 = pneg %p132
        $region26: #{mixer_model_forward.1} parent=11 // pred_check_branch
          %352 = sbr.rel (%p350) target = $region28
        $region27: #{mixer_model_forward.1} parent=11 // pred_region
          _
        $region28: #{mixer_model_forward.1} parent=11 // pred_fallthru
          _
        // Predicated region
        $region29: #{mixer_model_forward.1} parent=11 // pred_check
          %p353 = pneg %p153
        $region30: #{mixer_model_forward.1} parent=11 // pred_check_branch
          %355 = sbr.rel (%p353) target = $region32
        $region31: #{mixer_model_forward.1} parent=11 // pred_region
          _
        $region32: #{mixer_model_forward.1} parent=11 // pred_fallthru
          _
        // Predicated region
        $region33: #{mixer_model_forward.1} parent=11 // pred_check
          %p356 = pneg %p174
        $region34: #{mixer_model_forward.1} parent=11 // pred_check_branch
          %358 = sbr.rel (%p356) target = $region36
        $region35: #{mixer_model_forward.1} parent=11 // pred_region
          _
        $region36: #{mixer_model_forward.1} parent=11 // pred_fallthru
          _
        // Predicated region
        $region37: #{mixer_model_forward.1} parent=11 // pred_check
          %p359 = pneg %p195
        $region38: #{mixer_model_forward.1} parent=11 // pred_check_branch
          %361 = sbr.rel (%p359) target = $region40
        $region39: #{mixer_model_forward.1} parent=11 // pred_region
          _
        $region40: #{mixer_model_forward.1} parent=11 // pred_fallthru
          _
        // Predicated region
        $region41: #{mixer_model_forward.1} parent=11 // pred_check
          %p362 = pneg %p216
        $region42: #{mixer_model_forward.1} parent=11 // pred_check_branch
          %364 = sbr.rel (%p362) target = $region44
        $region43: #{mixer_model_forward.1} parent=11 // pred_region
          _
        $region44: #{mixer_model_forward.1} parent=11 // pred_fallthru
          _
        // Predicated region
        $region45: #{mixer_model_forward.1} parent=11 // pred_check
          %p365 = pneg %p237
        $region46: #{mixer_model_forward.1} parent=11 // pred_check_branch
          %367 = sbr.rel (%p365) target = $region48
        $region47: #{mixer_model_forward.1} parent=11 // pred_region
          _
        $region48: #{mixer_model_forward.1} parent=11 // pred_fallthru
          _
        // Predicated region
        $region49: #{mixer_model_forward.1} parent=11 // pred_check
          %p368 = pneg %p258
        $region50: #{mixer_model_forward.1} parent=11 // pred_check_branch
          %370 = sbr.rel (%p368) target = $region52
        $region51: #{mixer_model_forward.1} parent=11 // pred_region
          _
        $region52: #{mixer_model_forward.1} parent=11 // pred_fallthru
          _
        // Predicated region
        $region53: #{mixer_model_forward.1} parent=11 // pred_check
          %p371 = pneg %p279
        $region54: #{mixer_model_forward.1} parent=11 // pred_check_branch
          %373 = sbr.rel (%p371) target = $region56
        $region55: #{mixer_model_forward.1} parent=11 // pred_region
          _
        $region56: #{mixer_model_forward.1} parent=11 // pred_fallthru
          _
        // Predicated region
        $region57: #{mixer_model_forward.1} parent=11 // pred_check
          %p374 = pneg %p300
        $region58: #{mixer_model_forward.1} parent=11 // pred_check_branch
          %376 = sbr.rel (%p374) target = $region60
        $region59: #{mixer_model_forward.1} parent=11 // pred_region
          _
        $region60: #{mixer_model_forward.1} parent=11 // pred_fallthru
          _
      $region12: #{mixer_model_forward.1} parent=5 // pred_fallthru
        _
      %p377 = scmp.lt.s32.totalorder %s22, 2
      // Predicated region
      $region61: #{mixer_model_forward.1} parent=5 // pred_check
        %p378 = pneg %p377
      $region62: #{mixer_model_forward.1} parent=5 // pred_check_branch
        %380 = sbr.rel (%p378) target = $region64
      $region63: #{mixer_model_forward.1} parent=5 // pred_region
        // Predicated region
        $region65: #{mixer_model_forward.1} parent=63 // pred_check
          %p381 = pneg %p42
        $region66: #{mixer_model_forward.1} parent=63 // pred_check_branch
          %383 = sbr.rel (%p381) target = $region68
        $region67: #{mixer_model_forward.1} parent=63 // pred_region
          %p384 = scmp.lt.s32.totalorder %s22, 1
          %s385 = scalar_select %p384, %s22, 1
          %s386 = smul.addr %s385, 8
          %s387 = scalar_lea.vmem %s0, %s386
        $region68: #{mixer_model_forward.1} parent=63 // pred_fallthru
          _
      $region64: #{mixer_model_forward.1} parent=5 // pred_fallthru
        _
      %p388 = scmp.le.s32.totalorder 1, %s22
      %p389 = scmp.lt.s32.totalorder %s22, 3
      %p390 = pnand %p388, %p389
      %p391 = pneg %p390
      // Predicated region
      $region69: #{mixer_model_forward.1} parent=5 // pred_check
        _
      $region70: #{mixer_model_forward.1} parent=5 // pred_check_branch
        %393 = sbr.rel (%p390) target = $region72
      $region71: #{mixer_model_forward.1} parent=5 // pred_region
        %s394 = ssub.s32 %s22, 1
        %p395 = scmp.lt.s32.totalorder %s27, 1
        %s396 = scalar_select %p395, %s27, 1
        %s397 = smul.addr %s396, 8
        %s398 = scalar_lea.vmem %s0, %s397
        %p399 = pneg %p48
        %p400 = pneg %p45
        %p401 = pneg %p69
        %p402 = pneg %p66
        %p403 = pneg %p90
        %p404 = pneg %p87
        %p405 = pneg %p111
        %p406 = pneg %p108
        %p407 = pneg %p132
        %p408 = pneg %p129
        %p409 = pneg %p153
        %p410 = pneg %p150
        %p411 = pneg %p174
        %p412 = pneg %p171
        %p413 = pneg %p195
        %p414 = pneg %p192
        %p415 = pneg %p216
        %p416 = pneg %p213
        %p417 = pneg %p237
        %p418 = pneg %p234
        %p419 = pneg %p258
        %p420 = pneg %p255
        %p421 = pneg %p279
        %p422 = pneg %p276
        %p423 = pneg %p300
        %p424 = pneg %p297
        %p425 = pneg %p326
        %p426 = pneg %p323
        %s427 = sand.u32 %s313, 1
        %s428 = scalar_lea.sflag [#allocation5], %s427
        %s429 = sand.u32 %s313, 1
        %s430 = smul.addr %s429, 8
        %s431 = scalar_lea.vmem [#allocation4], %s430
        %p432 = scmp.lt.s32.totalorder %s27, 1
        %s433 = scalar_select %p432, %s27, 1
        %s434 = smul.addr %s433, 8
        %s435 = scalar_lea.vmem %s0, %s434
        %v436 = vld [vmem:[%s435] sm:$0xff]
        %vm437 = vcmask 523264
        %438 = vst.msk [vmem:[#allocation2] sm:$0xff] %vm437, 0.0
        %vm439 = vcmask 518144
        %440 = vst.msk [vmem:[#allocation2 + $0x8] sm:$0x7] %vm439, 0.0
        %v441 = vadd.f32 %v436, 0.0
        %v442 = vld [vmem:[%s1] sm:$0x1]
        %v443 = vld [vmem:[%s2] sm:$0x1]
        %vm444 = vcmask 261120
        %v445 = vsel %vm444, %v441, 0.0
        %446 = vadd.xlane.f32.xlu0 %v445
        %v447 = vpop.xlane.xlu0 %446
        %v448 = vrcp.pop 32.0
        %v449 = vmul.f32 %v447, %v448
        %v450 = vsub.f32 %v441, %v449
        %v451 = vmul.f32 %v450, %v450
        %v452 = vsel %vm444, %v451, 0.0
        %453 = vadd.xlane.f32.xlu0 %v452
        %v454 = vpop.xlane.xlu0 %453
        %v455 = vmul.f32 %v454, %v448
        %v456 = vadd.f32 %v455, 1e-05
        %v457 = vrsqrt.pop %v456
        %v458 = vmul.f32 %v450, %v457
        %v460 = vlaneseq
        %v461 = vshrl.u32 %v460, 7
        %v462 = vsub.s32 0, %v461
        %v463 = vrot.slane %v442, %v462
        %v465 = vmul.f32 %v458, %v463
        %v467 = vlaneseq
        %v468 = vshrl.u32 %v467, 7
        %v469 = vsub.s32 0, %v468
        %v470 = vrot.slane %v443, %v469
        %v472 = vadd.f32 %v465, %v470
        %v473 = vld [vmem:[%s3] sm:$0xff]
        %v474 = vld [vmem:[%s3 + $0x8] sm:$0xff]
        %v475 = vld [vmem:[%s3 + $0x10] sm:$0xff]
        %v476 = vld [vmem:[%s3 + $0x18] sm:$0xff]
        %v478 = vsel %vm444, %v472, 0
        %480 = vmatprep.subr.mxu0 0.0
        %481 = vmatpush1.msra.mxu0 %v473
        %482 = vmatprep.subr.mxu0 0.0
        %483 = vmatpush1.msra.mxu0 %v474
        %484 = vmatprep.subr.mxu0 0.0
        %485 = vmatpush1.msra.mxu0 %v475
        %486 = vmatprep.subr.mxu0 0.0
        %487 = vmatpush1.msra.mxu0 %v476
        %488 = vmatprep.subr.mxu0 0.0
        %489 = vmatpush1.msra.mxu0 0.0
        %490 = vmatprep.subr.mxu0 0.0
        %491 = vmatpush1.msra.mxu0 0.0
        %492 = vmatprep.subr.mxu0 0.0
        %493 = vmatpush1.msra.mxu0 0.0
        %494 = vmatprep.subr.mxu0 0.0
        %495 = vmatpush1.msra.mxu0 0.0
        %496 = vmatprep.subr.mxu0 0.0
        %497 = vmatpush1.msra.mxu0 0.0
        %498 = vmatprep.subr.mxu0 0.0
        %499 = vmatpush1.msra.mxu0 0.0
        %500 = vmatprep.subr.mxu0 0.0
        %501 = vmatpush1.msra.mxu0 0.0
        %502 = vmatprep.subr.mxu0 0.0
        %503 = vmatpush1.msra.mxu0 0.0
        %504 = vmatprep.subr.mxu0 0.0
        %505 = vmatpush1.msra.mxu0 0.0
        %506 = vmatprep.subr.mxu0 0.0
        %507 = vmatpush1.msra.mxu0 0.0
        %508 = vmatprep.subr.mxu0 0.0
        %509 = vmatpush1.msra.mxu0 0.0
        %510 = vmatprep.subr.mxu0 0.0
        %511 = vmatpush1.msra.mxu0 0.0
        %512 = vmatprep.subr.mxu0 0.0
        %513 = vmatpush1.msra.mxu0 0.0
        %514 = vmatprep.subr.mxu0 0.0
        %515 = vmatpush1.msra.mxu0 0.0
        %516 = vmatprep.subr.mxu0 0.0
        %517 = vmatpush1.msra.mxu0 0.0
        %518 = vmatprep.subr.mxu0 0.0
        %519 = vmatpush1.msra.mxu0 0.0
        %520 = vmatprep.subr.mxu0 0.0
        %521 = vmatpush1.msra.mxu0 0.0
        %522 = vmatprep.subr.mxu0 0.0
        %523 = vmatpush1.msra.mxu0 0.0
        %524 = vmatprep.subr.mxu0 0.0
        %525 = vmatpush1.msra.mxu0 0.0
        %526 = vmatprep.subr.mxu0 0.0
        %527 = vmatpush1.msra.mxu0 0.0
        %528 = vmatprep.subr.mxu0 0.0
        %529 = vmatpush1.msra.mxu0 0.0
        %530 = vmatprep.subr.mxu0 0.0
        %531 = vmatpush1.msra.mxu0 0.0
        %532 = vmatprep.subr.mxu0 0.0
        %533 = vmatpush1.msra.mxu0 0.0
        %534 = vmatprep.subr.mxu0 0.0
        %535 = vmatpush1.msra.mxu0 0.0
        %536 = vmatprep.subr.mxu0 0.0
        %537 = vmatpush1.msra.mxu0 0.0
        %538 = vmatprep.subr.mxu0 0.0
        %539 = vmatpush1.msra.mxu0 0.0
        %540 = vmatprep.subr.mxu0 0.0
        %541 = vmatpush1.msra.mxu0 0.0
        %542 = vmatprep.subr.mxu0 0.0
        %543 = vmatpush1.msra.mxu0 0.0
        %544 = vmatprep.mubr.f32.mxu0 0.0
        %545 = vmatmul.mubr.f32.gmra.mrb[0].mxu0 %v478
        %v546 = vpop.f32.mrb[0].mxu0
        %v547 = vadd.f32 0.0, %v546
        %v548 = vpop.f32.mrb[0].mxu0
        %549 = vdwg.mxu0
        %550 = vst.msk [vmem:[#allocation2 + $0x3] sm:$0xff] %vm437, %v547
        %v551 = vld [vmem:[%s4] sm:$0xf]
        %v552 = vld [vmem:[#allocation2] sm:$0xff]
        %v553 = vlaneseq
        %v554 = vshrl.u32 %v553, 7
        %v555 = vsub.s32 0, %v554
        %v556 = vrot.slane %v551, %v555
        %v557 = vmul.f32 %v552, %v556
        %v558 = vadd.f32 %v557, 0.0
        %v559 = vld [vmem:[#allocation2 + $0x1] sm:$0xff]
        %v560 = vlaneseq
        %v561 = vshrl.u32 %v560, 7
        %v562 = vsub.s32 1, %v561
        %v563 = vrot.slane %v551, %v562
        %v564 = vmul.f32 %v559, %v563
        %v565 = vadd.f32 %v558, %v564
        %v566 = vld [vmem:[#allocation2 + $0x2] sm:$0xff]
        %v567 = vlaneseq
        %v568 = vshrl.u32 %v567, 7
        %v569 = vsub.s32 2, %v568
        %v570 = vrot.slane %v551, %v569
        %v571 = vmul.f32 %v566, %v570
        %v572 = vadd.f32 %v565, %v571
        %v573 = vld [vmem:[#allocation2 + $0x3] sm:$0xff]
        %v574 = vlaneseq
        %v575 = vshrl.u32 %v574, 7
        %v576 = vsub.s32 3, %v575
        %v577 = vrot.slane %v551, %v576
        %v578 = vmul.f32 %v573, %v577
        %v579 = vadd.f32 %v572, %v578
        %v580 = vld [vmem:[%s5] sm:$0x1]
        %v582 = vlaneseq
        %v583 = vshrl.u32 %v582, 7
        %v584 = vsub.s32 0, %v583
        %v585 = vrot.slane %v580, %v584
        %v587 = vadd.f32 %v579, %v585
        %v588 = vxor.u32 %v587, 2147483648
        %v589 = vmul.f32 %v588, 1.442695
        %v590 = vpow.pop %v589
        %v591 = vadd.f32 %v590, 1.0
        %v592 = vrcp.pop %v591
        %v593 = vmul.f32 1.0, %v592
        %v594 = vmul.f32 %v587, %v593
        %v595 = vld [vmem:[%s6] sm:$0xff]
        %v596 = vld [vmem:[%s6 + $0x8] sm:$0xff]
        %v597 = vld [vmem:[%s6 + $0x10] sm:$0xff]
        %v598 = vld [vmem:[%s6 + $0x18] sm:$0xff]
        %v599 = vld [vmem:[%s6 + $0x20] sm:$0xff]
        %v600 = vld [vmem:[%s6 + $0x28] sm:$0xff]
        %v601 = vld [vmem:[%s6 + $0x30] sm:$0xff]
        %v602 = vld [vmem:[%s6 + $0x38] sm:$0xff]
        %v604 = vsel %vm437, %v594, 0
        %606 = vmatprep.subr.mxu0 0.0
        %607 = vmatpush1.msra.mxu0 %v595
        %608 = vmatprep.subr.mxu0 0.0
        %609 = vmatpush1.msra.mxu0 %v596
        %610 = vmatprep.subr.mxu0 0.0
        %611 = vmatpush1.msra.mxu0 %v597
        %612 = vmatprep.subr.mxu0 0.0
        %613 = vmatpush1.msra.mxu0 %v598
        %614 = vmatprep.subr.mxu0 0.0
        %615 = vmatpush1.msra.mxu0 %v599
        %616 = vmatprep.subr.mxu0 0.0
        %617 = vmatpush1.msra.mxu0 %v600
        %618 = vmatprep.subr.mxu0 0.0
        %619 = vmatpush1.msra.mxu0 %v601
        %620 = vmatprep.subr.mxu0 0.0
        %621 = vmatpush1.msra.mxu0 %v602
        %622 = vmatprep.subr.mxu0 0.0
        %623 = vmatpush1.msra.mxu0 0.0
        %624 = vmatprep.subr.mxu0 0.0
        %625 = vmatpush1.msra.mxu0 0.0
        %626 = vmatprep.subr.mxu0 0.0
        %627 = vmatpush1.msra.mxu0 0.0
        %628 = vmatprep.subr.mxu0 0.0
        %629 = vmatpush1.msra.mxu0 0.0
        %630 = vmatprep.subr.mxu0 0.0
        %631 = vmatpush1.msra.mxu0 0.0
        %632 = vmatprep.subr.mxu0 0.0
        %633 = vmatpush1.msra.mxu0 0.0
        %634 = vmatprep.subr.mxu0 0.0
        %635 = vmatpush1.msra.mxu0 0.0
        %636 = vmatprep.subr.mxu0 0.0
        %637 = vmatpush1.msra.mxu0 0.0
        %638 = vmatprep.subr.mxu0 0.0
        %639 = vmatpush1.msra.mxu0 0.0
        %640 = vmatprep.subr.mxu0 0.0
        %641 = vmatpush1.msra.mxu0 0.0
        %642 = vmatprep.subr.mxu0 0.0
        %643 = vmatpush1.msra.mxu0 0.0
        %644 = vmatprep.subr.mxu0 0.0
        %645 = vmatpush1.msra.mxu0 0.0
        %646 = vmatprep.subr.mxu0 0.0
        %647 = vmatpush1.msra.mxu0 0.0
        %648 = vmatprep.subr.mxu0 0.0
        %649 = vmatpush1.msra.mxu0 0.0
        %650 = vmatprep.subr.mxu0 0.0
        %651 = vmatpush1.msra.mxu0 0.0
        %652 = vmatprep.subr.mxu0 0.0
        %653 = vmatpush1.msra.mxu0 0.0
        %654 = vmatprep.subr.mxu0 0.0
        %655 = vmatpush1.msra.mxu0 0.0
        %656 = vmatprep.subr.mxu0 0.0
        %657 = vmatpush1.msra.mxu0 0.0
        %658 = vmatprep.subr.mxu0 0.0
        %659 = vmatpush1.msra.mxu0 0.0
        %660 = vmatprep.subr.mxu0 0.0
        %661 = vmatpush1.msra.mxu0 0.0
        %662 = vmatprep.subr.mxu0 0.0
        %663 = vmatpush1.msra.mxu0 0.0
        %664 = vmatprep.subr.mxu0 0.0
        %665 = vmatpush1.msra.mxu0 0.0
        %666 = vmatprep.subr.mxu0 0.0
        %667 = vmatpush1.msra.mxu0 0.0
        %668 = vmatprep.subr.mxu0 0.0
        %669 = vmatpush1.msra.mxu0 0.0
        %670 = vmatprep.mubr.f32.mxu0 0.0
        %671 = vmatmul.mubr.f32.gmra.mrb[0].mxu0 %v604
        %v672 = vpop.f32.mrb[0].mxu0
        %v673 = vadd.f32 0.0, %v672
        %v674 = vpop.f32.mrb[0].mxu0
        %675 = vdwg.mxu0
        %v676 = vld [vmem:[%s7] sm:$0x1]
        %v678 = vlaneseq
        %v679 = vshrl.u32 %v678, 7
        %v680 = vsub.s32 0, %v679
        %v681 = vrot.slane %v676, %v680
        %v683 = vadd.f32 %v673, %v681
        %vm684 = vcmp.gt.f32.partialorder %v683, 20.0
        %v685 = vmul.f32 %v683, 1.442695
        %v686 = vpow.pop %v685
        %v687 = vadd.f32 %v686, 1.0
        %v688 = vlog2.pop %v687
        %v689 = vmul.f32 %v688, 0.6931472
        %v690 = vsel %vm684, %v683, %v689
        %v691 = vld [vmem:[%s8] sm:$0xff]
        %v692 = vld [vmem:[%s8 + $0x8] sm:$0xff]
        %v693 = vmul.f32 %v690, %v594
        %v695 = vcombine.high %v690, %v690
        %v697 = vunpack.c.l.s4 1966171168
        %v698 = vunpack.c.0.s8 %v697
        %v699 = vlaneseq
        %v700 = vshrl.u32 %v699, 7
        %v701 = vsub.s32 %v698, %v700
        %v702 = vrot.slane %v690, %v701
        %v704 = vunpack.c.l.s4 1966171168
        %v705 = vunpack.c.0.s8 %v704
        %v706 = vlaneseq
        %v707 = vshrl.u32 %v706, 7
        %v708 = vsub.s32 %v705, %v707
        %v709 = vrot.slane %v695, %v708
        %v710 = vcombine.high %v702, %v702
        %v711 = vcombine.high %v709, %v709
        %v713 = vunpack.c.l.s4 1966171168
        %v714 = vunpack.c.0.s8 %v713
        %v715 = vlaneseq
        %v716 = vshrl.u32 %v715, 7
        %v717 = vsub.s32 %v714, %v716
        %v718 = vrot.slane %v702, %v717
        %v720 = vunpack.c.l.s4 1966171168
        %v721 = vunpack.c.0.s8 %v720
        %v722 = vlaneseq
        %v723 = vshrl.u32 %v722, 7
        %v724 = vsub.s32 %v721, %v723
        %v725 = vrot.slane %v709, %v724
        %v727 = vunpack.c.l.s4 1966171168
        %v728 = vunpack.c.0.s8 %v727
        %v729 = vlaneseq
        %v730 = vshrl.u32 %v729, 7
        %v731 = vsub.s32 %v728, %v730
        %v732 = vrot.slane %v710, %v731
        %v734 = vunpack.c.l.s4 1966171168
        %v735 = vunpack.c.0.s8 %v734
        %v736 = vlaneseq
        %v737 = vshrl.u32 %v736, 7
        %v738 = vsub.s32 %v735, %v737
        %v739 = vrot.slane %v711, %v738
        %v740 = vcombine.high %v718, %v718
        %v741 = vcombine.high %v725, %v725
        %v742 = vcombine.high %v732, %v732
        %v743 = vcombine.high %v739, %v739
        %v744 = vlaneseq
        %v745 = vshrl.u32 %v744, 7
        %v746 = vsub.s32 0, %v745
        %v747 = vrot.slane %v718, %v746
        %v748 = vlaneseq
        %v749 = vshrl.u32 %v748, 7
        %v750 = vsub.s32 0, %v749
        %v751 = vrot.slane %v732, %v750
        %v752 = vlaneseq
        %v753 = vshrl.u32 %v752, 7
        %v754 = vsub.s32 0, %v753
        %v755 = vrot.slane %v740, %v754
        %v756 = vlaneseq
        %v757 = vshrl.u32 %v756, 7
        %v758 = vsub.s32 0, %v757
        %v759 = vrot.slane %v742, %v758
        %v760 = vlaneseq
        %v761 = vshrl.u32 %v760, 7
        %v762 = vsub.s32 0, %v761
        %v763 = vrot.slane %v725, %v762
        %v764 = vlaneseq
        %v765 = vshrl.u32 %v764, 7
        %v766 = vsub.s32 0, %v765
        %v767 = vrot.slane %v739, %v766
        %v768 = vlaneseq
        %v769 = vshrl.u32 %v768, 7
        %v770 = vsub.s32 0, %v769
        %v771 = vrot.slane %v741, %v770
        %v772 = vlaneseq
        %v773 = vshrl.u32 %v772, 7
        %v774 = vsub.s32 0, %v773
        %v775 = vrot.slane %v743, %v774
        %v784 = vmul.f32 %v747, %v691
        %v785 = vmul.f32 %v747, %v692
        %v786 = vmul.f32 %v751, %v691
        %v787 = vmul.f32 %v751, %v692
        %v788 = vmul.f32 %v755, %v691
        %v789 = vmul.f32 %v755, %v692
        %v790 = vmul.f32 %v759, %v691
        %v791 = vmul.f32 %v759, %v692
        %v792 = vmul.f32 %v763, %v691
        %v793 = vmul.f32 %v763, %v692
        %v794 = vmul.f32 %v767, %v691
        %v795 = vmul.f32 %v767, %v692
        %v796 = vmul.f32 %v771, %v691
        %v797 = vmul.f32 %v771, %v692
        %v798 = vmul.f32 %v775, %v691
        %v799 = vmul.f32 %v775, %v692
        %v800 = vmul.f32 %v784, 1.442695
        %v801 = vpow.pop %v800
        %v802 = vmul.f32 %v785, 1.442695
        %v803 = vpow.pop %v802
        %v804 = vmul.f32 %v786, 1.442695
        %v805 = vpow.pop %v804
        %v806 = vmul.f32 %v787, 1.442695
        %v807 = vpow.pop %v806
        %v808 = vmul.f32 %v788, 1.442695
        %v809 = vpow.pop %v808
        %v810 = vmul.f32 %v789, 1.442695
        %v811 = vpow.pop %v810
        %v812 = vmul.f32 %v790, 1.442695
        %v813 = vpow.pop %v812
        %v814 = vmul.f32 %v791, 1.442695
        %v815 = vpow.pop %v814
        %v816 = vmul.f32 %v792, 1.442695
        %v817 = vpow.pop %v816
        %v818 = vmul.f32 %v793, 1.442695
        %v819 = vpow.pop %v818
        %v820 = vmul.f32 %v794, 1.442695
        %v821 = vpow.pop %v820
        %v822 = vmul.f32 %v795, 1.442695
        %v823 = vpow.pop %v822
        %v824 = vmul.f32 %v796, 1.442695
        %v825 = vpow.pop %v824
        %v826 = vmul.f32 %v797, 1.442695
        %v827 = vpow.pop %v826
        %v828 = vmul.f32 %v798, 1.442695
        %v829 = vpow.pop %v828
        %v830 = vmul.f32 %v799, 1.442695
        %v831 = vpow.pop %v830
        %v832 = vlaneseq
        %v833 = vshrl.u32 %v832, 7
        %v834 = vsub.s32 0, %v833
        %v835 = vrot.slane %v673, %v834
        %s837 = sor.u32 256, 64
        %838 = vbcast.lane.b32.xlu0 %v835, %s837
        %v839 = vpop.permute.xlu0 %838
        %s841 = sor.u32 256, 72
        %842 = vbcast.lane.b32.xlu0 %v835, %s841
        %v843 = vpop.permute.xlu0 %842
        %v844 = vlaneseq
        %v845 = vshrl.u32 %v844, 7
        %v846 = vsub.s32 1, %v845
        %v847 = vrot.slane %v673, %v846
        %s849 = sor.u32 256, 64
        %850 = vbcast.lane.b32.xlu0 %v847, %s849
        %v851 = vpop.permute.xlu0 %850
        %s853 = sor.u32 256, 72
        %854 = vbcast.lane.b32.xlu0 %v847, %s853
        %v855 = vpop.permute.xlu0 %854
        %v856 = vlaneseq
        %v857 = vshrl.u32 %v856, 7
        %v858 = vsub.s32 2, %v857
        %v859 = vrot.slane %v673, %v858
        %s861 = sor.u32 256, 64
        %862 = vbcast.lane.b32.xlu0 %v859, %s861
        %v863 = vpop.permute.xlu0 %862
        %s865 = sor.u32 256, 72
        %866 = vbcast.lane.b32.xlu0 %v859, %s865
        %v867 = vpop.permute.xlu0 %866
        %v868 = vlaneseq
        %v869 = vshrl.u32 %v868, 7
        %v870 = vsub.s32 3, %v869
        %v871 = vrot.slane %v673, %v870
        %s873 = sor.u32 256, 64
        %874 = vbcast.lane.b32.xlu0 %v871, %s873
        %v875 = vpop.permute.xlu0 %874
        %s877 = sor.u32 256, 72
        %878 = vbcast.lane.b32.xlu0 %v871, %s877
        %v879 = vpop.permute.xlu0 %878
        %v880 = vlaneseq
        %v881 = vshrl.u32 %v880, 7
        %v882 = vsub.s32 4, %v881
        %v883 = vrot.slane %v673, %v882
        %s885 = sor.u32 256, 64
        %886 = vbcast.lane.b32.xlu0 %v883, %s885
        %v887 = vpop.permute.xlu0 %886
        %s889 = sor.u32 256, 72
        %890 = vbcast.lane.b32.xlu0 %v883, %s889
        %v891 = vpop.permute.xlu0 %890
        %v892 = vlaneseq
        %v893 = vshrl.u32 %v892, 7
        %v894 = vsub.s32 5, %v893
        %v895 = vrot.slane %v673, %v894
        %s897 = sor.u32 256, 64
        %898 = vbcast.lane.b32.xlu0 %v895, %s897
        %v899 = vpop.permute.xlu0 %898
        %s901 = sor.u32 256, 72
        %902 = vbcast.lane.b32.xlu0 %v895, %s901
        %v903 = vpop.permute.xlu0 %902
        %v904 = vlaneseq
        %v905 = vshrl.u32 %v904, 7
        %v906 = vsub.s32 6, %v905
        %v907 = vrot.slane %v673, %v906
        %s909 = sor.u32 256, 64
        %910 = vbcast.lane.b32.xlu0 %v907, %s909
        %v911 = vpop.permute.xlu0 %910
        %s913 = sor.u32 256, 72
        %914 = vbcast.lane.b32.xlu0 %v907, %s913
        %v915 = vpop.permute.xlu0 %914
        %v916 = vlaneseq
        %v917 = vshrl.u32 %v916, 7
        %v918 = vsub.s32 7, %v917
        %v919 = vrot.slane %v673, %v918
        %s921 = sor.u32 256, 64
        %922 = vbcast.lane.b32.xlu0 %v919, %s921
        %v923 = vpop.permute.xlu0 %922
        %s925 = sor.u32 256, 72
        %926 = vbcast.lane.b32.xlu0 %v919, %s925
        %v927 = vpop.permute.xlu0 %926
        %v929 = vcombine.high %v693, %v693
        %v931 = vunpack.c.l.s4 1966171168
        %v932 = vunpack.c.0.s8 %v931
        %v933 = vlaneseq
        %v934 = vshrl.u32 %v933, 7
        %v935 = vsub.s32 %v932, %v934
        %v936 = vrot.slane %v693, %v935
        %v938 = vunpack.c.l.s4 1966171168
        %v939 = vunpack.c.0.s8 %v938
        %v940 = vlaneseq
        %v941 = vshrl.u32 %v940, 7
        %v942 = vsub.s32 %v939, %v941
        %v943 = vrot.slane %v929, %v942
        %v944 = vcombine.high %v936, %v936
        %v945 = vcombine.high %v943, %v943
        %v947 = vunpack.c.l.s4 1966171168
        %v948 = vunpack.c.0.s8 %v947
        %v949 = vlaneseq
        %v950 = vshrl.u32 %v949, 7
        %v951 = vsub.s32 %v948, %v950
        %v952 = vrot.slane %v936, %v951
        %v954 = vunpack.c.l.s4 1966171168
        %v955 = vunpack.c.0.s8 %v954
        %v956 = vlaneseq
        %v957 = vshrl.u32 %v956, 7
        %v958 = vsub.s32 %v955, %v957
        %v959 = vrot.slane %v943, %v958
        %v961 = vunpack.c.l.s4 1966171168
        %v962 = vunpack.c.0.s8 %v961
        %v963 = vlaneseq
        %v964 = vshrl.u32 %v963, 7
        %v965 = vsub.s32 %v962, %v964
        %v966 = vrot.slane %v944, %v965
        %v968 = vunpack.c.l.s4 1966171168
        %v969 = vunpack.c.0.s8 %v968
        %v970 = vlaneseq
        %v971 = vshrl.u32 %v970, 7
        %v972 = vsub.s32 %v969, %v971
        %v973 = vrot.slane %v945, %v972
        %v974 = vcombine.high %v952, %v952
        %v975 = vcombine.high %v959, %v959
        %v976 = vcombine.high %v966, %v966
        %v977 = vcombine.high %v973, %v973
        %v978 = vlaneseq
        %v979 = vshrl.u32 %v978, 7
        %v980 = vsub.s32 0, %v979
        %v981 = vrot.slane %v952, %v980
        %v982 = vlaneseq
        %v983 = vshrl.u32 %v982, 7
        %v984 = vsub.s32 0, %v983
        %v985 = vrot.slane %v966, %v984
        %v986 = vlaneseq
        %v987 = vshrl.u32 %v986, 7
        %v988 = vsub.s32 0, %v987
        %v989 = vrot.slane %v974, %v988
        %v990 = vlaneseq
        %v991 = vshrl.u32 %v990, 7
        %v992 = vsub.s32 0, %v991
        %v993 = vrot.slane %v976, %v992
        %v994 = vlaneseq
        %v995 = vshrl.u32 %v994, 7
        %v996 = vsub.s32 0, %v995
        %v997 = vrot.slane %v959, %v996
        %v998 = vlaneseq
        %v999 = vshrl.u32 %v998, 7
        %v1000 = vsub.s32 0, %v999
        %v1001 = vrot.slane %v973, %v1000
        %v1002 = vlaneseq
        %v1003 = vshrl.u32 %v1002, 7
        %v1004 = vsub.s32 0, %v1003
        %v1005 = vrot.slane %v975, %v1004
        %v1006 = vlaneseq
        %v1007 = vshrl.u32 %v1006, 7
        %v1008 = vsub.s32 0, %v1007
        %v1009 = vrot.slane %v977, %v1008
        %v1018 = vmul.f32 %v839, %v981
        %v1019 = vmul.f32 %v843, %v981
        %v1020 = vmul.f32 %v851, %v985
        %v1021 = vmul.f32 %v855, %v985
        %v1022 = vmul.f32 %v863, %v989
        %v1023 = vmul.f32 %v867, %v989
        %v1024 = vmul.f32 %v875, %v993
        %v1025 = vmul.f32 %v879, %v993
        %v1026 = vmul.f32 %v887, %v997
        %v1027 = vmul.f32 %v891, %v997
        %v1028 = vmul.f32 %v899, %v1001
        %v1029 = vmul.f32 %v903, %v1001
        %v1030 = vmul.f32 %v911, %v1005
        %v1031 = vmul.f32 %v915, %v1005
        %v1032 = vmul.f32 %v923, %v1009
        %v1033 = vmul.f32 %v927, %v1009
        %v1034 = vmul.f32 %v801, 0.0
        %v1035 = vmul.f32 %v803, 0.0
        %v1036 = vadd.f32 %v1034, %v1018
        %v1037 = vadd.f32 %v1035, %v1019
        %1038 = vst.msk [vmem:[#allocation3] sm:$0xff] %vm437, %v1036
        %1039 = vst.msk [vmem:[#allocation3 + $0x8] sm:$0xff] %vm437, %v1037
        %v1040 = vmul.f32 %v1036, %v805
        %v1041 = vmul.f32 %v1037, %v807
        %v1042 = vadd.f32 %v1040, %v1020
        %v1043 = vadd.f32 %v1041, %v1021
        %s1044 = scalar_lea.vmem [#allocation3], 16
        %1045 = vst.msk [vmem:[%s1044] sm:$0xff] %vm437, %v1042
        %1046 = vst.msk [vmem:[%s1044 + $0x8] sm:$0xff] %vm437, %v1043
        %v1047 = vmul.f32 %v1042, %v809
        %v1048 = vmul.f32 %v1043, %v811
        %v1049 = vadd.f32 %v1047, %v1022
        %v1050 = vadd.f32 %v1048, %v1023
        %s1051 = scalar_lea.vmem [#allocation3], 32
        %1052 = vst.msk [vmem:[%s1051] sm:$0xff] %vm437, %v1049
        %1053 = vst.msk [vmem:[%s1051 + $0x8] sm:$0xff] %vm437, %v1050
        %v1054 = vmul.f32 %v1049, %v813
        %v1055 = vmul.f32 %v1050, %v815
        %v1056 = vadd.f32 %v1054, %v1024
        %v1057 = vadd.f32 %v1055, %v1025
        %s1058 = scalar_lea.vmem [#allocation3], 48
        %1059 = vst.msk [vmem:[%s1058] sm:$0xff] %vm437, %v1056
        %1060 = vst.msk [vmem:[%s1058 + $0x8] sm:$0xff] %vm437, %v1057
        %v1061 = vmul.f32 %v1056, %v817
        %v1062 = vmul.f32 %v1057, %v819
        %v1063 = vadd.f32 %v1061, %v1026
        %v1064 = vadd.f32 %v1062, %v1027
        %s1065 = scalar_lea.vmem [#allocation3], 64
        %1066 = vst.msk [vmem:[%s1065] sm:$0xff] %vm437, %v1063
        %1067 = vst.msk [vmem:[%s1065 + $0x8] sm:$0xff] %vm437, %v1064
        %v1068 = vmul.f32 %v1063, %v821
        %v1069 = vmul.f32 %v1064, %v823
        %v1070 = vadd.f32 %v1068, %v1028
        %v1071 = vadd.f32 %v1069, %v1029
        %s1072 = scalar_lea.vmem [#allocation3], 80
        %1073 = vst.msk [vmem:[%s1072] sm:$0xff] %vm437, %v1070
        %1074 = vst.msk [vmem:[%s1072 + $0x8] sm:$0xff] %vm437, %v1071
        %v1075 = vmul.f32 %v1070, %v825
        %v1076 = vmul.f32 %v1071, %v827
        %v1077 = vadd.f32 %v1075, %v1030
        %v1078 = vadd.f32 %v1076, %v1031
        %s1079 = scalar_lea.vmem [#allocation3], 96
        %1080 = vst.msk [vmem:[%s1079] sm:$0xff] %vm437, %v1077
        %1081 = vst.msk [vmem:[%s1079 + $0x8] sm:$0xff] %vm437, %v1078
        %v1082 = vmul.f32 %v1077, %v829
        %v1083 = vmul.f32 %v1078, %v831
        %v1084 = vadd.f32 %v1082, %v1032
        %v1085 = vadd.f32 %v1083, %v1033
        %s1086 = scalar_lea.vmem [#allocation3], 112
        %1087 = vst.msk [vmem:[%s1086] sm:$0xff] %vm437, %v1084
        %1088 = vst.msk [vmem:[%s1086 + $0x8] sm:$0xff] %vm437, %v1085
        %v1089 = vld [vmem:[#allocation3] sm:$0xff]
        %v1090 = vld [vmem:[#allocation3 + $0x8] sm:$0xff]
        %v1091 = vld [vmem:[#allocation3 + $0x10] sm:$0xff]
        %v1092 = vld [vmem:[#allocation3 + $0x18] sm:$0xff]
        %v1093 = vld [vmem:[#allocation3 + $0x20] sm:$0xff]
        %v1094 = vld [vmem:[#allocation3 + $0x28] sm:$0xff]
        %v1095 = vld [vmem:[#allocation3 + $0x30] sm:$0xff]
        %v1096 = vld [vmem:[#allocation3 + $0x38] sm:$0xff]
        %v1097 = vld [vmem:[#allocation3 + $0x40] sm:$0xff]
        %v1098 = vld [vmem:[#allocation3 + $0x48] sm:$0xff]
        %v1099 = vld [vmem:[#allocation3 + $0x50] sm:$0xff]
        %v1100 = vld [vmem:[#allocation3 + $0x58] sm:$0xff]
        %v1101 = vld [vmem:[#allocation3 + $0x60] sm:$0xff]
        %v1102 = vld [vmem:[#allocation3 + $0x68] sm:$0xff]
        %v1103 = vld [vmem:[#allocation3 + $0x70] sm:$0xff]
        %v1104 = vld [vmem:[#allocation3 + $0x78] sm:$0xff]
        %s1106 = sor.u32 256, 80
        %1107 = vbcast.lane.b32.xlu0 %v835, %s1106
        %v1108 = vpop.permute.xlu0 %1107
        %s1110 = sor.u32 256, 88
        %1111 = vbcast.lane.b32.xlu0 %v835, %s1110
        %v1112 = vpop.permute.xlu0 %1111
        %s1114 = sor.u32 256, 80
        %1115 = vbcast.lane.b32.xlu0 %v847, %s1114
        %v1116 = vpop.permute.xlu0 %1115
        %s1118 = sor.u32 256, 88
        %1119 = vbcast.lane.b32.xlu0 %v847, %s1118
        %v1120 = vpop.permute.xlu0 %1119
        %s1122 = sor.u32 256, 80
        %1123 = vbcast.lane.b32.xlu0 %v859, %s1122
        %v1124 = vpop.permute.xlu0 %1123
        %s1126 = sor.u32 256, 88
        %1127 = vbcast.lane.b32.xlu0 %v859, %s1126
        %v1128 = vpop.permute.xlu0 %1127
        %s1130 = sor.u32 256, 80
        %1131 = vbcast.lane.b32.xlu0 %v871, %s1130
        %v1132 = vpop.permute.xlu0 %1131
        %s1134 = sor.u32 256, 88
        %1135 = vbcast.lane.b32.xlu0 %v871, %s1134
        %v1136 = vpop.permute.xlu0 %1135
        %s1138 = sor.u32 256, 80
        %1139 = vbcast.lane.b32.xlu0 %v883, %s1138
        %v1140 = vpop.permute.xlu0 %1139
        %s1142 = sor.u32 256, 88
        %1143 = vbcast.lane.b32.xlu0 %v883, %s1142
        %v1144 = vpop.permute.xlu0 %1143
        %s1146 = sor.u32 256, 80
        %1147 = vbcast.lane.b32.xlu0 %v895, %s1146
        %v1148 = vpop.permute.xlu0 %1147
        %s1150 = sor.u32 256, 88
        %1151 = vbcast.lane.b32.xlu0 %v895, %s1150
        %v1152 = vpop.permute.xlu0 %1151
        %s1154 = sor.u32 256, 80
        %1155 = vbcast.lane.b32.xlu0 %v907, %s1154
        %v1156 = vpop.permute.xlu0 %1155
        %s1158 = sor.u32 256, 88
        %1159 = vbcast.lane.b32.xlu0 %v907, %s1158
        %v1160 = vpop.permute.xlu0 %1159
        %s1162 = sor.u32 256, 80
        %1163 = vbcast.lane.b32.xlu0 %v919, %s1162
        %v1164 = vpop.permute.xlu0 %1163
        %s1166 = sor.u32 256, 88
        %1167 = vbcast.lane.b32.xlu0 %v919, %s1166
        %v1168 = vpop.permute.xlu0 %1167
        %v1169 = vmul.f32 %v1089, %v1108
        %v1170 = vmul.f32 %v1090, %v1112
        %v1171 = vmul.f32 %v1091, %v1116
        %v1172 = vmul.f32 %v1092, %v1120
        %v1173 = vmul.f32 %v1093, %v1124
        %v1174 = vmul.f32 %v1094, %v1128
        %v1175 = vmul.f32 %v1095, %v1132
        %v1176 = vmul.f32 %v1096, %v1136
        %v1177 = vmul.f32 %v1097, %v1140
        %v1178 = vmul.f32 %v1098, %v1144
        %v1179 = vmul.f32 %v1099, %v1148
        %v1180 = vmul.f32 %v1100, %v1152
        %v1181 = vmul.f32 %v1101, %v1156
        %v1182 = vmul.f32 %v1102, %v1160
        %v1183 = vmul.f32 %v1103, %v1164
        %v1184 = vmul.f32 %v1104, %v1168
        %v1185 = vsel %vm437, %v1169, 0.0
        %v1186 = vsel %vm437, %v1170, 0.0
        %v1187 = vadd.f32 %v1185, %v1186
        %v1188 = vrot.slane %v1187, 4
        %v1189 = vadd.f32 %v1187, %v1188
        %v1190 = vrot.slane %v1189, 2
        %v1191 = vadd.f32 %v1189, %v1190
        %v1192 = vrot.slane %v1191, 1
        %v1193 = vadd.f32 %v1191, %v1192
        %v1194 = vsel %vm437, %v1171, 0.0
        %v1195 = vsel %vm437, %v1172, 0.0
        %v1196 = vadd.f32 %v1194, %v1195
        %v1197 = vrot.slane %v1196, 4
        %v1198 = vadd.f32 %v1196, %v1197
        %v1199 = vrot.slane %v1198, 2
        %v1200 = vadd.f32 %v1198, %v1199
        %v1201 = vrot.slane %v1200, 1
        %v1202 = vadd.f32 %v1200, %v1201
        %v1203 = vsel %vm437, %v1173, 0.0
        %v1204 = vsel %vm437, %v1174, 0.0
        %v1205 = vadd.f32 %v1203, %v1204
        %v1206 = vrot.slane %v1205, 4
        %v1207 = vadd.f32 %v1205, %v1206
        %v1208 = vrot.slane %v1207, 2
        %v1209 = vadd.f32 %v1207, %v1208
        %v1210 = vrot.slane %v1209, 1
        %v1211 = vadd.f32 %v1209, %v1210
        %v1212 = vsel %vm437, %v1175, 0.0
        %v1213 = vsel %vm437, %v1176, 0.0
        %v1214 = vadd.f32 %v1212, %v1213
        %v1215 = vrot.slane %v1214, 4
        %v1216 = vadd.f32 %v1214, %v1215
        %v1217 = vrot.slane %v1216, 2
        %v1218 = vadd.f32 %v1216, %v1217
        %v1219 = vrot.slane %v1218, 1
        %v1220 = vadd.f32 %v1218, %v1219
        %v1221 = vsel %vm437, %v1177, 0.0
        %v1222 = vsel %vm437, %v1178, 0.0
        %v1223 = vadd.f32 %v1221, %v1222
        %v1224 = vrot.slane %v1223, 4
        %v1225 = vadd.f32 %v1223, %v1224
        %v1226 = vrot.slane %v1225, 2
        %v1227 = vadd.f32 %v1225, %v1226
        %v1228 = vrot.slane %v1227, 1
        %v1229 = vadd.f32 %v1227, %v1228
        %v1230 = vsel %vm437, %v1179, 0.0
        %v1231 = vsel %vm437, %v1180, 0.0
        %v1232 = vadd.f32 %v1230, %v1231
        %v1233 = vrot.slane %v1232, 4
        %v1234 = vadd.f32 %v1232, %v1233
        %v1235 = vrot.slane %v1234, 2
        %v1236 = vadd.f32 %v1234, %v1235
        %v1237 = vrot.slane %v1236, 1
        %v1238 = vadd.f32 %v1236, %v1237
        %v1239 = vsel %vm437, %v1181, 0.0
        %v1240 = vsel %vm437, %v1182, 0.0
        %v1241 = vadd.f32 %v1239, %v1240
        %v1242 = vrot.slane %v1241, 4
        %v1243 = vadd.f32 %v1241, %v1242
        %v1244 = vrot.slane %v1243, 2
        %v1245 = vadd.f32 %v1243, %v1244
        %v1246 = vrot.slane %v1245, 1
        %v1247 = vadd.f32 %v1245, %v1246
        %v1248 = vsel %vm437, %v1183, 0.0
        %v1249 = vsel %vm437, %v1184, 0.0
        %v1250 = vadd.f32 %v1248, %v1249
        %v1251 = vrot.slane %v1250, 4
        %v1252 = vadd.f32 %v1250, %v1251
        %v1253 = vrot.slane %v1252, 2
        %v1254 = vadd.f32 %v1252, %v1253
        %v1255 = vrot.slane %v1254, 1
        %v1256 = vadd.f32 %v1254, %v1255
        %v1257 = vld [vmem:[%s9] sm:$0x1]
        %v1259 = vlaneseq
        %v1260 = vshrl.u32 %v1259, 7
        %v1261 = vsub.s32 0, %v1260
        %v1262 = vrot.slane %v1257, %v1261
        %v1264 = vmul.f32 %v594, %v1262
        %v1266 = vrot.slane %v1264, 1
        %v1267 = vrot.slane %v1264, 2
        %v1268 = vrot.slane %v1264, 3
        %v1269 = vrot.slane %v1264, 4
        %v1270 = vrot.slane %v1264, 5
        %v1271 = vrot.slane %v1264, 6
        %v1272 = vrot.slane %v1264, 7
        %v1281 = vadd.f32 %v1193, %v1264
        %v1282 = vadd.f32 %v1202, %v1266
        %v1283 = vadd.f32 %v1211, %v1267
        %v1284 = vadd.f32 %v1220, %v1268
        %v1285 = vadd.f32 %v1229, %v1269
        %v1286 = vadd.f32 %v1238, %v1270
        %v1287 = vadd.f32 %v1247, %v1271
        %v1288 = vadd.f32 %v1256, %v1272
        %v1289 = vxor.u32 %v547, 2147483648
        %v1290 = vmul.f32 %v1289, 1.442695
        %v1291 = vpow.pop %v1290
        %v1292 = vadd.f32 %v1291, 1.0
        %v1293 = vrcp.pop %v1292
        %v1294 = vmul.f32 1.0, %v1293
        %v1295 = vmul.f32 %v547, %v1294
        %v1297 = vrot.slane %v1295, 1
        %v1298 = vrot.slane %v1295, 2
        %v1299 = vrot.slane %v1295, 3
        %v1300 = vrot.slane %v1295, 4
        %v1301 = vrot.slane %v1295, 5
        %v1302 = vrot.slane %v1295, 6
        %v1303 = vrot.slane %v1295, 7
        %1304 = vrot.lane.b32.xlu0 %v1295, 64
        %v1305 = vpop.permute.xlu0 %1304
        %1306 = vrot.lane.b32.xlu0 %v1297, 64
        %v1307 = vpop.permute.xlu0 %1306
        %1308 = vrot.lane.b32.xlu0 %v1298, 64
        %v1309 = vpop.permute.xlu0 %1308
        %1310 = vrot.lane.b32.xlu0 %v1299, 64
        %v1311 = vpop.permute.xlu0 %1310
        %1312 = vrot.lane.b32.xlu0 %v1300, 64
        %v1313 = vpop.permute.xlu0 %1312
        %1314 = vrot.lane.b32.xlu0 %v1301, 64
        %v1315 = vpop.permute.xlu0 %1314
        %1316 = vrot.lane.b32.xlu0 %v1302, 64
        %v1317 = vpop.permute.xlu0 %1316
        %1318 = vrot.lane.b32.xlu0 %v1303, 64
        %v1319 = vpop.permute.xlu0 %1318
        %v1328 = vmul.f32 %v1281, %v1305
        %v1329 = vmul.f32 %v1282, %v1307
        %v1330 = vmul.f32 %v1283, %v1309
        %v1331 = vmul.f32 %v1284, %v1311
        %v1332 = vmul.f32 %v1285, %v1313
        %v1333 = vmul.f32 %v1286, %v1315
        %v1334 = vmul.f32 %v1287, %v1317
        %v1335 = vmul.f32 %v1288, %v1319
        %v1336 = vld [vmem:[%s10] sm:$0xff]
        %v1337 = vld [vmem:[%s10 + $0x8] sm:$0xff]
        %v1338 = vld [vmem:[%s10 + $0x10] sm:$0xff]
        %v1339 = vld [vmem:[%s10 + $0x18] sm:$0xff]
        %v1340 = vld [vmem:[%s10 + $0x20] sm:$0xff]
        %v1341 = vld [vmem:[%s10 + $0x28] sm:$0xff]
        %v1342 = vld [vmem:[%s10 + $0x30] sm:$0xff]
        %v1343 = vld [vmem:[%s10 + $0x38] sm:$0xff]
        %v1352 = vrot.slane %v1329, 7
        %vm1353 = vcmask 1041409
        %v1354 = vsel %vm1353, %v1352, %v1328
        %v1355 = vrot.slane %v1330, 6
        %vm1356 = vcmask 1042434
        %v1357 = vsel %vm1356, %v1355, %v1354
        %v1358 = vrot.slane %v1331, 5
        %vm1359 = vcmask 1043459
        %v1360 = vsel %vm1359, %v1358, %v1357
        %v1361 = vrot.slane %v1332, 4
        %vm1362 = vcmask 1044484
        %v1363 = vsel %vm1362, %v1361, %v1360
        %v1364 = vrot.slane %v1333, 3
        %vm1365 = vcmask 1045509
        %v1366 = vsel %vm1365, %v1364, %v1363
        %v1367 = vrot.slane %v1334, 2
        %vm1368 = vcmask 1046534
        %v1369 = vsel %vm1368, %v1367, %v1366
        %v1370 = vrot.slane %v1335, 1
        %vm1371 = vcmask 1047559
        %v1372 = vsel %vm1371, %v1370, %v1369
        %v1373 = vsel %vm437, %v1372, 0
        %1375 = vmatprep.subr.mxu0 0.0
        %1376 = vmatpush1.msra.mxu0 %v1336
        %1377 = vmatprep.subr.mxu0 0.0
        %1378 = vmatpush1.msra.mxu0 %v1337
        %1379 = vmatprep.subr.mxu0 0.0
        %1380 = vmatpush1.msra.mxu0 %v1338
        %1381 = vmatprep.subr.mxu0 0.0
        %1382 = vmatpush1.msra.mxu0 %v1339
        %1383 = vmatprep.subr.mxu0 0.0
        %1384 = vmatpush1.msra.mxu0 %v1340
        %1385 = vmatprep.subr.mxu0 0.0
        %1386 = vmatpush1.msra.mxu0 %v1341
        %1387 = vmatprep.subr.mxu0 0.0
        %1388 = vmatpush1.msra.mxu0 %v1342
        %1389 = vmatprep.subr.mxu0 0.0
        %1390 = vmatpush1.msra.mxu0 %v1343
        %1391 = vmatprep.subr.mxu0 0.0
        %1392 = vmatpush1.msra.mxu0 0.0
        %1393 = vmatprep.subr.mxu0 0.0
        %1394 = vmatpush1.msra.mxu0 0.0
        %1395 = vmatprep.subr.mxu0 0.0
        %1396 = vmatpush1.msra.mxu0 0.0
        %1397 = vmatprep.subr.mxu0 0.0
        %1398 = vmatpush1.msra.mxu0 0.0
        %1399 = vmatprep.subr.mxu0 0.0
        %1400 = vmatpush1.msra.mxu0 0.0
        %1401 = vmatprep.subr.mxu0 0.0
        %1402 = vmatpush1.msra.mxu0 0.0
        %1403 = vmatprep.subr.mxu0 0.0
        %1404 = vmatpush1.msra.mxu0 0.0
        %1405 = vmatprep.subr.mxu0 0.0
        %1406 = vmatpush1.msra.mxu0 0.0
        %1407 = vmatprep.subr.mxu0 0.0
        %1408 = vmatpush1.msra.mxu0 0.0
        %1409 = vmatprep.subr.mxu0 0.0
        %1410 = vmatpush1.msra.mxu0 0.0
        %1411 = vmatprep.subr.mxu0 0.0
        %1412 = vmatpush1.msra.mxu0 0.0
        %1413 = vmatprep.subr.mxu0 0.0
        %1414 = vmatpush1.msra.mxu0 0.0
        %1415 = vmatprep.subr.mxu0 0.0
        %1416 = vmatpush1.msra.mxu0 0.0
        %1417 = vmatprep.subr.mxu0 0.0
        %1418 = vmatpush1.msra.mxu0 0.0
        %1419 = vmatprep.subr.mxu0 0.0
        %1420 = vmatpush1.msra.mxu0 0.0
        %1421 = vmatprep.subr.mxu0 0.0
        %1422 = vmatpush1.msra.mxu0 0.0
        %1423 = vmatprep.subr.mxu0 0.0
        %1424 = vmatpush1.msra.mxu0 0.0
        %1425 = vmatprep.subr.mxu0 0.0
        %1426 = vmatpush1.msra.mxu0 0.0
        %1427 = vmatprep.subr.mxu0 0.0
        %1428 = vmatpush1.msra.mxu0 0.0
        %1429 = vmatprep.subr.mxu0 0.0
        %1430 = vmatpush1.msra.mxu0 0.0
        %1431 = vmatprep.subr.mxu0 0.0
        %1432 = vmatpush1.msra.mxu0 0.0
        %1433 = vmatprep.subr.mxu0 0.0
        %1434 = vmatpush1.msra.mxu0 0.0
        %1435 = vmatprep.subr.mxu0 0.0
        %1436 = vmatpush1.msra.mxu0 0.0
        %1437 = vmatprep.subr.mxu0 0.0
        %1438 = vmatpush1.msra.mxu0 0.0
        %1439 = vmatprep.mubr.f32.mxu0 0.0
        %1440 = vmatmul.mubr.f32.gmra.mrb[0].mxu0 %v1373
        %v1441 = vpop.f32.mrb[0].mxu0
        %v1442 = vadd.f32 %v441, %v1441
        %v1443 = vpop.f32.mrb[0].mxu0
        %1444 = vdwg.mxu0
        %s1445 = scalar_lea.vmem %s1, 1
        %v1446 = vld [vmem:[%s1445] sm:$0x1]
        %s1447 = scalar_lea.vmem %s2, 1
        %v1448 = vld [vmem:[%s1447] sm:$0x1]
        %v1449 = vsel %vm444, %v1442, 0.0
        %1450 = vadd.xlane.f32.xlu0 %v1449
        %v1451 = vpop.xlane.xlu0 %1450
        %v1452 = vmul.f32 %v1451, %v448
        %v1453 = vsub.f32 %v1442, %v1452
        %v1454 = vmul.f32 %v1453, %v1453
        %v1455 = vsel %vm444, %v1454, 0.0
        %1456 = vadd.xlane.f32.xlu0 %v1455
        %v1457 = vpop.xlane.xlu0 %1456
        %v1458 = vmul.f32 %v1457, %v448
        %v1459 = vadd.f32 %v1458, 1e-05
        %v1460 = vrsqrt.pop %v1459
        %v1461 = vmul.f32 %v1453, %v1460
        %v1463 = vlaneseq
        %v1464 = vshrl.u32 %v1463, 7
        %v1465 = vsub.s32 0, %v1464
        %v1466 = vrot.slane %v1446, %v1465
        %v1468 = vmul.f32 %v1461, %v1466
        %v1470 = vlaneseq
        %v1471 = vshrl.u32 %v1470, 7
        %v1472 = vsub.s32 0, %v1471
        %v1473 = vrot.slane %v1448, %v1472
        %v1475 = vadd.f32 %v1468, %v1473
        %s1476 = scalar_lea.vmem %s3, 32
        %v1477 = vld [vmem:[%s1476] sm:$0xff]
        %v1478 = vld [vmem:[%s1476 + $0x8] sm:$0xff]
        %v1479 = vld [vmem:[%s1476 + $0x10] sm:$0xff]
        %v1480 = vld [vmem:[%s1476 + $0x18] sm:$0xff]
        %v1482 = vsel %vm444, %v1475, 0
        %1484 = vmatprep.subr.mxu0 0.0
        %1485 = vmatpush1.msra.mxu0 %v1477
        %1486 = vmatprep.subr.mxu0 0.0
        %1487 = vmatpush1.msra.mxu0 %v1478
        %1488 = vmatprep.subr.mxu0 0.0
        %1489 = vmatpush1.msra.mxu0 %v1479
        %1490 = vmatprep.subr.mxu0 0.0
        %1491 = vmatpush1.msra.mxu0 %v1480
        %1492 = vmatprep.subr.mxu0 0.0
        %1493 = vmatpush1.msra.mxu0 0.0
        %1494 = vmatprep.subr.mxu0 0.0
        %1495 = vmatpush1.msra.mxu0 0.0
        %1496 = vmatprep.subr.mxu0 0.0
        %1497 = vmatpush1.msra.mxu0 0.0
        %1498 = vmatprep.subr.mxu0 0.0
        %1499 = vmatpush1.msra.mxu0 0.0
        %1500 = vmatprep.subr.mxu0 0.0
        %1501 = vmatpush1.msra.mxu0 0.0
        %1502 = vmatprep.subr.mxu0 0.0
        %1503 = vmatpush1.msra.mxu0 0.0
        %1504 = vmatprep.subr.mxu0 0.0
        %1505 = vmatpush1.msra.mxu0 0.0
        %1506 = vmatprep.subr.mxu0 0.0
        %1507 = vmatpush1.msra.mxu0 0.0
        %1508 = vmatprep.subr.mxu0 0.0
        %1509 = vmatpush1.msra.mxu0 0.0
        %1510 = vmatprep.subr.mxu0 0.0
        %1511 = vmatpush1.msra.mxu0 0.0
        %1512 = vmatprep.subr.mxu0 0.0
        %1513 = vmatpush1.msra.mxu0 0.0
        %1514 = vmatprep.subr.mxu0 0.0
        %1515 = vmatpush1.msra.mxu0 0.0
        %1516 = vmatprep.subr.mxu0 0.0
        %1517 = vmatpush1.msra.mxu0 0.0
        %1518 = vmatprep.subr.mxu0 0.0
        %1519 = vmatpush1.msra.mxu0 0.0
        %1520 = vmatprep.subr.mxu0 0.0
        %1521 = vmatpush1.msra.mxu0 0.0
        %1522 = vmatprep.subr.mxu0 0.0
        %1523 = vmatpush1.msra.mxu0 0.0
        %1524 = vmatprep.subr.mxu0 0.0
        %1525 = vmatpush1.msra.mxu0 0.0
        %1526 = vmatprep.subr.mxu0 0.0
        %1527 = vmatpush1.msra.mxu0 0.0
        %1528 = vmatprep.subr.mxu0 0.0
        %1529 = vmatpush1.msra.mxu0 0.0
        %1530 = vmatprep.subr.mxu0 0.0
        %1531 = vmatpush1.msra.mxu0 0.0
        %1532 = vmatprep.subr.mxu0 0.0
        %1533 = vmatpush1.msra.mxu0 0.0
        %1534 = vmatprep.subr.mxu0 0.0
        %1535 = vmatpush1.msra.mxu0 0.0
        %1536 = vmatprep.subr.mxu0 0.0
        %1537 = vmatpush1.msra.mxu0 0.0
        %1538 = vmatprep.subr.mxu0 0.0
        %1539 = vmatpush1.msra.mxu0 0.0
        %1540 = vmatprep.subr.mxu0 0.0
        %1541 = vmatpush1.msra.mxu0 0.0
        %1542 = vmatprep.subr.mxu0 0.0
        %1543 = vmatpush1.msra.mxu0 0.0
        %1544 = vmatprep.subr.mxu0 0.0
        %1545 = vmatpush1.msra.mxu0 0.0
        %1546 = vmatprep.subr.mxu0 0.0
        %1547 = vmatpush1.msra.mxu0 0.0
        %1548 = vmatprep.mubr.f32.mxu0 0.0
        %1549 = vmatmul.mubr.f32.gmra.mrb[0].mxu0 %v1482
        %v1550 = vpop.f32.mrb[0].mxu0
        %v1551 = vadd.f32 0.0, %v1550
        %v1552 = vpop.f32.mrb[0].mxu0
        %1553 = vdwg.mxu0
        %1554 = vst.msk [vmem:[#allocation2 + $0x3] sm:$0xff] %vm437, %v1551
        %s1555 = scalar_lea.vmem %s4, 4
        %v1556 = vld [vmem:[%s1555] sm:$0xf]
        %v1557 = vld [vmem:[#allocation2] sm:$0xff]
        %v1558 = vlaneseq
        %v1559 = vshrl.u32 %v1558, 7
        %v1560 = vsub.s32 0, %v1559
        %v1561 = vrot.slane %v1556, %v1560
        %v1562 = vmul.f32 %v1557, %v1561
        %v1563 = vadd.f32 %v1562, 0.0
        %v1564 = vld [vmem:[#allocation2 + $0x1] sm:$0xff]
        %v1565 = vlaneseq
        %v1566 = vshrl.u32 %v1565, 7
        %v1567 = vsub.s32 1, %v1566
        %v1568 = vrot.slane %v1556, %v1567
        %v1569 = vmul.f32 %v1564, %v1568
        %v1570 = vadd.f32 %v1563, %v1569
        %v1571 = vld [vmem:[#allocation2 + $0x2] sm:$0xff]
        %v1572 = vlaneseq
        %v1573 = vshrl.u32 %v1572, 7
        %v1574 = vsub.s32 2, %v1573
        %v1575 = vrot.slane %v1556, %v1574
        %v1576 = vmul.f32 %v1571, %v1575
        %v1577 = vadd.f32 %v1570, %v1576
        %v1578 = vld [vmem:[#allocation2 + $0x3] sm:$0xff]
        %v1579 = vlaneseq
        %v1580 = vshrl.u32 %v1579, 7
        %v1581 = vsub.s32 3, %v1580
        %v1582 = vrot.slane %v1556, %v1581
        %v1583 = vmul.f32 %v1578, %v1582
        %v1584 = vadd.f32 %v1577, %v1583
        %s1585 = scalar_lea.vmem %s5, 1
        %v1586 = vld [vmem:[%s1585] sm:$0x1]
        %v1588 = vlaneseq
        %v1589 = vshrl.u32 %v1588, 7
        %v1590 = vsub.s32 0, %v1589
        %v1591 = vrot.slane %v1586, %v1590
        %v1593 = vadd.f32 %v1584, %v1591
        %v1594 = vxor.u32 %v1593, 2147483648
        %v1595 = vmul.f32 %v1594, 1.442695
        %v1596 = vpow.pop %v1595
        %v1597 = vadd.f32 %v1596, 1.0
        %v1598 = vrcp.pop %v1597
        %v1599 = vmul.f32 1.0, %v1598
        %v1600 = vmul.f32 %v1593, %v1599
        %s1601 = scalar_lea.vmem %s6, 64
        %v1602 = vld [vmem:[%s1601] sm:$0xff]
        %v1603 = vld [vmem:[%s1601 + $0x8] sm:$0xff]
        %v1604 = vld [vmem:[%s1601 + $0x10] sm:$0xff]
        %v1605 = vld [vmem:[%s1601 + $0x18] sm:$0xff]
        %v1606 = vld [vmem:[%s1601 + $0x20] sm:$0xff]
        %v1607 = vld [vmem:[%s1601 + $0x28] sm:$0xff]
        %v1608 = vld [vmem:[%s1601 + $0x30] sm:$0xff]
        %v1609 = vld [vmem:[%s1601 + $0x38] sm:$0xff]
        %v1611 = vsel %vm437, %v1600, 0
        %1613 = vmatprep.subr.mxu0 0.0
        %1614 = vmatpush1.msra.mxu0 %v1602
        %1615 = vmatprep.subr.mxu0 0.0
        %1616 = vmatpush1.msra.mxu0 %v1603
        %1617 = vmatprep.subr.mxu0 0.0
        %1618 = vmatpush1.msra.mxu0 %v1604
        %1619 = vmatprep.subr.mxu0 0.0
        %1620 = vmatpush1.msra.mxu0 %v1605
        %1621 = vmatprep.subr.mxu0 0.0
        %1622 = vmatpush1.msra.mxu0 %v1606
        %1623 = vmatprep.subr.mxu0 0.0
        %1624 = vmatpush1.msra.mxu0 %v1607
        %1625 = vmatprep.subr.mxu0 0.0
        %1626 = vmatpush1.msra.mxu0 %v1608
        %1627 = vmatprep.subr.mxu0 0.0
        %1628 = vmatpush1.msra.mxu0 %v1609
        %1629 = vmatprep.subr.mxu0 0.0
        %1630 = vmatpush1.msra.mxu0 0.0
        %1631 = vmatprep.subr.mxu0 0.0
        %1632 = vmatpush1.msra.mxu0 0.0
        %1633 = vmatprep.subr.mxu0 0.0
        %1634 = vmatpush1.msra.mxu0 0.0
        %1635 = vmatprep.subr.mxu0 0.0
        %1636 = vmatpush1.msra.mxu0 0.0
        %1637 = vmatprep.subr.mxu0 0.0
        %1638 = vmatpush1.msra.mxu0 0.0
        %1639 = vmatprep.subr.mxu0 0.0
        %1640 = vmatpush1.msra.mxu0 0.0
        %1641 = vmatprep.subr.mxu0 0.0
        %1642 = vmatpush1.msra.mxu0 0.0
        %1643 = vmatprep.subr.mxu0 0.0
        %1644 = vmatpush1.msra.mxu0 0.0
        %1645 = vmatprep.subr.mxu0 0.0
        %1646 = vmatpush1.msra.mxu0 0.0
        %1647 = vmatprep.subr.mxu0 0.0
        %1648 = vmatpush1.msra.mxu0 0.0
        %1649 = vmatprep.subr.mxu0 0.0
        %1650 = vmatpush1.msra.mxu0 0.0
        %1651 = vmatprep.subr.mxu0 0.0
        %1652 = vmatpush1.msra.mxu0 0.0
        %1653 = vmatprep.subr.mxu0 0.0
        %1654 = vmatpush1.msra.mxu0 0.0
        %1655 = vmatprep.subr.mxu0 0.0
        %1656 = vmatpush1.msra.mxu0 0.0
        %1657 = vmatprep.subr.mxu0 0.0
        %1658 = vmatpush1.msra.mxu0 0.0
        %1659 = vmatprep.subr.mxu0 0.0
        %1660 = vmatpush1.msra.mxu0 0.0
        %1661 = vmatprep.subr.mxu0 0.0
        %1662 = vmatpush1.msra.mxu0 0.0
        %1663 = vmatprep.subr.mxu0 0.0
        %1664 = vmatpush1.msra.mxu0 0.0
        %1665 = vmatprep.subr.mxu0 0.0
        %1666 = vmatpush1.msra.mxu0 0.0
        %1667 = vmatprep.subr.mxu0 0.0
        %1668 = vmatpush1.msra.mxu0 0.0
        %1669 = vmatprep.subr.mxu0 0.0
        %1670 = vmatpush1.msra.mxu0 0.0
        %1671 = vmatprep.subr.mxu0 0.0
        %1672 = vmatpush1.msra.mxu0 0.0
        %1673 = vmatprep.subr.mxu0 0.0
        %1674 = vmatpush1.msra.mxu0 0.0
        %1675 = vmatprep.subr.mxu0 0.0
        %1676 = vmatpush1.msra.mxu0 0.0
        %1677 = vmatprep.mubr.f32.mxu0 0.0
        %1678 = vmatmul.mubr.f32.gmra.mrb[0].mxu0 %v1611
        %v1679 = vpop.f32.mrb[0].mxu0
        %v1680 = vadd.f32 0.0, %v1679
        %v1681 = vpop.f32.mrb[0].mxu0
        %1682 = vdwg.mxu0
        %s1683 = scalar_lea.vmem %s7, 1
        %v1684 = vld [vmem:[%s1683] sm:$0x1]
        %v1686 = vlaneseq
        %v1687 = vshrl.u32 %v1686, 7
        %v1688 = vsub.s32 0, %v1687
        %v1689 = vrot.slane %v1684, %v1688
        %v1691 = vadd.f32 %v1680, %v1689
        %vm1692 = vcmp.gt.f32.partialorder %v1691, 20.0
        %v1693 = vmul.f32 %v1691, 1.442695
        %v1694 = vpow.pop %v1693
        %v1695 = vadd.f32 %v1694, 1.0
        %v1696 = vlog2.pop %v1695
        %v1697 = vmul.f32 %v1696, 0.6931472
        %v1698 = vsel %vm1692, %v1691, %v1697
        %s1699 = scalar_lea.vmem %s8, 16
        %v1700 = vld [vmem:[%s1699] sm:$0xff]
        %v1701 = vld [vmem:[%s1699 + $0x8] sm:$0xff]
        %v1702 = vmul.f32 %v1698, %v1600
        %v1704 = vcombine.high %v1698, %v1698
        %v1706 = vunpack.c.l.s4 1966171168
        %v1707 = vunpack.c.0.s8 %v1706
        %v1708 = vlaneseq
        %v1709 = vshrl.u32 %v1708, 7
        %v1710 = vsub.s32 %v1707, %v1709
        %v1711 = vrot.slane %v1698, %v1710
        %v1713 = vunpack.c.l.s4 1966171168
        %v1714 = vunpack.c.0.s8 %v1713
        %v1715 = vlaneseq
        %v1716 = vshrl.u32 %v1715, 7
        %v1717 = vsub.s32 %v1714, %v1716
        %v1718 = vrot.slane %v1704, %v1717
        %v1719 = vcombine.high %v1711, %v1711
        %v1720 = vcombine.high %v1718, %v1718
        %v1722 = vunpack.c.l.s4 1966171168
        %v1723 = vunpack.c.0.s8 %v1722
        %v1724 = vlaneseq
        %v1725 = vshrl.u32 %v1724, 7
        %v1726 = vsub.s32 %v1723, %v1725
        %v1727 = vrot.slane %v1711, %v1726
        %v1729 = vunpack.c.l.s4 1966171168
        %v1730 = vunpack.c.0.s8 %v1729
        %v1731 = vlaneseq
        %v1732 = vshrl.u32 %v1731, 7
        %v1733 = vsub.s32 %v1730, %v1732
        %v1734 = vrot.slane %v1718, %v1733
        %v1736 = vunpack.c.l.s4 1966171168
        %v1737 = vunpack.c.0.s8 %v1736
        %v1738 = vlaneseq
        %v1739 = vshrl.u32 %v1738, 7
        %v1740 = vsub.s32 %v1737, %v1739
        %v1741 = vrot.slane %v1719, %v1740
        %v1743 = vunpack.c.l.s4 1966171168
        %v1744 = vunpack.c.0.s8 %v1743
        %v1745 = vlaneseq
        %v1746 = vshrl.u32 %v1745, 7
        %v1747 = vsub.s32 %v1744, %v1746
        %v1748 = vrot.slane %v1720, %v1747
        %v1749 = vcombine.high %v1727, %v1727
        %v1750 = vcombine.high %v1734, %v1734
        %v1751 = vcombine.high %v1741, %v1741
        %v1752 = vcombine.high %v1748, %v1748
        %v1753 = vlaneseq
        %v1754 = vshrl.u32 %v1753, 7
        %v1755 = vsub.s32 0, %v1754
        %v1756 = vrot.slane %v1727, %v1755
        %v1757 = vlaneseq
        %v1758 = vshrl.u32 %v1757, 7
        %v1759 = vsub.s32 0, %v1758
        %v1760 = vrot.slane %v1741, %v1759
        %v1761 = vlaneseq
        %v1762 = vshrl.u32 %v1761, 7
        %v1763 = vsub.s32 0, %v1762
        %v1764 = vrot.slane %v1749, %v1763
        %v1765 = vlaneseq
        %v1766 = vshrl.u32 %v1765, 7
        %v1767 = vsub.s32 0, %v1766
        %v1768 = vrot.slane %v1751, %v1767
        %v1769 = vlaneseq
        %v1770 = vshrl.u32 %v1769, 7
        %v1771 = vsub.s32 0, %v1770
        %v1772 = vrot.slane %v1734, %v1771
        %v1773 = vlaneseq
        %v1774 = vshrl.u32 %v1773, 7
        %v1775 = vsub.s32 0, %v1774
        %v1776 = vrot.slane %v1748, %v1775
        %v1777 = vlaneseq
        %v1778 = vshrl.u32 %v1777, 7
        %v1779 = vsub.s32 0, %v1778
        %v1780 = vrot.slane %v1750, %v1779
        %v1781 = vlaneseq
        %v1782 = vshrl.u32 %v1781, 7
        %v1783 = vsub.s32 0, %v1782
        %v1784 = vrot.slane %v1752, %v1783
        %v1793 = vmul.f32 %v1756, %v1700
        %v1794 = vmul.f32 %v1756, %v1701
        %v1795 = vmul.f32 %v1760, %v1700
        %v1796 = vmul.f32 %v1760, %v1701
        %v1797 = vmul.f32 %v1764, %v1700
        %v1798 = vmul.f32 %v1764, %v1701
        %v1799 = vmul.f32 %v1768, %v1700
        %v1800 = vmul.f32 %v1768, %v1701
        %v1801 = vmul.f32 %v1772, %v1700
        %v1802 = vmul.f32 %v1772, %v1701
        %v1803 = vmul.f32 %v1776, %v1700
        %v1804 = vmul.f32 %v1776, %v1701
        %v1805 = vmul.f32 %v1780, %v1700
        %v1806 = vmul.f32 %v1780, %v1701
        %v1807 = vmul.f32 %v1784, %v1700
        %v1808 = vmul.f32 %v1784, %v1701
        %v1809 = vmul.f32 %v1793, 1.442695
        %v1810 = vpow.pop %v1809
        %v1811 = vmul.f32 %v1794, 1.442695
        %v1812 = vpow.pop %v1811
        %v1813 = vmul.f32 %v1795, 1.442695
        %v1814 = vpow.pop %v1813
        %v1815 = vmul.f32 %v1796, 1.442695
        %v1816 = vpow.pop %v1815
        %v1817 = vmul.f32 %v1797, 1.442695
        %v1818 = vpow.pop %v1817
        %v1819 = vmul.f32 %v1798, 1.442695
        %v1820 = vpow.pop %v1819
        %v1821 = vmul.f32 %v1799, 1.442695
        %v1822 = vpow.pop %v1821
        %v1823 = vmul.f32 %v1800, 1.442695
        %v1824 = vpow.pop %v1823
        %v1825 = vmul.f32 %v1801, 1.442695
        %v1826 = vpow.pop %v1825
        %v1827 = vmul.f32 %v1802, 1.442695
        %v1828 = vpow.pop %v1827
        %v1829 = vmul.f32 %v1803, 1.442695
        %v1830 = vpow.pop %v1829
        %v1831 = vmul.f32 %v1804, 1.442695
        %v1832 = vpow.pop %v1831
        %v1833 = vmul.f32 %v1805, 1.442695
        %v1834 = vpow.pop %v1833
        %v1835 = vmul.f32 %v1806, 1.442695
        %v1836 = vpow.pop %v1835
        %v1837 = vmul.f32 %v1807, 1.442695
        %v1838 = vpow.pop %v1837
        %v1839 = vmul.f32 %v1808, 1.442695
        %v1840 = vpow.pop %v1839
        %v1841 = vlaneseq
        %v1842 = vshrl.u32 %v1841, 7
        %v1843 = vsub.s32 0, %v1842
        %v1844 = vrot.slane %v1680, %v1843
        %s1846 = sor.u32 256, 64
        %1847 = vbcast.lane.b32.xlu0 %v1844, %s1846
        %v1848 = vpop.permute.xlu0 %1847
        %s1850 = sor.u32 256, 72
        %1851 = vbcast.lane.b32.xlu0 %v1844, %s1850
        %v1852 = vpop.permute.xlu0 %1851
        %v1853 = vlaneseq
        %v1854 = vshrl.u32 %v1853, 7
        %v1855 = vsub.s32 1, %v1854
        %v1856 = vrot.slane %v1680, %v1855
        %s1858 = sor.u32 256, 64
        %1859 = vbcast.lane.b32.xlu0 %v1856, %s1858
        %v1860 = vpop.permute.xlu0 %1859
        %s1862 = sor.u32 256, 72
        %1863 = vbcast.lane.b32.xlu0 %v1856, %s1862
        %v1864 = vpop.permute.xlu0 %1863
        %v1865 = vlaneseq
        %v1866 = vshrl.u32 %v1865, 7
        %v1867 = vsub.s32 2, %v1866
        %v1868 = vrot.slane %v1680, %v1867
        %s1870 = sor.u32 256, 64
        %1871 = vbcast.lane.b32.xlu0 %v1868, %s1870
        %v1872 = vpop.permute.xlu0 %1871
        %s1874 = sor.u32 256, 72
        %1875 = vbcast.lane.b32.xlu0 %v1868, %s1874
        %v1876 = vpop.permute.xlu0 %1875
        %v1877 = vlaneseq
        %v1878 = vshrl.u32 %v1877, 7
        %v1879 = vsub.s32 3, %v1878
        %v1880 = vrot.slane %v1680, %v1879
        %s1882 = sor.u32 256, 64
        %1883 = vbcast.lane.b32.xlu0 %v1880, %s1882
        %v1884 = vpop.permute.xlu0 %1883
        %s1886 = sor.u32 256, 72
        %1887 = vbcast.lane.b32.xlu0 %v1880, %s1886
        %v1888 = vpop.permute.xlu0 %1887
        %v1889 = vlaneseq
        %v1890 = vshrl.u32 %v1889, 7
        %v1891 = vsub.s32 4, %v1890
        %v1892 = vrot.slane %v1680, %v1891
        %s1894 = sor.u32 256, 64
        %1895 = vbcast.lane.b32.xlu0 %v1892, %s1894
        %v1896 = vpop.permute.xlu0 %1895
        %s1898 = sor.u32 256, 72
        %1899 = vbcast.lane.b32.xlu0 %v1892, %s1898
        %v1900 = vpop.permute.xlu0 %1899
        %v1901 = vlaneseq
        %v1902 = vshrl.u32 %v1901, 7
        %v1903 = vsub.s32 5, %v1902
        %v1904 = vrot.slane %v1680, %v1903
        %s1906 = sor.u32 256, 64
        %1907 = vbcast.lane.b32.xlu0 %v1904, %s1906
        %v1908 = vpop.permute.xlu0 %1907
        %s1910 = sor.u32 256, 72
        %1911 = vbcast.lane.b32.xlu0 %v1904, %s1910
        %v1912 = vpop.permute.xlu0 %1911
        %v1913 = vlaneseq
        %v1914 = vshrl.u32 %v1913, 7
        %v1915 = vsub.s32 6, %v1914
        %v1916 = vrot.slane %v1680, %v1915
        %s1918 = sor.u32 256, 64
        %1919 = vbcast.lane.b32.xlu0 %v1916, %s1918
        %v1920 = vpop.permute.xlu0 %1919
        %s1922 = sor.u32 256, 72
        %1923 = vbcast.lane.b32.xlu0 %v1916, %s1922
        %v1924 = vpop.permute.xlu0 %1923
        %v1925 = vlaneseq
        %v1926 = vshrl.u32 %v1925, 7
        %v1927 = vsub.s32 7, %v1926
        %v1928 = vrot.slane %v1680, %v1927
        %s1930 = sor.u32 256, 64
        %1931 = vbcast.lane.b32.xlu0 %v1928, %s1930
        %v1932 = vpop.permute.xlu0 %1931
        %s1934 = sor.u32 256, 72
        %1935 = vbcast.lane.b32.xlu0 %v1928, %s1934
        %v1936 = vpop.permute.xlu0 %1935
        %v1938 = vcombine.high %v1702, %v1702
        %v1940 = vunpack.c.l.s4 1966171168
        %v1941 = vunpack.c.0.s8 %v1940
        %v1942 = vlaneseq
        %v1943 = vshrl.u32 %v1942, 7
        %v1944 = vsub.s32 %v1941, %v1943
        %v1945 = vrot.slane %v1702, %v1944
        %v1947 = vunpack.c.l.s4 1966171168
        %v1948 = vunpack.c.0.s8 %v1947
        %v1949 = vlaneseq
        %v1950 = vshrl.u32 %v1949, 7
        %v1951 = vsub.s32 %v1948, %v1950
        %v1952 = vrot.slane %v1938, %v1951
        %v1953 = vcombine.high %v1945, %v1945
        %v1954 = vcombine.high %v1952, %v1952
        %v1956 = vunpack.c.l.s4 1966171168
        %v1957 = vunpack.c.0.s8 %v1956
        %v1958 = vlaneseq
        %v1959 = vshrl.u32 %v1958, 7
        %v1960 = vsub.s32 %v1957, %v1959
        %v1961 = vrot.slane %v1945, %v1960
        %v1963 = vunpack.c.l.s4 1966171168
        %v1964 = vunpack.c.0.s8 %v1963
        %v1965 = vlaneseq
        %v1966 = vshrl.u32 %v1965, 7
        %v1967 = vsub.s32 %v1964, %v1966
        %v1968 = vrot.slane %v1952, %v1967
        %v1970 = vunpack.c.l.s4 1966171168
        %v1971 = vunpack.c.0.s8 %v1970
        %v1972 = vlaneseq
        %v1973 = vshrl.u32 %v1972, 7
        %v1974 = vsub.s32 %v1971, %v1973
        %v1975 = vrot.slane %v1953, %v1974
        %v1977 = vunpack.c.l.s4 1966171168
        %v1978 = vunpack.c.0.s8 %v1977
        %v1979 = vlaneseq
        %v1980 = vshrl.u32 %v1979, 7
        %v1981 = vsub.s32 %v1978, %v1980
        %v1982 = vrot.slane %v1954, %v1981
        %v1983 = vcombine.high %v1961, %v1961
        %v1984 = vcombine.high %v1968, %v1968
        %v1985 = vcombine.high %v1975, %v1975
        %v1986 = vcombine.high %v1982, %v1982
        %v1987 = vlaneseq
        %v1988 = vshrl.u32 %v1987, 7
        %v1989 = vsub.s32 0, %v1988
        %v1990 = vrot.slane %v1961, %v1989
        %v1991 = vlaneseq
        %v1992 = vshrl.u32 %v1991, 7
        %v1993 = vsub.s32 0, %v1992
        %v1994 = vrot.slane %v1975, %v1993
        %v1995 = vlaneseq
        %v1996 = vshrl.u32 %v1995, 7
        %v1997 = vsub.s32 0, %v1996
        %v1998 = vrot.slane %v1983, %v1997
        %v1999 = vlaneseq
        %v2000 = vshrl.u32 %v1999, 7
        %v2001 = vsub.s32 0, %v2000
        %v2002 = vrot.slane %v1985, %v2001
        %v2003 = vlaneseq
        %v2004 = vshrl.u32 %v2003, 7
        %v2005 = vsub.s32 0, %v2004
        %v2006 = vrot.slane %v1968, %v2005
        %v2007 = vlaneseq
        %v2008 = vshrl.u32 %v2007, 7
        %v2009 = vsub.s32 0, %v2008
        %v2010 = vrot.slane %v1982, %v2009
        %v2011 = vlaneseq
        %v2012 = vshrl.u32 %v2011, 7
        %v2013 = vsub.s32 0, %v2012
        %v2014 = vrot.slane %v1984, %v2013
        %v2015 = vlaneseq
        %v2016 = vshrl.u32 %v2015, 7
        %v2017 = vsub.s32 0, %v2016
        %v2018 = vrot.slane %v1986, %v2017
        %v2027 = vmul.f32 %v1848, %v1990
        %v2028 = vmul.f32 %v1852, %v1990
        %v2029 = vmul.f32 %v1860, %v1994
        %v2030 = vmul.f32 %v1864, %v1994
        %v2031 = vmul.f32 %v1872, %v1998
        %v2032 = vmul.f32 %v1876, %v1998
        %v2033 = vmul.f32 %v1884, %v2002
        %v2034 = vmul.f32 %v1888, %v2002
        %v2035 = vmul.f32 %v1896, %v2006
        %v2036 = vmul.f32 %v1900, %v2006
        %v2037 = vmul.f32 %v1908, %v2010
        %v2038 = vmul.f32 %v1912, %v2010
        %v2039 = vmul.f32 %v1920, %v2014
        %v2040 = vmul.f32 %v1924, %v2014
        %v2041 = vmul.f32 %v1932, %v2018
        %v2042 = vmul.f32 %v1936, %v2018
        %v2043 = vmul.f32 %v1810, 0.0
        %v2044 = vmul.f32 %v1812, 0.0
        %v2045 = vadd.f32 %v2043, %v2027
        %v2046 = vadd.f32 %v2044, %v2028
        %2047 = vst.msk [vmem:[#allocation3] sm:$0xff] %vm437, %v2045
        %2048 = vst.msk [vmem:[#allocation3 + $0x8] sm:$0xff] %vm437, %v2046
        %v2049 = vmul.f32 %v2045, %v1814
        %v2050 = vmul.f32 %v2046, %v1816
        %v2051 = vadd.f32 %v2049, %v2029
        %v2052 = vadd.f32 %v2050, %v2030
        %2053 = vst.msk [vmem:[%s1044] sm:$0xff] %vm437, %v2051
        %2054 = vst.msk [vmem:[%s1044 + $0x8] sm:$0xff] %vm437, %v2052
        %v2055 = vmul.f32 %v2051, %v1818
        %v2056 = vmul.f32 %v2052, %v1820
        %v2057 = vadd.f32 %v2055, %v2031
        %v2058 = vadd.f32 %v2056, %v2032
        %2059 = vst.msk [vmem:[%s1051] sm:$0xff] %vm437, %v2057
        %2060 = vst.msk [vmem:[%s1051 + $0x8] sm:$0xff] %vm437, %v2058
        %v2061 = vmul.f32 %v2057, %v1822
        %v2062 = vmul.f32 %v2058, %v1824
        %v2063 = vadd.f32 %v2061, %v2033
        %v2064 = vadd.f32 %v2062, %v2034
        %2065 = vst.msk [vmem:[%s1058] sm:$0xff] %vm437, %v2063
        %2066 = vst.msk [vmem:[%s1058 + $0x8] sm:$0xff] %vm437, %v2064
        %v2067 = vmul.f32 %v2063, %v1826
        %v2068 = vmul.f32 %v2064, %v1828
        %v2069 = vadd.f32 %v2067, %v2035
        %v2070 = vadd.f32 %v2068, %v2036
        %2071 = vst.msk [vmem:[%s1065] sm:$0xff] %vm437, %v2069
        %2072 = vst.msk [vmem:[%s1065 + $0x8] sm:$0xff] %vm437, %v2070
        %v2073 = vmul.f32 %v2069, %v1830
        %v2074 = vmul.f32 %v2070, %v1832
        %v2075 = vadd.f32 %v2073, %v2037
        %v2076 = vadd.f32 %v2074, %v2038
        %2077 = vst.msk [vmem:[%s1072] sm:$0xff] %vm437, %v2075
        %2078 = vst.msk [vmem:[%s1072 + $0x8] sm:$0xff] %vm437, %v2076
        %v2079 = vmul.f32 %v2075, %v1834
        %v2080 = vmul.f32 %v2076, %v1836
        %v2081 = vadd.f32 %v2079, %v2039
        %v2082 = vadd.f32 %v2080, %v2040
        %2083 = vst.msk [vmem:[%s1079] sm:$0xff] %vm437, %v2081
        %2084 = vst.msk [vmem:[%s1079 + $0x8] sm:$0xff] %vm437, %v2082
        %v2085 = vmul.f32 %v2081, %v1838
        %v2086 = vmul.f32 %v2082, %v1840
        %v2087 = vadd.f32 %v2085, %v2041
        %v2088 = vadd.f32 %v2086, %v2042
        %2089 = vst.msk [vmem:[%s1086] sm:$0xff] %vm437, %v2087
        %2090 = vst.msk [vmem:[%s1086 + $0x8] sm:$0xff] %vm437, %v2088
        %v2091 = vld [vmem:[#allocation3] sm:$0xff]
        %v2092 = vld [vmem:[#allocation3 + $0x8] sm:$0xff]
        %v2093 = vld [vmem:[#allocation3 + $0x10] sm:$0xff]
        %v2094 = vld [vmem:[#allocation3 + $0x18] sm:$0xff]
        %v2095 = vld [vmem:[#allocation3 + $0x20] sm:$0xff]
        %v2096 = vld [vmem:[#allocation3 + $0x28] sm:$0xff]
        %v2097 = vld [vmem:[#allocation3 + $0x30] sm:$0xff]
        %v2098 = vld [vmem:[#allocation3 + $0x38] sm:$0xff]
        %v2099 = vld [vmem:[#allocation3 + $0x40] sm:$0xff]
        %v2100 = vld [vmem:[#allocation3 + $0x48] sm:$0xff]
        %v2101 = vld [vmem:[#allocation3 + $0x50] sm:$0xff]
        %v2102 = vld [vmem:[#allocation3 + $0x58] sm:$0xff]
        %v2103 = vld [vmem:[#allocation3 + $0x60] sm:$0xff]
        %v2104 = vld [vmem:[#allocation3 + $0x68] sm:$0xff]
        %v2105 = vld [vmem:[#allocation3 + $0x70] sm:$0xff]
        %v2106 = vld [vmem:[#allocation3 + $0x78] sm:$0xff]
        %s2108 = sor.u32 256, 80
        %2109 = vbcast.lane.b32.xlu0 %v1844, %s2108
        %v2110 = vpop.permute.xlu0 %2109
        %s2112 = sor.u32 256, 88
        %2113 = vbcast.lane.b32.xlu0 %v1844, %s2112
        %v2114 = vpop.permute.xlu0 %2113
        %s2116 = sor.u32 256, 80
        %2117 = vbcast.lane.b32.xlu0 %v1856, %s2116
        %v2118 = vpop.permute.xlu0 %2117
        %s2120 = sor.u32 256, 88
        %2121 = vbcast.lane.b32.xlu0 %v1856, %s2120
        %v2122 = vpop.permute.xlu0 %2121
        %s2124 = sor.u32 256, 80
        %2125 = vbcast.lane.b32.xlu0 %v1868, %s2124
        %v2126 = vpop.permute.xlu0 %2125
        %s2128 = sor.u32 256, 88
        %2129 = vbcast.lane.b32.xlu0 %v1868, %s2128
        %v2130 = vpop.permute.xlu0 %2129
        %s2132 = sor.u32 256, 80
        %2133 = vbcast.lane.b32.xlu0 %v1880, %s2132
        %v2134 = vpop.permute.xlu0 %2133
        %s2136 = sor.u32 256, 88
        %2137 = vbcast.lane.b32.xlu0 %v1880, %s2136
        %v2138 = vpop.permute.xlu0 %2137
        %s2140 = sor.u32 256, 80
        %2141 = vbcast.lane.b32.xlu0 %v1892, %s2140
        %v2142 = vpop.permute.xlu0 %2141
        %s2144 = sor.u32 256, 88
        %2145 = vbcast.lane.b32.xlu0 %v1892, %s2144
        %v2146 = vpop.permute.xlu0 %2145
        %s2148 = sor.u32 256, 80
        %2149 = vbcast.lane.b32.xlu0 %v1904, %s2148
        %v2150 = vpop.permute.xlu0 %2149
        %s2152 = sor.u32 256, 88
        %2153 = vbcast.lane.b32.xlu0 %v1904, %s2152
        %v2154 = vpop.permute.xlu0 %2153
        %s2156 = sor.u32 256, 80
        %2157 = vbcast.lane.b32.xlu0 %v1916, %s2156
        %v2158 = vpop.permute.xlu0 %2157
        %s2160 = sor.u32 256, 88
        %2161 = vbcast.lane.b32.xlu0 %v1916, %s2160
        %v2162 = vpop.permute.xlu0 %2161
        %s2164 = sor.u32 256, 80
        %2165 = vbcast.lane.b32.xlu0 %v1928, %s2164
        %v2166 = vpop.permute.xlu0 %2165
        %s2168 = sor.u32 256, 88
        %2169 = vbcast.lane.b32.xlu0 %v1928, %s2168
        %v2170 = vpop.permute.xlu0 %2169
        %v2171 = vmul.f32 %v2091, %v2110
        %v2172 = vmul.f32 %v2092, %v2114
        %v2173 = vmul.f32 %v2093, %v2118
        %v2174 = vmul.f32 %v2094, %v2122
        %v2175 = vmul.f32 %v2095, %v2126
        %v2176 = vmul.f32 %v2096, %v2130
        %v2177 = vmul.f32 %v2097, %v2134
        %v2178 = vmul.f32 %v2098, %v2138
        %v2179 = vmul.f32 %v2099, %v2142
        %v2180 = vmul.f32 %v2100, %v2146
        %v2181 = vmul.f32 %v2101, %v2150
        %v2182 = vmul.f32 %v2102, %v2154
        %v2183 = vmul.f32 %v2103, %v2158
        %v2184 = vmul.f32 %v2104, %v2162
        %v2185 = vmul.f32 %v2105, %v2166
        %v2186 = vmul.f32 %v2106, %v2170
        %v2187 = vsel %vm437, %v2171, 0.0
        %v2188 = vsel %vm437, %v2172, 0.0
        %v2189 = vadd.f32 %v2187, %v2188
        %v2190 = vrot.slane %v2189, 4
        %v2191 = vadd.f32 %v2189, %v2190
        %v2192 = vrot.slane %v2191, 2
        %v2193 = vadd.f32 %v2191, %v2192
        %v2194 = vrot.slane %v2193, 1
        %v2195 = vadd.f32 %v2193, %v2194
        %v2196 = vsel %vm437, %v2173, 0.0
        %v2197 = vsel %vm437, %v2174, 0.0
        %v2198 = vadd.f32 %v2196, %v2197
        %v2199 = vrot.slane %v2198, 4
        %v2200 = vadd.f32 %v2198, %v2199
        %v2201 = vrot.slane %v2200, 2
        %v2202 = vadd.f32 %v2200, %v2201
        %v2203 = vrot.slane %v2202, 1
        %v2204 = vadd.f32 %v2202, %v2203
        %v2205 = vsel %vm437, %v2175, 0.0
        %v2206 = vsel %vm437, %v2176, 0.0
        %v2207 = vadd.f32 %v2205, %v2206
        %v2208 = vrot.slane %v2207, 4
        %v2209 = vadd.f32 %v2207, %v2208
        %v2210 = vrot.slane %v2209, 2
        %v2211 = vadd.f32 %v2209, %v2210
        %v2212 = vrot.slane %v2211, 1
        %v2213 = vadd.f32 %v2211, %v2212
        %v2214 = vsel %vm437, %v2177, 0.0
        %v2215 = vsel %vm437, %v2178, 0.0
        %v2216 = vadd.f32 %v2214, %v2215
        %v2217 = vrot.slane %v2216, 4
        %v2218 = vadd.f32 %v2216, %v2217
        %v2219 = vrot.slane %v2218, 2
        %v2220 = vadd.f32 %v2218, %v2219
        %v2221 = vrot.slane %v2220, 1
        %v2222 = vadd.f32 %v2220, %v2221
        %v2223 = vsel %vm437, %v2179, 0.0
        %v2224 = vsel %vm437, %v2180, 0.0
        %v2225 = vadd.f32 %v2223, %v2224
        %v2226 = vrot.slane %v2225, 4
        %v2227 = vadd.f32 %v2225, %v2226
        %v2228 = vrot.slane %v2227, 2
        %v2229 = vadd.f32 %v2227, %v2228
        %v2230 = vrot.slane %v2229, 1
        %v2231 = vadd.f32 %v2229, %v2230
        %v2232 = vsel %vm437, %v2181, 0.0
        %v2233 = vsel %vm437, %v2182, 0.0
        %v2234 = vadd.f32 %v2232, %v2233
        %v2235 = vrot.slane %v2234, 4
        %v2236 = vadd.f32 %v2234, %v2235
        %v2237 = vrot.slane %v2236, 2
        %v2238 = vadd.f32 %v2236, %v2237
        %v2239 = vrot.slane %v2238, 1
        %v2240 = vadd.f32 %v2238, %v2239
        %v2241 = vsel %vm437, %v2183, 0.0
        %v2242 = vsel %vm437, %v2184, 0.0
        %v2243 = vadd.f32 %v2241, %v2242
        %v2244 = vrot.slane %v2243, 4
        %v2245 = vadd.f32 %v2243, %v2244
        %v2246 = vrot.slane %v2245, 2
        %v2247 = vadd.f32 %v2245, %v2246
        %v2248 = vrot.slane %v2247, 1
        %v2249 = vadd.f32 %v2247, %v2248
        %v2250 = vsel %vm437, %v2185, 0.0
        %v2251 = vsel %vm437, %v2186, 0.0
        %v2252 = vadd.f32 %v2250, %v2251
        %v2253 = vrot.slane %v2252, 4
        %v2254 = vadd.f32 %v2252, %v2253
        %v2255 = vrot.slane %v2254, 2
        %v2256 = vadd.f32 %v2254, %v2255
        %v2257 = vrot.slane %v2256, 1
        %v2258 = vadd.f32 %v2256, %v2257
        %s2259 = scalar_lea.vmem %s9, 1
        %v2260 = vld [vmem:[%s2259] sm:$0x1]
        %v2262 = vlaneseq
        %v2263 = vshrl.u32 %v2262, 7
        %v2264 = vsub.s32 0, %v2263
        %v2265 = vrot.slane %v2260, %v2264
        %v2267 = vmul.f32 %v1600, %v2265
        %v2269 = vrot.slane %v2267, 1
        %v2270 = vrot.slane %v2267, 2
        %v2271 = vrot.slane %v2267, 3
        %v2272 = vrot.slane %v2267, 4
        %v2273 = vrot.slane %v2267, 5
        %v2274 = vrot.slane %v2267, 6
        %v2275 = vrot.slane %v2267, 7
        %v2284 = vadd.f32 %v2195, %v2267
        %v2285 = vadd.f32 %v2204, %v2269
        %v2286 = vadd.f32 %v2213, %v2270
        %v2287 = vadd.f32 %v2222, %v2271
        %v2288 = vadd.f32 %v2231, %v2272
        %v2289 = vadd.f32 %v2240, %v2273
        %v2290 = vadd.f32 %v2249, %v2274
        %v2291 = vadd.f32 %v2258, %v2275
        %v2292 = vxor.u32 %v1551, 2147483648
        %v2293 = vmul.f32 %v2292, 1.442695
        %v2294 = vpow.pop %v2293
        %v2295 = vadd.f32 %v2294, 1.0
        %v2296 = vrcp.pop %v2295
        %v2297 = vmul.f32 1.0, %v2296
        %v2298 = vmul.f32 %v1551, %v2297
        %v2300 = vrot.slane %v2298, 1
        %v2301 = vrot.slane %v2298, 2
        %v2302 = vrot.slane %v2298, 3
        %v2303 = vrot.slane %v2298, 4
        %v2304 = vrot.slane %v2298, 5
        %v2305 = vrot.slane %v2298, 6
        %v2306 = vrot.slane %v2298, 7
        %2307 = vrot.lane.b32.xlu0 %v2298, 64
        %v2308 = vpop.permute.xlu0 %2307
        %2309 = vrot.lane.b32.xlu0 %v2300, 64
        %v2310 = vpop.permute.xlu0 %2309
        %2311 = vrot.lane.b32.xlu0 %v2301, 64
        %v2312 = vpop.permute.xlu0 %2311
        %2313 = vrot.lane.b32.xlu0 %v2302, 64
        %v2314 = vpop.permute.xlu0 %2313
        %2315 = vrot.lane.b32.xlu0 %v2303, 64
        %v2316 = vpop.permute.xlu0 %2315
        %2317 = vrot.lane.b32.xlu0 %v2304, 64
        %v2318 = vpop.permute.xlu0 %2317
        %2319 = vrot.lane.b32.xlu0 %v2305, 64
        %v2320 = vpop.permute.xlu0 %2319
        %2321 = vrot.lane.b32.xlu0 %v2306, 64
        %v2322 = vpop.permute.xlu0 %2321
        %v2331 = vmul.f32 %v2284, %v2308
        %v2332 = vmul.f32 %v2285, %v2310
        %v2333 = vmul.f32 %v2286, %v2312
        %v2334 = vmul.f32 %v2287, %v2314
        %v2335 = vmul.f32 %v2288, %v2316
        %v2336 = vmul.f32 %v2289, %v2318
        %v2337 = vmul.f32 %v2290, %v2320
        %v2338 = vmul.f32 %v2291, %v2322
        %s2339 = scalar_lea.vmem %s10, 64
        %v2340 = vld [vmem:[%s2339] sm:$0xff]
        %v2341 = vld [vmem:[%s2339 + $0x8] sm:$0xff]
        %v2342 = vld [vmem:[%s2339 + $0x10] sm:$0xff]
        %v2343 = vld [vmem:[%s2339 + $0x18] sm:$0xff]
        %v2344 = vld [vmem:[%s2339 + $0x20] sm:$0xff]
        %v2345 = vld [vmem:[%s2339 + $0x28] sm:$0xff]
        %v2346 = vld [vmem:[%s2339 + $0x30] sm:$0xff]
        %v2347 = vld [vmem:[%s2339 + $0x38] sm:$0xff]
        %v2356 = vrot.slane %v2332, 7
        %v2357 = vsel %vm1353, %v2356, %v2331
        %v2358 = vrot.slane %v2333, 6
        %v2359 = vsel %vm1356, %v2358, %v2357
        %v2360 = vrot.slane %v2334, 5
        %v2361 = vsel %vm1359, %v2360, %v2359
        %v2362 = vrot.slane %v2335, 4
        %v2363 = vsel %vm1362, %v2362, %v2361
        %v2364 = vrot.slane %v2336, 3
        %v2365 = vsel %vm1365, %v2364, %v2363
        %v2366 = vrot.slane %v2337, 2
        %v2367 = vsel %vm1368, %v2366, %v2365
        %v2368 = vrot.slane %v2338, 1
        %v2369 = vsel %vm1371, %v2368, %v2367
        %v2370 = vsel %vm437, %v2369, 0
        %2372 = vmatprep.subr.mxu0 0.0
        %2373 = vmatpush1.msra.mxu0 %v2340
        %2374 = vmatprep.subr.mxu0 0.0
        %2375 = vmatpush1.msra.mxu0 %v2341
        %2376 = vmatprep.subr.mxu0 0.0
        %2377 = vmatpush1.msra.mxu0 %v2342
        %2378 = vmatprep.subr.mxu0 0.0
        %2379 = vmatpush1.msra.mxu0 %v2343
        %2380 = vmatprep.subr.mxu0 0.0
        %2381 = vmatpush1.msra.mxu0 %v2344
        %2382 = vmatprep.subr.mxu0 0.0
        %2383 = vmatpush1.msra.mxu0 %v2345
        %2384 = vmatprep.subr.mxu0 0.0
        %2385 = vmatpush1.msra.mxu0 %v2346
        %2386 = vmatprep.subr.mxu0 0.0
        %2387 = vmatpush1.msra.mxu0 %v2347
        %2388 = vmatprep.subr.mxu0 0.0
        %2389 = vmatpush1.msra.mxu0 0.0
        %2390 = vmatprep.subr.mxu0 0.0
        %2391 = vmatpush1.msra.mxu0 0.0
        %2392 = vmatprep.subr.mxu0 0.0
        %2393 = vmatpush1.msra.mxu0 0.0
        %2394 = vmatprep.subr.mxu0 0.0
        %2395 = vmatpush1.msra.mxu0 0.0
        %2396 = vmatprep.subr.mxu0 0.0
        %2397 = vmatpush1.msra.mxu0 0.0
        %2398 = vmatprep.subr.mxu0 0.0
        %2399 = vmatpush1.msra.mxu0 0.0
        %2400 = vmatprep.subr.mxu0 0.0
        %2401 = vmatpush1.msra.mxu0 0.0
        %2402 = vmatprep.subr.mxu0 0.0
        %2403 = vmatpush1.msra.mxu0 0.0
        %2404 = vmatprep.subr.mxu0 0.0
        %2405 = vmatpush1.msra.mxu0 0.0
        %2406 = vmatprep.subr.mxu0 0.0
        %2407 = vmatpush1.msra.mxu0 0.0
        %2408 = vmatprep.subr.mxu0 0.0
        %2409 = vmatpush1.msra.mxu0 0.0
        %2410 = vmatprep.subr.mxu0 0.0
        %2411 = vmatpush1.msra.mxu0 0.0
        %2412 = vmatprep.subr.mxu0 0.0
        %2413 = vmatpush1.msra.mxu0 0.0
        %2414 = vmatprep.subr.mxu0 0.0
        %2415 = vmatpush1.msra.mxu0 0.0
        %2416 = vmatprep.subr.mxu0 0.0
        %2417 = vmatpush1.msra.mxu0 0.0
        %2418 = vmatprep.subr.mxu0 0.0
        %2419 = vmatpush1.msra.mxu0 0.0
        %2420 = vmatprep.subr.mxu0 0.0
        %2421 = vmatpush1.msra.mxu0 0.0
        %2422 = vmatprep.subr.mxu0 0.0
        %2423 = vmatpush1.msra.mxu0 0.0
        %2424 = vmatprep.subr.mxu0 0.0
        %2425 = vmatpush1.msra.mxu0 0.0
        %2426 = vmatprep.subr.mxu0 0.0
        %2427 = vmatpush1.msra.mxu0 0.0
        %2428 = vmatprep.subr.mxu0 0.0
        %2429 = vmatpush1.msra.mxu0 0.0
        %2430 = vmatprep.subr.mxu0 0.0
        %2431 = vmatpush1.msra.mxu0 0.0
        %2432 = vmatprep.subr.mxu0 0.0
        %2433 = vmatpush1.msra.mxu0 0.0
        %2434 = vmatprep.subr.mxu0 0.0
        %2435 = vmatpush1.msra.mxu0 0.0
        %2436 = vmatprep.mubr.f32.mxu0 0.0
        %2437 = vmatmul.mubr.f32.gmra.mrb[0].mxu0 %v2370
        %v2438 = vpop.f32.mrb[0].mxu0
        %v2439 = vadd.f32 %v1442, %v2438
        %v2440 = vpop.f32.mrb[0].mxu0
        %2441 = vdwg.mxu0
        %v2442 = vld [vmem:[%s11] sm:$0x1]
        %v2443 = vld [vmem:[%s12] sm:$0x1]
        %v2444 = vsel %vm444, %v2439, 0.0
        %2445 = vadd.xlane.f32.xlu0 %v2444
        %v2446 = vpop.xlane.xlu0 %2445
        %v2447 = vmul.f32 %v2446, %v448
        %v2448 = vsub.f32 %v2439, %v2447
        %v2449 = vmul.f32 %v2448, %v2448
        %v2450 = vsel %vm444, %v2449, 0.0
        %2451 = vadd.xlane.f32.xlu0 %v2450
        %v2452 = vpop.xlane.xlu0 %2451
        %v2453 = vmul.f32 %v2452, %v448
        %v2454 = vadd.f32 %v2453, 1e-05
        %v2455 = vrsqrt.pop %v2454
        %v2456 = vmul.f32 %v2448, %v2455
        %v2458 = vlaneseq
        %v2459 = vshrl.u32 %v2458, 7
        %v2460 = vsub.s32 0, %v2459
        %v2461 = vrot.slane %v2442, %v2460
        %v2463 = vmul.f32 %v2456, %v2461
        %v2465 = vlaneseq
        %v2466 = vshrl.u32 %v2465, 7
        %v2467 = vsub.s32 0, %v2466
        %v2468 = vrot.slane %v2443, %v2467
        %v2470 = vadd.f32 %v2463, %v2468
        %2471 = vst.msk [vmem:[%s431] sm:$0xff] %vm444, %v2470
        %s2472 = sand.u32 %s313, 1
        %s2473 = scalar_lea.sflag [#allocation5], %s2472
        %s2474 = sand.u32 %s313, 1
        %s2475 = smul.addr %s2474, 8
        %s2476 = scalar_lea.vmem [#allocation4], %s2475
        // Predicated region
        $region73: #{mixer_model_forward.1} parent=71 // pred_check
          %p2477 = pneg %p323
        $region74: #{mixer_model_forward.1} parent=71 // pred_check_branch
          %2479 = sbr.rel (%p2477) target = $region76
        $region75: #{mixer_model_forward.1} parent=71 // pred_region
          %s2481 = ssub.s32 128, 128
          %2482 = vsyncadd %s2473, %s2481
          %s2483 = smul.addr %s27, 128
          %s2484 = scalar_lea.hbm %s13, %s2483
          %s2486 = sshll.u32 %s2476, 4
          %s2487 = int_to_ptr.vmem [resolvable:$true] %s2486
          %2489 = dma.vmem_to_hbm [thread:$0]  %s2487, 128, %s2484, %s2473
        $region76: #{mixer_model_forward.1} parent=71 // pred_fallthru
          _
      $region72: #{mixer_model_forward.1} parent=5 // pred_fallthru
        _
      %p2490 = scmp.le.s32.totalorder 2, %s22
      // Predicated region
      $region77: #{mixer_model_forward.1} parent=5 // pred_check
        %p2491 = pneg %p2490
      $region78: #{mixer_model_forward.1} parent=5 // pred_check_branch
        %2493 = sbr.rel (%p2491) target = $region80
      $region79: #{mixer_model_forward.1} parent=5 // pred_region
        %s2494 = ssub.s32 %s22, 2
        // Predicated region
        $region81: #{mixer_model_forward.1} parent=79 // pred_check
          %p2495 = pneg %p329
        $region82: #{mixer_model_forward.1} parent=79 // pred_check_branch
          %2497 = sbr.rel (%p2495) target = $region84
        $region83: #{mixer_model_forward.1} parent=79 // pred_region
          %s2498 = sand.u32 %s314, 1
          %s2499 = scalar_lea.sflag [#allocation5], %s2498
          %s2500 = sand.u32 %s314, 1
          %s2501 = smul.addr %s2500, 8
          %s2502 = scalar_lea.vmem [#allocation4], %s2501
          %2503 = dma.done %s2499, 128
        $region84: #{mixer_model_forward.1} parent=79 // pred_fallthru
          _
      $region80: #{mixer_model_forward.1} parent=5 // pred_fallthru
        _
    $region6: #{mixer_model_forward.1} parent=1 // loop_footer
      %s26 = sadd.s32 1, %s22
    $region7: #{mixer_model_forward.1} parent=1 // loop_footer_branch
      %21 = sbr.rel target = $region3
    $region8: #{mixer_model_forward.1} parent=1 // loop_exit
      _
    %2504 = vsyncpa [#allocation5], 1
    %s2505 = scalar_lea.sflag [#allocation5], 1
    %2506 = vsyncpa %s2505, 1

</llo_original>
